<compile_context>
chip_gen: v7x
topology: tpu7x:2x2x1
jax: 0.10.0
libtpu: 0.0.40
codegen_flags: <defaults>
</compile_context>

<pallas_src>
import jax
import jax.numpy as jnp
from jax.experimental import pallas as pl
from jax.experimental.pallas import tpu as pltpu

# ---------------- model dimensions (small, consistent with the module) -------
B, T, L = 2, 8, 12            # batch, words per sentence, chars per word
VW, VC = 50, 20               # word / char vocab sizes
E_WORD = 16                   # word embedding dim   (embedding_dim)
E_CHAR = 30                   # char embedding dim   (char_embedding_size=30)
C1, K1 = 60, 5                # conv1: channel_out1=60, kernel1=5, padding=1
C2, K2 = 30, 3                # conv2: channel_out2=30, kernel2=3, padding=1
H = 32                        # LSTM hidden_dim
D_IN = E_WORD + C2 + 1        # == embedding_dim + 31  (word + char-CNN + cap)
LIN = 16                      # linear_dim
D_OUT = 5                     # D_out

NW = T * B                    # number of words, time-major order (row = t*B + b)
LC1 = L + 2 - K1 + 1          # 10: conv1 output positions
LP = LC1 + 2 - K1 + 1         # 8 : maxpool1 / conv2 / maxpool2 output positions
NSLOT = 16                    # padded per-word slot count; conv1 outputs in slots 2..11


# ============================ single fused kernel =============================
def fused_kernel(xcol_ref, pmask_ref, wemb_ref, cap_ref, smask_ref, m2_ref,
                 w1_ref, b1_ref, w2_ref, b2_ref,
                 wihw_ref, wihc_ref, wihcap_ref, blstm_ref, whh_ref,
                 lw1f_ref, lw1b_ref, lb1_ref, lw2_ref, lb2_ref,
                 out_ref):
    f32 = jnp.float32

    # -------- stage 1: char CNN, all B*T words batched, conv1 = one im2col matmul ----
    a1 = jnp.dot(xcol_ref[...], w1_ref[...], preferred_element_type=f32) + b1_ref[...]
    a1 = jnp.maximum(a1, 0.0) * pmask_ref[...]       # zero the pad-slot rows (kills bias)
    a1 = a1.reshape(NW, NSLOT, C1)                   # conv1 outputs live in slots 2..11

    # maxpool1 (k=5, stride=1, pad=1): sliding max over the already-zero-padded slots
    # (ReLU output >= 0, so zero padding == -inf padding here).
    p1 = a1[:, 0:LC1 + 2, :]
    for kk in range(1, K1):
        p1 = jnp.maximum(p1, a1[:, kk:kk + LC1 + 2, :])
    # p1[:, q, :] == maxpool1 output (q-1) for q in 1..8; the mask turns q=0 / q=9
    # into the zero padding conv2 (padding=1) expects and zeroes the unused tail.
    p1 = p1 * m2_ref[...]                            # (NW, 12, C1)

    # conv2 (k=3, pad=1) as 3 batched taps, + relu
    acc2 = jnp.zeros((NW * LP, C2), f32) + b2_ref[...]
    for kk in range(K2):
        tap = p1[:, kk:kk + LP, :].reshape(NW * LP, C1)
        acc2 = acc2 + jnp.dot(tap, w2_ref[kk], preferred_element_type=f32)
    a2 = jnp.maximum(acc2, 0.0)
    # maxpool2(k=3, stride=1, pad=1) followed by max over positions is exactly the
    # max over positions (stride-1 windows cover every position), so fold them.
    char_feat = jnp.max(a2.reshape(NW, LP, C2), axis=1)          # (NW, C2)

    # -------- stage 2: BiLSTM input projection, hoisted out of the recurrence --------
    # feats = [word_emb | char_feat | cap]; W_ih is split by input block so no
    # activation concat is needed.  gates_x[:, :4H]=fwd gates, [:, 4H:]=bwd gates.
    gates_x = (jnp.dot(wemb_ref[...], wihw_ref[...], preferred_element_type=f32)
               + jnp.dot(char_feat, wihc_ref[...], preferred_element_type=f32)
               + cap_ref[...] * wihcap_ref[...]
               + blstm_ref[...])                                  # (NW, 8H)
    smask = smask_ref[...]                                        # (NW, 1)
    whh = whh_ref[...]                                            # (H, 8H) = [whh_f | whh_b]

    def lstm_cell(g, c):                      # PyTorch gate order i, f, g, o
        i = jax.nn.sigmoid(g[:, 0 * H:1 * H])
        f = jax.nn.sigmoid(g[:, 1 * H:2 * H])
        gg = jnp.tanh(g[:, 2 * H:3 * H])
        o = jax.nn.sigmoid(g[:, 3 * H:4 * H])
        c_new = f * c + i * gg
        return o * jnp.tanh(c_new), c_new

    hf = jnp.zeros((B, H), f32); cf = jnp.zeros((B, H), f32)
    hb = jnp.zeros((B, H), f32); cb = jnp.zeros((B, H), f32)
    outs_f = [None] * T
    outs_b = [None] * T
    # Fully unrolled (T=8), merged fwd/bwd recurrence: one (2B,H)x(H,8H) MXU matmul
    # per step; fwd advances at t=s while bwd advances at t=T-1-s.
    for s in range(T):
        tfw, tbw = s, T - 1 - s
        h_st = jnp.concatenate([hf, hb], axis=0)                  # (2B, H)
        g_rec = jnp.dot(h_st, whh, preferred_element_type=f32)    # (2B, 8H)
        g_f = gates_x[tfw * B:(tfw + 1) * B, 0:4 * H] + g_rec[0:B, 0:4 * H]
        g_b = gates_x[tbw * B:(tbw + 1) * B, 4 * H:8 * H] + g_rec[B:2 * B, 4 * H:8 * H]
        m_f = smask[tfw * B:(tfw + 1) * B]
        m_b = smask[tbw * B:(tbw + 1) * B]
        hfn, cfn = lstm_cell(g_f, cf)
        hbn, cbn = lstm_cell(g_b, cb)
        # packed-sequence emulation: states freeze and outputs are zero past length
        hf = m_f * hfn + (1.0 - m_f) * hf
        cf = m_f * cfn + (1.0 - m_f) * cf
        hb = m_b * hbn + (1.0 - m_b) * hb
        cb = m_b * cbn + (1.0 - m_b) * cb
        outs_f[tfw] = m_f * hfn
        outs_b[tbw] = m_b * hbn

    out_f = jnp.concatenate(outs_f, axis=0)                       # (NW, H), time-major
    out_b = jnp.concatenate(outs_b, axis=0)

    # -------- stage 3: linear -> ELU -> classifier head (fused epilogue) --------
    # TODO(synk): torch.nn.Dropout is treated as identity (eval/inference mode).
    h1 = (jnp.dot(out_f, lw1f_ref[...], preferred_element_type=f32)
          + jnp.dot(out_b, lw1b_ref[...], preferred_element_type=f32)
          + lb1_ref[...])
    h1 = jnp.where(h1 > 0, h1, jnp.exp(jnp.minimum(h1, 0.0)) - 1.0)   # ELU(alpha=1)
    out_ref[...] = jnp.dot(h1, lw2_ref[...], preferred_element_type=f32) + lb2_ref[...]


def _full(a):
    return pl.BlockSpec(a.shape, lambda i, _nd=a.ndim: (0,) * _nd)


def fused_pallas_forward(*args):
    return pl.pallas_call(
        fused_kernel,
        out_shape=jax.ShapeDtypeStruct((NW, D_OUT), jnp.float32),
        grid=(1,),
        in_specs=[_full(a) for a in args],
        out_specs=pl.BlockSpec((NW, D_OUT), lambda i: (0, 0)),
        compiler_params=pltpu.CompilerParams(dimension_semantics=("arbitrary",)),
    )(*args)


# ============================ full forward (glue in plain JAX) ===============
@jax.jit
def blstm_cnn_forward(params, text, x_char, lengths, cap):
    # --- embedding gathers + layout plumbing (all time-major: row = t*B + b) ---
    w_emb = jnp.take(params["word_table"], text, axis=0)               # (B,T,Ew)
    w_emb_tm = jnp.transpose(w_emb, (1, 0, 2)).reshape(NW, E_WORD)
    cap_tm = jnp.transpose(cap, (1, 0)).reshape(NW, 1).astype(jnp.float32)
    xc_tm = jnp.transpose(x_char, (1, 0, 2)).reshape(NW, L)
    c_emb = jnp.take(params["char_table"], xc_tm, axis=0)              # (NW,L,Ec)

    # conv1 im2col slab: slot s = l + 2 holds the K1*E_CHAR window for output l
    cpad = jnp.pad(c_emb, ((0, 0), (1, 1), (0, 0)))                    # zero pad=1
    cols = jnp.stack([cpad[:, kk:kk + LC1, :] for kk in range(K1)], axis=2)
    cols = cols.reshape(NW, LC1, K1 * E_CHAR)
    xcol = jnp.zeros((NW, NSLOT, K1 * E_CHAR), jnp.float32)
    xcol = xcol.at[:, 2:2 + LC1, :].set(cols).reshape(NW * NSLOT, K1 * E_CHAR)

    slot = jnp.arange(NSLOT)
    pmask = jnp.broadcast_to(
        ((slot >= 2) & (slot < 2 + LC1)).astype(jnp.float32)[None, :],
        (NW, NSLOT)).reshape(NW * NSLOT, 1)
    q = jnp.arange(LC1 + 2)
    m2 = ((q >= 1) & (q <= LP)).astype(jnp.float32).reshape(1, LC1 + 2, 1)
    smask = (jnp.arange(T)[:, None] < lengths[None, :]).astype(jnp.float32).reshape(NW, 1)

    # --- weight plumbing (pure layout transforms, no compute hoisting) ---
    w1col = params["w1"].reshape(K1 * E_CHAR, C1)                      # (150, 60)
    wih = jnp.concatenate([params["wif"], params["wib"]], axis=1)      # (D_IN, 8H)
    wihw = wih[:E_WORD]
    wihc = wih[E_WORD:E_WORD + C2]
    wihcap = wih[E_WORD + C2:]
    blstm = jnp.concatenate([params["bf"], params["bb"]], axis=1)      # (1, 8H)
    whhcat = jnp.concatenate([params["whf"], params["whb"]], axis=1)   # (H, 8H)
    lw1f, lw1b = params["lw1"][:H], params["lw1"][H:]

    logits_tm = fused_pallas_forward(
        xcol, pmask, w_emb_tm, cap_tm, smask, m2,
        w1col, params["b1"], params["w2"], params["b2"],
        wihw, wihc, wihcap, blstm, whhcat,
        lw1f, lw1b, params["lb1"], params["lw2"], params["lb2"])
    return jnp.transpose(logits_tm.reshape(T, B, D_OUT), (1, 0, 2))    # (B, T, D_OUT)


# ============================ pure-JAX reference =============================
def reference_forward(params, text, x_char, lengths, cap):
    w_emb = jnp.take(params["word_table"], text, axis=0)
    c_emb = jnp.take(params["char_table"], x_char, axis=0).reshape(B * T, L, E_CHAR)

    def conv1d(x, w, b, k):
        xp = jnp.pad(x, ((0, 0), (1, 1), (0, 0)))
        lo = x.shape[1] + 2 - k + 1
        out = jnp.zeros((x.shape[0], lo, w.shape[-1])) + b.reshape(1, 1, -1)
        for kk in range(k):
            out = out + jnp.einsum("nlc,cd->nld", xp[:, kk:kk + lo, :], w[kk])
        return out

    def maxpool(x, k):
        xp = jnp.pad(x, ((0, 0), (1, 1), (0, 0)), constant_values=-jnp.inf)
        lo = x.shape[1] + 2 - k + 1
        m = xp[:, 0:lo]
        for kk in range(1, k):
            m = jnp.maximum(m, xp[:, kk:kk + lo])
        return m

    y = jnp.maximum(conv1d(c_emb, params["w1"], params["b1"], K1), 0.0)
    y = maxpool(y, K1)
    y = jnp.maximum(conv1d(y, params["w2"], params["b2"], K2), 0.0)
    y = maxpool(y, K2)
    char_feat = jnp.max(y, axis=1).reshape(B, T, C2)
    feats = jnp.concatenate([w_emb, char_feat, cap[..., None]], axis=2)

    def run_dir(wih, whh, b, reverse):
        h = jnp.zeros((B, H)); c = jnp.zeros((B, H))
        out = jnp.zeros((B, T, H))
        ts = range(T - 1, -1, -1) if reverse else range(T)
        for t in ts:
            g = feats[:, t, :] @ wih + h @ whh + b
            i = jax.nn.sigmoid(g[:, :H]); f = jax.nn.sigmoid(g[:, H:2 * H])
            gg = jnp.tanh(g[:, 2 * H:3 * H]); o = jax.nn.sigmoid(g[:, 3 * H:])
            c_new = f * c + i * gg
            h_new = o * jnp.tanh(c_new)
            mask = (t < lengths)[:, None]
            h = jnp.where(mask, h_new, h)
            c = jnp.where(mask, c_new, c)
            out = out.at[:, t, :].set(jnp.where(mask, h_new, 0.0))
        return out

    of = run_dir(params["wif"], params["whf"], params["bf"], False)
    ob = run_dir(params["wib"], params["whb"], params["bb"], True)
    lstm_out = jnp.concatenate([of, ob], axis=-1).reshape(B * T, 2 * H)
    hh = lstm_out @ params["lw1"] + params["lb1"]
    hh = jnp.where(hh > 0, hh, jnp.exp(jnp.minimum(hh, 0.0)) - 1.0)
    out = hh @ params["lw2"] + params["lb2"]
    return out.reshape(B, T, D_OUT)


# ============================ deterministic params ===========================
def init_params(key):
    ks = jax.random.split(key, 16)
    n = lambda k, shape, s=0.1: (s * jax.random.normal(k, shape)).astype(jnp.float32)
    p = {}
    p["word_table"] = n(ks[0], (VW, E_WORD), 0.5)
    p["char_table"] = n(ks[1], (VC, E_CHAR), 0.5)
    # conv weights stored as (K, Cin, Cout) == torch (Cout, Cin, K).transpose(2,1,0)
    p["w1"] = n(ks[2], (K1, E_CHAR, C1)); p["b1"] = n(ks[3], (1, C1))
    p["w2"] = n(ks[4], (K2, C1, C2));     p["b2"] = n(ks[5], (1, C2))
    # LSTM: W_ih^T (D_in,4H), W_hh^T (H,4H), bias = b_ih + b_hh, gate order i,f,g,o
    p["wif"] = n(ks[6], (D_IN, 4 * H)); p["whf"] = n(ks[7], (H, 4 * H))
    p["bf"] = n(ks[8], (1, 4 * H))
    p["wib"] = n(ks[9], (D_IN, 4 * H)); p["whb"] = n(ks[10], (H, 4 * H))
    p["bb"] = n(ks[11], (1, 4 * H))
    # head: linear then classifier, stored as weight^T
    p["lw1"] = n(ks[12], (2 * H, LIN)); p["lb1"] = n(ks[13], (1, LIN))
    p["lw2"] = n(ks[14], (LIN, D_OUT)); p["lb2"] = n(ks[15], (1, D_OUT))
    return p


if __name__ == "__main__":
    key = jax.random.PRNGKey(0)
    kp, k1, k2, k3 = jax.random.split(key, 4)
    params = init_params(kp)

    text = jax.random.randint(k1, (B, T), 0, VW)
    x_char = jax.random.randint(k2, (B, T, L), 0, VC)
    lengths = jnp.array([T, 5], dtype=jnp.int32)     # max(lengths) == T
    cap = jax.random.bernoulli(k3, 0.3, (B, T)).astype(jnp.float32)

    out = blstm_cnn_forward(params, text, x_char, lengths, cap)
    out = jax.block_until_ready(out)

    ref = reference_forward(params, text, x_char, lengths, cap)
    assert out.shape == (B, T, D_OUT), out.shape
    assert bool(jnp.all(jnp.isfinite(out)))
    assert bool(jnp.allclose(out, ref, atol=5e-3, rtol=5e-3)), (
        float(jnp.max(jnp.abs(out - ref))))
    print("KERNEL_OK")
</pallas_src>

<mosaic_0001>
module attributes {stable_mosaic.version = 11 : i64} {
  func.func @fused_kernel(%arg0: i32, %arg1: memref<256x150xf32, #tpu.memory_space<vmem>>, %arg2: memref<256x1xf32, #tpu.memory_space<vmem>>, %arg3: memref<16x16xf32, #tpu.memory_space<vmem>>, %arg4: memref<16x1xf32, #tpu.memory_space<vmem>>, %arg5: memref<16x1xf32, #tpu.memory_space<vmem>>, %arg6: memref<1x12x1xf32, #tpu.memory_space<vmem>>, %arg7: memref<150x60xf32, #tpu.memory_space<vmem>>, %arg8: memref<1x60xf32, #tpu.memory_space<vmem>>, %arg9: memref<3x60x30xf32, #tpu.memory_space<vmem>>, %arg10: memref<1x30xf32, #tpu.memory_space<vmem>>, %arg11: memref<16x256xf32, #tpu.memory_space<vmem>>, %arg12: memref<30x256xf32, #tpu.memory_space<vmem>>, %arg13: memref<1x256xf32, #tpu.memory_space<vmem>>, %arg14: memref<1x256xf32, #tpu.memory_space<vmem>>, %arg15: memref<32x256xf32, #tpu.memory_space<vmem>>, %arg16: memref<32x16xf32, #tpu.memory_space<vmem>>, %arg17: memref<32x16xf32, #tpu.memory_space<vmem>>, %arg18: memref<1x16xf32, #tpu.memory_space<vmem>>, %arg19: memref<16x5xf32, #tpu.memory_space<vmem>>, %arg20: memref<1x5xf32, #tpu.memory_space<vmem>>, %arg21: memref<16x5xf32, #tpu.memory_space<vmem>>) attributes {dimension_semantics = [#tpu.dimension_semantics<arbitrary>], iteration_bounds = array<i64: 1>, scalar_prefetch = 0 : i64, scratch_operands = 0 : i64, tpu.core_type = #tpu.core_type<tc>, window_params = [{pipeline_mode = #tpu.pipeline_mode<synchronous>, transform_indices = @transform_0, window_bounds = array<i64: 256, 150>}, {pipeline_mode = #tpu.pipeline_mode<synchronous>, transform_indices = @transform_1, window_bounds = array<i64: 256, 1>}, {pipeline_mode = #tpu.pipeline_mode<synchronous>, transform_indices = @transform_2, window_bounds = array<i64: 16, 16>}, {pipeline_mode = #tpu.pipeline_mode<synchronous>, transform_indices = @transform_3, window_bounds = array<i64: 16, 1>}, {pipeline_mode = #tpu.pipeline_mode<synchronous>, transform_indices = @transform_4, window_bounds = array<i64: 16, 1>}, {pipeline_mode = #tpu.pipeline_mode<synchronous>, transform_indices = @transform_5, window_bounds = array<i64: 1, 12, 1>}, {pipeline_mode = #tpu.pipeline_mode<synchronous>, transform_indices = @transform_6, window_bounds = array<i64: 150, 60>}, {pipeline_mode = #tpu.pipeline_mode<synchronous>, transform_indices = @transform_7, window_bounds = array<i64: 1, 60>}, {pipeline_mode = #tpu.pipeline_mode<synchronous>, transform_indices = @transform_8, window_bounds = array<i64: 3, 60, 30>}, {pipeline_mode = #tpu.pipeline_mode<synchronous>, transform_indices = @transform_9, window_bounds = array<i64: 1, 30>}, {pipeline_mode = #tpu.pipeline_mode<synchronous>, transform_indices = @transform_10, window_bounds = array<i64: 16, 256>}, {pipeline_mode = #tpu.pipeline_mode<synchronous>, transform_indices = @transform_11, window_bounds = array<i64: 30, 256>}, {pipeline_mode = #tpu.pipeline_mode<synchronous>, transform_indices = @transform_12, window_bounds = array<i64: 1, 256>}, {pipeline_mode = #tpu.pipeline_mode<synchronous>, transform_indices = @transform_13, window_bounds = array<i64: 1, 256>}, {pipeline_mode = #tpu.pipeline_mode<synchronous>, transform_indices = @transform_14, window_bounds = array<i64: 32, 256>}, {pipeline_mode = #tpu.pipeline_mode<synchronous>, transform_indices = @transform_15, window_bounds = array<i64: 32, 16>}, {pipeline_mode = #tpu.pipeline_mode<synchronous>, transform_indices = @transform_16, window_bounds = array<i64: 32, 16>}, {pipeline_mode = #tpu.pipeline_mode<synchronous>, transform_indices = @transform_17, window_bounds = array<i64: 1, 16>}, {pipeline_mode = #tpu.pipeline_mode<synchronous>, transform_indices = @transform_18, window_bounds = array<i64: 16, 5>}, {pipeline_mode = #tpu.pipeline_mode<synchronous>, transform_indices = @transform_19, window_bounds = array<i64: 1, 5>}, {pipeline_mode = #tpu.pipeline_mode<synchronous>, transform_indices = @transform_20, window_bounds = array<i64: 16, 5>}]} {
    %c0 = arith.constant 0 : index
    %c0_0 = arith.constant 0 : index
    %0 = vector.load %arg1[%c0, %c0_0] : memref<256x150xf32, #tpu.memory_space<vmem>>, vector<256x150xf32>
    %c0_1 = arith.constant 0 : index
    %c0_2 = arith.constant 0 : index
    %1 = vector.load %arg7[%c0_1, %c0_2] : memref<150x60xf32, #tpu.memory_space<vmem>>, vector<150x60xf32>
    %cst = arith.constant dense<0.000000e+00> : vector<256x60xf32>
    %2 = tpu.matmul %0, %1, %cst {dimension_numbers = #tpu.dot_dimension_numbers<[1], [0], [0], [1], [0, 0, 1, 1], [], []>} : vector<256x150xf32>, vector<150x60xf32>, vector<256x60xf32> -> vector<256x60xf32>
    %c0_3 = arith.constant 0 : index
    %c0_4 = arith.constant 0 : index
    %3 = vector.load %arg8[%c0_3, %c0_4] : memref<1x60xf32, #tpu.memory_space<vmem>>, vector<1x60xf32>
    %4 = vector.broadcast %3 : vector<1x60xf32> to vector<256x60xf32>
    %5 = arith.addf %2, %4 : vector<256x60xf32>
    %cst_5 = arith.constant 0.000000e+00 : f32
    %6 = vector.broadcast %cst_5 : f32 to vector<256x60xf32>
    %7 = arith.maximumf %5, %6 : vector<256x60xf32>
    %c0_6 = arith.constant 0 : index
    %c0_7 = arith.constant 0 : index
    %8 = vector.load %arg2[%c0_6, %c0_7] : memref<256x1xf32, #tpu.memory_space<vmem>>, vector<256x1xf32>
    %9 = vector.broadcast %8 : vector<256x1xf32> to vector<256x60xf32>
    %10 = arith.mulf %7, %9 : vector<256x60xf32>
    %11 = vector.shape_cast %10 : vector<256x60xf32> to vector<16x16x60xf32>
    %12 = vector.extract_strided_slice %11 {offsets = [0, 0, 0], sizes = [16, 12, 60], strides = [1, 1, 1]} : vector<16x16x60xf32> to vector<16x12x60xf32>
    %13 = vector.extract_strided_slice %11 {offsets = [0, 1, 0], sizes = [16, 12, 60], strides = [1, 1, 1]} : vector<16x16x60xf32> to vector<16x12x60xf32>
    %14 = arith.maximumf %12, %13 : vector<16x12x60xf32>
    %15 = vector.extract_strided_slice %11 {offsets = [0, 2, 0], sizes = [16, 12, 60], strides = [1, 1, 1]} : vector<16x16x60xf32> to vector<16x12x60xf32>
    %16 = arith.maximumf %14, %15 : vector<16x12x60xf32>
    %17 = vector.extract_strided_slice %11 {offsets = [0, 3, 0], sizes = [16, 12, 60], strides = [1, 1, 1]} : vector<16x16x60xf32> to vector<16x12x60xf32>
    %18 = arith.maximumf %16, %17 : vector<16x12x60xf32>
    %19 = vector.extract_strided_slice %11 {offsets = [0, 4, 0], sizes = [16, 12, 60], strides = [1, 1, 1]} : vector<16x16x60xf32> to vector<16x12x60xf32>
    %20 = arith.maximumf %18, %19 : vector<16x12x60xf32>
    %c0_8 = arith.constant 0 : index
    %c0_9 = arith.constant 0 : index
    %c0_10 = arith.constant 0 : index
    %21 = vector.load %arg6[%c0_8, %c0_9, %c0_10] : memref<1x12x1xf32, #tpu.memory_space<vmem>>, vector<1x12x1xf32>
    %22 = vector.broadcast %21 : vector<1x12x1xf32> to vector<16x12x60xf32>
    %23 = arith.mulf %20, %22 : vector<16x12x60xf32>
    %cst_11 = arith.constant 0.000000e+00 : f32
    %24 = vector.broadcast %cst_11 : f32 to vector<128x30xf32>
    %c0_12 = arith.constant 0 : index
    %c0_13 = arith.constant 0 : index
    %25 = vector.load %arg10[%c0_12, %c0_13] : memref<1x30xf32, #tpu.memory_space<vmem>>, vector<1x30xf32>
    %26 = vector.broadcast %25 : vector<1x30xf32> to vector<128x30xf32>
    %27 = arith.addf %24, %26 : vector<128x30xf32>
    %28 = vector.extract_strided_slice %23 {offsets = [0, 0, 0], sizes = [16, 8, 60], strides = [1, 1, 1]} : vector<16x12x60xf32> to vector<16x8x60xf32>
    %29 = vector.shape_cast %28 : vector<16x8x60xf32> to vector<128x60xf32>
    %c0_14 = arith.constant 0 : index
    %c0_15 = arith.constant 0 : index
    %c0_16 = arith.constant 0 : index
    %30 = vector.load %arg9[%c0_14, %c0_15, %c0_16] : memref<3x60x30xf32, #tpu.memory_space<vmem>>, vector<1x60x30xf32>
    %31 = vector.shape_cast %30 : vector<1x60x30xf32> to vector<60x30xf32>
    %cst_17 = arith.constant dense<0.000000e+00> : vector<128x30xf32>
    %32 = tpu.matmul %29, %31, %cst_17 {dimension_numbers = #tpu.dot_dimension_numbers<[1], [0], [0], [1], [0, 0, 1, 1], [], []>} : vector<128x60xf32>, vector<60x30xf32>, vector<128x30xf32> -> vector<128x30xf32>
    %33 = arith.addf %27, %32 : vector<128x30xf32>
    %34 = vector.extract_strided_slice %23 {offsets = [0, 1, 0], sizes = [16, 8, 60], strides = [1, 1, 1]} : vector<16x12x60xf32> to vector<16x8x60xf32>
    %35 = vector.shape_cast %34 : vector<16x8x60xf32> to vector<128x60xf32>
    %c1 = arith.constant 1 : index
    %c0_18 = arith.constant 0 : index
    %c0_19 = arith.constant 0 : index
    %36 = vector.load %arg9[%c1, %c0_18, %c0_19] : memref<3x60x30xf32, #tpu.memory_space<vmem>>, vector<1x60x30xf32>
    %37 = vector.shape_cast %36 : vector<1x60x30xf32> to vector<60x30xf32>
    %cst_20 = arith.constant dense<0.000000e+00> : vector<128x30xf32>
    %38 = tpu.matmul %35, %37, %cst_20 {dimension_numbers = #tpu.dot_dimension_numbers<[1], [0], [0], [1], [0, 0, 1, 1], [], []>} : vector<128x60xf32>, vector<60x30xf32>, vector<128x30xf32> -> vector<128x30xf32>
    %39 = arith.addf %33, %38 : vector<128x30xf32>
    %40 = vector.extract_strided_slice %23 {offsets = [0, 2, 0], sizes = [16, 8, 60], strides = [1, 1, 1]} : vector<16x12x60xf32> to vector<16x8x60xf32>
    %41 = vector.shape_cast %40 : vector<16x8x60xf32> to vector<128x60xf32>
    %c2 = arith.constant 2 : index
    %c0_21 = arith.constant 0 : index
    %c0_22 = arith.constant 0 : index
    %42 = vector.load %arg9[%c2, %c0_21, %c0_22] : memref<3x60x30xf32, #tpu.memory_space<vmem>>, vector<1x60x30xf32>
    %43 = vector.shape_cast %42 : vector<1x60x30xf32> to vector<60x30xf32>
    %cst_23 = arith.constant dense<0.000000e+00> : vector<128x30xf32>
    %44 = tpu.matmul %41, %43, %cst_23 {dimension_numbers = #tpu.dot_dimension_numbers<[1], [0], [0], [1], [0, 0, 1, 1], [], []>} : vector<128x60xf32>, vector<60x30xf32>, vector<128x30xf32> -> vector<128x30xf32>
    %45 = arith.addf %39, %44 : vector<128x30xf32>
    %cst_24 = arith.constant 0.000000e+00 : f32
    %46 = vector.broadcast %cst_24 : f32 to vector<128x30xf32>
    %47 = arith.maximumf %45, %46 : vector<128x30xf32>
    %48 = vector.shape_cast %47 : vector<128x30xf32> to vector<16x8x30xf32>
    %cst_25 = arith.constant dense<0xFF800000> : vector<16x30xf32>
    %49 = vector.multi_reduction <maximumf>, %48, %cst_25 [1] : vector<16x8x30xf32> to vector<16x30xf32>
    %c0_26 = arith.constant 0 : index
    %c0_27 = arith.constant 0 : index
    %50 = vector.load %arg3[%c0_26, %c0_27] : memref<16x16xf32, #tpu.memory_space<vmem>>, vector<16x16xf32>
    %c0_28 = arith.constant 0 : index
    %c0_29 = arith.constant 0 : index
    %51 = vector.load %arg11[%c0_28, %c0_29] : memref<16x256xf32, #tpu.memory_space<vmem>>, vector<16x256xf32>
    %cst_30 = arith.constant dense<0.000000e+00> : vector<16x256xf32>
    %52 = tpu.matmul %50, %51, %cst_30 {dimension_numbers = #tpu.dot_dimension_numbers<[1], [0], [0], [1], [0, 0, 1, 1], [], []>} : vector<16x16xf32>, vector<16x256xf32>, vector<16x256xf32> -> vector<16x256xf32>
    %c0_31 = arith.constant 0 : index
    %c0_32 = arith.constant 0 : index
    %53 = vector.load %arg12[%c0_31, %c0_32] : memref<30x256xf32, #tpu.memory_space<vmem>>, vector<30x256xf32>
    %cst_33 = arith.constant dense<0.000000e+00> : vector<16x256xf32>
    %54 = tpu.matmul %49, %53, %cst_33 {dimension_numbers = #tpu.dot_dimension_numbers<[1], [0], [0], [1], [0, 0, 1, 1], [], []>} : vector<16x30xf32>, vector<30x256xf32>, vector<16x256xf32> -> vector<16x256xf32>
    %55 = arith.addf %52, %54 : vector<16x256xf32>
    %c0_34 = arith.constant 0 : index
    %c0_35 = arith.constant 0 : index
    %56 = vector.load %arg4[%c0_34, %c0_35] : memref<16x1xf32, #tpu.memory_space<vmem>>, vector<16x1xf32>
    %c0_36 = arith.constant 0 : index
    %c0_37 = arith.constant 0 : index
    %57 = vector.load %arg13[%c0_36, %c0_37] : memref<1x256xf32, #tpu.memory_space<vmem>>, vector<1x256xf32>
    %58 = vector.broadcast %56 : vector<16x1xf32> to vector<16x256xf32>
    %59 = vector.broadcast %57 : vector<1x256xf32> to vector<16x256xf32>
    %60 = arith.mulf %58, %59 : vector<16x256xf32>
    %61 = arith.addf %55, %60 : vector<16x256xf32>
    %c0_38 = arith.constant 0 : index
    %c0_39 = arith.constant 0 : index
    %62 = vector.load %arg14[%c0_38, %c0_39] : memref<1x256xf32, #tpu.memory_space<vmem>>, vector<1x256xf32>
    %63 = vector.broadcast %62 : vector<1x256xf32> to vector<16x256xf32>
    %64 = arith.addf %61, %63 : vector<16x256xf32>
    %c0_40 = arith.constant 0 : index
    %c0_41 = arith.constant 0 : index
    %65 = vector.load %arg5[%c0_40, %c0_41] : memref<16x1xf32, #tpu.memory_space<vmem>>, vector<16x1xf32>
    %c0_42 = arith.constant 0 : index
    %c0_43 = arith.constant 0 : index
    %66 = vector.load %arg15[%c0_42, %c0_43] : memref<32x256xf32, #tpu.memory_space<vmem>>, vector<32x256xf32>
    %cst_44 = arith.constant 0.000000e+00 : f32
    %67 = vector.broadcast %cst_44 : f32 to vector<2x32xf32>
    %cst_45 = arith.constant 0.000000e+00 : f32
    %68 = vector.broadcast %cst_45 : f32 to vector<2x32xf32>
    %cst_46 = arith.constant 0.000000e+00 : f32
    %69 = vector.broadcast %cst_46 : f32 to vector<2x32xf32>
    %cst_47 = arith.constant 0.000000e+00 : f32
    %70 = vector.broadcast %cst_47 : f32 to vector<2x32xf32>
    %71 = tpu.concatenate %67, %69 in 0 : vector<2x32xf32>, vector<2x32xf32> -> vector<4x32xf32>
    %cst_48 = arith.constant dense<0.000000e+00> : vector<4x256xf32>
    %72 = tpu.matmul %71, %66, %cst_48 {dimension_numbers = #tpu.dot_dimension_numbers<[1], [0], [0], [1], [0, 0, 1, 1], [], []>} : vector<4x32xf32>, vector<32x256xf32>, vector<4x256xf32> -> vector<4x256xf32>
    %73 = vector.extract_strided_slice %64 {offsets = [0, 0], sizes = [2, 128], strides = [1, 1]} : vector<16x256xf32> to vector<2x128xf32>
    %74 = vector.extract_strided_slice %72 {offsets = [0, 0], sizes = [2, 128], strides = [1, 1]} : vector<4x256xf32> to vector<2x128xf32>
    %75 = arith.addf %73, %74 : vector<2x128xf32>
    %76 = vector.extract_strided_slice %64 {offsets = [14, 128], sizes = [2, 128], strides = [1, 1]} : vector<16x256xf32> to vector<2x128xf32>
    %77 = vector.extract_strided_slice %72 {offsets = [2, 128], sizes = [2, 128], strides = [1, 1]} : vector<4x256xf32> to vector<2x128xf32>
    %78 = arith.addf %76, %77 : vector<2x128xf32>
    %79 = vector.extract_strided_slice %65 {offsets = [0, 0], sizes = [2, 1], strides = [1, 1]} : vector<16x1xf32> to vector<2x1xf32>
    %80 = vector.extract_strided_slice %65 {offsets = [14, 0], sizes = [2, 1], strides = [1, 1]} : vector<16x1xf32> to vector<2x1xf32>
    %81 = vector.extract_strided_slice %75 {offsets = [0, 0], sizes = [2, 32], strides = [1, 1]} : vector<2x128xf32> to vector<2x32xf32>
    %82 = arith.negf %81 : vector<2x32xf32>
    %83 = math.exp %82 : vector<2x32xf32>
    %cst_49 = arith.constant 1.000000e+00 : f32
    %84 = vector.broadcast %cst_49 : f32 to vector<2x32xf32>
    %85 = arith.addf %84, %83 : vector<2x32xf32>
    %86 = arith.divf %84, %85 : vector<2x32xf32>
    %87 = vector.extract_strided_slice %75 {offsets = [0, 32], sizes = [2, 32], strides = [1, 1]} : vector<2x128xf32> to vector<2x32xf32>
    %88 = arith.negf %87 : vector<2x32xf32>
    %89 = math.exp %88 : vector<2x32xf32>
    %cst_50 = arith.constant 1.000000e+00 : f32
    %90 = vector.broadcast %cst_50 : f32 to vector<2x32xf32>
    %91 = arith.addf %90, %89 : vector<2x32xf32>
    %92 = arith.divf %90, %91 : vector<2x32xf32>
    %93 = vector.extract_strided_slice %75 {offsets = [0, 64], sizes = [2, 32], strides = [1, 1]} : vector<2x128xf32> to vector<2x32xf32>
    %94 = math.tanh %93 : vector<2x32xf32>
    %95 = vector.extract_strided_slice %75 {offsets = [0, 96], sizes = [2, 32], strides = [1, 1]} : vector<2x128xf32> to vector<2x32xf32>
    %96 = arith.negf %95 : vector<2x32xf32>
    %97 = math.exp %96 : vector<2x32xf32>
    %cst_51 = arith.constant 1.000000e+00 : f32
    %98 = vector.broadcast %cst_51 : f32 to vector<2x32xf32>
    %99 = arith.addf %98, %97 : vector<2x32xf32>
    %100 = arith.divf %98, %99 : vector<2x32xf32>
    %101 = arith.mulf %92, %68 : vector<2x32xf32>
    %102 = arith.mulf %86, %94 : vector<2x32xf32>
    %103 = arith.addf %101, %102 : vector<2x32xf32>
    %104 = math.tanh %103 : vector<2x32xf32>
    %105 = arith.mulf %100, %104 : vector<2x32xf32>
    %106 = vector.extract_strided_slice %78 {offsets = [0, 0], sizes = [2, 32], strides = [1, 1]} : vector<2x128xf32> to vector<2x32xf32>
    %107 = arith.negf %106 : vector<2x32xf32>
    %108 = math.exp %107 : vector<2x32xf32>
    %cst_52 = arith.constant 1.000000e+00 : f32
    %109 = vector.broadcast %cst_52 : f32 to vector<2x32xf32>
    %110 = arith.addf %109, %108 : vector<2x32xf32>
    %111 = arith.divf %109, %110 : vector<2x32xf32>
    %112 = vector.extract_strided_slice %78 {offsets = [0, 32], sizes = [2, 32], strides = [1, 1]} : vector<2x128xf32> to vector<2x32xf32>
    %113 = arith.negf %112 : vector<2x32xf32>
    %114 = math.exp %113 : vector<2x32xf32>
    %cst_53 = arith.constant 1.000000e+00 : f32
    %115 = vector.broadcast %cst_53 : f32 to vector<2x32xf32>
    %116 = arith.addf %115, %114 : vector<2x32xf32>
    %117 = arith.divf %115, %116 : vector<2x32xf32>
    %118 = vector.extract_strided_slice %78 {offsets = [0, 64], sizes = [2, 32], strides = [1, 1]} : vector<2x128xf32> to vector<2x32xf32>
    %119 = math.tanh %118 : vector<2x32xf32>
    %120 = vector.extract_strided_slice %78 {offsets = [0, 96], sizes = [2, 32], strides = [1, 1]} : vector<2x128xf32> to vector<2x32xf32>
    %121 = arith.negf %120 : vector<2x32xf32>
    %122 = math.exp %121 : vector<2x32xf32>
    %cst_54 = arith.constant 1.000000e+00 : f32
    %123 = vector.broadcast %cst_54 : f32 to vector<2x32xf32>
    %124 = arith.addf %123, %122 : vector<2x32xf32>
    %125 = arith.divf %123, %124 : vector<2x32xf32>
    %126 = arith.mulf %117, %70 : vector<2x32xf32>
    %127 = arith.mulf %111, %119 : vector<2x32xf32>
    %128 = arith.addf %126, %127 : vector<2x32xf32>
    %129 = math.tanh %128 : vector<2x32xf32>
    %130 = arith.mulf %125, %129 : vector<2x32xf32>
    %131 = vector.broadcast %79 : vector<2x1xf32> to vector<2x32xf32>
    %132 = arith.mulf %131, %105 : vector<2x32xf32>
    %cst_55 = arith.constant 1.000000e+00 : f32
    %133 = vector.broadcast %cst_55 : f32 to vector<2x1xf32>
    %134 = arith.subf %133, %79 : vector<2x1xf32>
    %135 = vector.broadcast %134 : vector<2x1xf32> to vector<2x32xf32>
    %136 = arith.mulf %135, %67 : vector<2x32xf32>
    %137 = arith.addf %132, %136 : vector<2x32xf32>
    %138 = vector.broadcast %79 : vector<2x1xf32> to vector<2x32xf32>
    %139 = arith.mulf %138, %103 : vector<2x32xf32>
    %cst_56 = arith.constant 1.000000e+00 : f32
    %140 = vector.broadcast %cst_56 : f32 to vector<2x1xf32>
    %141 = arith.subf %140, %79 : vector<2x1xf32>
    %142 = vector.broadcast %141 : vector<2x1xf32> to vector<2x32xf32>
    %143 = arith.mulf %142, %68 : vector<2x32xf32>
    %144 = arith.addf %139, %143 : vector<2x32xf32>
    %145 = vector.broadcast %80 : vector<2x1xf32> to vector<2x32xf32>
    %146 = arith.mulf %145, %130 : vector<2x32xf32>
    %cst_57 = arith.constant 1.000000e+00 : f32
    %147 = vector.broadcast %cst_57 : f32 to vector<2x1xf32>
    %148 = arith.subf %147, %80 : vector<2x1xf32>
    %149 = vector.broadcast %148 : vector<2x1xf32> to vector<2x32xf32>
    %150 = arith.mulf %149, %69 : vector<2x32xf32>
    %151 = arith.addf %146, %150 : vector<2x32xf32>
    %152 = vector.broadcast %80 : vector<2x1xf32> to vector<2x32xf32>
    %153 = arith.mulf %152, %128 : vector<2x32xf32>
    %cst_58 = arith.constant 1.000000e+00 : f32
    %154 = vector.broadcast %cst_58 : f32 to vector<2x1xf32>
    %155 = arith.subf %154, %80 : vector<2x1xf32>
    %156 = vector.broadcast %155 : vector<2x1xf32> to vector<2x32xf32>
    %157 = arith.mulf %156, %70 : vector<2x32xf32>
    %158 = arith.addf %153, %157 : vector<2x32xf32>
    %159 = vector.broadcast %79 : vector<2x1xf32> to vector<2x32xf32>
    %160 = arith.mulf %159, %105 : vector<2x32xf32>
    %161 = vector.broadcast %80 : vector<2x1xf32> to vector<2x32xf32>
    %162 = arith.mulf %161, %130 : vector<2x32xf32>
    %163 = tpu.concatenate %137, %151 in 0 : vector<2x32xf32>, vector<2x32xf32> -> vector<4x32xf32>
    %cst_59 = arith.constant dense<0.000000e+00> : vector<4x256xf32>
    %164 = tpu.matmul %163, %66, %cst_59 {dimension_numbers = #tpu.dot_dimension_numbers<[1], [0], [0], [1], [0, 0, 1, 1], [], []>} : vector<4x32xf32>, vector<32x256xf32>, vector<4x256xf32> -> vector<4x256xf32>
    %165 = vector.extract_strided_slice %64 {offsets = [2, 0], sizes = [2, 128], strides = [1, 1]} : vector<16x256xf32> to vector<2x128xf32>
    %166 = vector.extract_strided_slice %164 {offsets = [0, 0], sizes = [2, 128], strides = [1, 1]} : vector<4x256xf32> to vector<2x128xf32>
    %167 = arith.addf %165, %166 : vector<2x128xf32>
    %168 = vector.extract_strided_slice %64 {offsets = [12, 128], sizes = [2, 128], strides = [1, 1]} : vector<16x256xf32> to vector<2x128xf32>
    %169 = vector.extract_strided_slice %164 {offsets = [2, 128], sizes = [2, 128], strides = [1, 1]} : vector<4x256xf32> to vector<2x128xf32>
    %170 = arith.addf %168, %169 : vector<2x128xf32>
    %171 = vector.extract_strided_slice %65 {offsets = [2, 0], sizes = [2, 1], strides = [1, 1]} : vector<16x1xf32> to vector<2x1xf32>
    %172 = vector.extract_strided_slice %65 {offsets = [12, 0], sizes = [2, 1], strides = [1, 1]} : vector<16x1xf32> to vector<2x1xf32>
    %173 = vector.extract_strided_slice %167 {offsets = [0, 0], sizes = [2, 32], strides = [1, 1]} : vector<2x128xf32> to vector<2x32xf32>
    %174 = arith.negf %173 : vector<2x32xf32>
    %175 = math.exp %174 : vector<2x32xf32>
    %cst_60 = arith.constant 1.000000e+00 : f32
    %176 = vector.broadcast %cst_60 : f32 to vector<2x32xf32>
    %177 = arith.addf %176, %175 : vector<2x32xf32>
    %178 = arith.divf %176, %177 : vector<2x32xf32>
    %179 = vector.extract_strided_slice %167 {offsets = [0, 32], sizes = [2, 32], strides = [1, 1]} : vector<2x128xf32> to vector<2x32xf32>
    %180 = arith.negf %179 : vector<2x32xf32>
    %181 = math.exp %180 : vector<2x32xf32>
    %cst_61 = arith.constant 1.000000e+00 : f32
    %182 = vector.broadcast %cst_61 : f32 to vector<2x32xf32>
    %183 = arith.addf %182, %181 : vector<2x32xf32>
    %184 = arith.divf %182, %183 : vector<2x32xf32>
    %185 = vector.extract_strided_slice %167 {offsets = [0, 64], sizes = [2, 32], strides = [1, 1]} : vector<2x128xf32> to vector<2x32xf32>
    %186 = math.tanh %185 : vector<2x32xf32>
    %187 = vector.extract_strided_slice %167 {offsets = [0, 96], sizes = [2, 32], strides = [1, 1]} : vector<2x128xf32> to vector<2x32xf32>
    %188 = arith.negf %187 : vector<2x32xf32>
    %189 = math.exp %188 : vector<2x32xf32>
    %cst_62 = arith.constant 1.000000e+00 : f32
    %190 = vector.broadcast %cst_62 : f32 to vector<2x32xf32>
    %191 = arith.addf %190, %189 : vector<2x32xf32>
    %192 = arith.divf %190, %191 : vector<2x32xf32>
    %193 = arith.mulf %184, %144 : vector<2x32xf32>
    %194 = arith.mulf %178, %186 : vector<2x32xf32>
    %195 = arith.addf %193, %194 : vector<2x32xf32>
    %196 = math.tanh %195 : vector<2x32xf32>
    %197 = arith.mulf %192, %196 : vector<2x32xf32>
    %198 = vector.extract_strided_slice %170 {offsets = [0, 0], sizes = [2, 32], strides = [1, 1]} : vector<2x128xf32> to vector<2x32xf32>
    %199 = arith.negf %198 : vector<2x32xf32>
    %200 = math.exp %199 : vector<2x32xf32>
    %cst_63 = arith.constant 1.000000e+00 : f32
    %201 = vector.broadcast %cst_63 : f32 to vector<2x32xf32>
    %202 = arith.addf %201, %200 : vector<2x32xf32>
    %203 = arith.divf %201, %202 : vector<2x32xf32>
    %204 = vector.extract_strided_slice %170 {offsets = [0, 32], sizes = [2, 32], strides = [1, 1]} : vector<2x128xf32> to vector<2x32xf32>
    %205 = arith.negf %204 : vector<2x32xf32>
    %206 = math.exp %205 : vector<2x32xf32>
    %cst_64 = arith.constant 1.000000e+00 : f32
    %207 = vector.broadcast %cst_64 : f32 to vector<2x32xf32>
    %208 = arith.addf %207, %206 : vector<2x32xf32>
    %209 = arith.divf %207, %208 : vector<2x32xf32>
    %210 = vector.extract_strided_slice %170 {offsets = [0, 64], sizes = [2, 32], strides = [1, 1]} : vector<2x128xf32> to vector<2x32xf32>
    %211 = math.tanh %210 : vector<2x32xf32>
    %212 = vector.extract_strided_slice %170 {offsets = [0, 96], sizes = [2, 32], strides = [1, 1]} : vector<2x128xf32> to vector<2x32xf32>
    %213 = arith.negf %212 : vector<2x32xf32>
    %214 = math.exp %213 : vector<2x32xf32>
    %cst_65 = arith.constant 1.000000e+00 : f32
    %215 = vector.broadcast %cst_65 : f32 to vector<2x32xf32>
    %216 = arith.addf %215, %214 : vector<2x32xf32>
    %217 = arith.divf %215, %216 : vector<2x32xf32>
    %218 = arith.mulf %209, %158 : vector<2x32xf32>
    %219 = arith.mulf %203, %211 : vector<2x32xf32>
    %220 = arith.addf %218, %219 : vector<2x32xf32>
    %221 = math.tanh %220 : vector<2x32xf32>
    %222 = arith.mulf %217, %221 : vector<2x32xf32>
    %223 = vector.broadcast %171 : vector<2x1xf32> to vector<2x32xf32>
    %224 = arith.mulf %223, %197 : vector<2x32xf32>
    %cst_66 = arith.constant 1.000000e+00 : f32
    %225 = vector.broadcast %cst_66 : f32 to vector<2x1xf32>
    %226 = arith.subf %225, %171 : vector<2x1xf32>
    %227 = vector.broadcast %226 : vector<2x1xf32> to vector<2x32xf32>
    %228 = arith.mulf %227, %137 : vector<2x32xf32>
    %229 = arith.addf %224, %228 : vector<2x32xf32>
    %230 = vector.broadcast %171 : vector<2x1xf32> to vector<2x32xf32>
    %231 = arith.mulf %230, %195 : vector<2x32xf32>
    %cst_67 = arith.constant 1.000000e+00 : f32
    %232 = vector.broadcast %cst_67 : f32 to vector<2x1xf32>
    %233 = arith.subf %232, %171 : vector<2x1xf32>
    %234 = vector.broadcast %233 : vector<2x1xf32> to vector<2x32xf32>
    %235 = arith.mulf %234, %144 : vector<2x32xf32>
    %236 = arith.addf %231, %235 : vector<2x32xf32>
    %237 = vector.broadcast %172 : vector<2x1xf32> to vector<2x32xf32>
    %238 = arith.mulf %237, %222 : vector<2x32xf32>
    %cst_68 = arith.constant 1.000000e+00 : f32
    %239 = vector.broadcast %cst_68 : f32 to vector<2x1xf32>
    %240 = arith.subf %239, %172 : vector<2x1xf32>
    %241 = vector.broadcast %240 : vector<2x1xf32> to vector<2x32xf32>
    %242 = arith.mulf %241, %151 : vector<2x32xf32>
    %243 = arith.addf %238, %242 : vector<2x32xf32>
    %244 = vector.broadcast %172 : vector<2x1xf32> to vector<2x32xf32>
    %245 = arith.mulf %244, %220 : vector<2x32xf32>
    %cst_69 = arith.constant 1.000000e+00 : f32
    %246 = vector.broadcast %cst_69 : f32 to vector<2x1xf32>
    %247 = arith.subf %246, %172 : vector<2x1xf32>
    %248 = vector.broadcast %247 : vector<2x1xf32> to vector<2x32xf32>
    %249 = arith.mulf %248, %158 : vector<2x32xf32>
    %250 = arith.addf %245, %249 : vector<2x32xf32>
    %251 = vector.broadcast %171 : vector<2x1xf32> to vector<2x32xf32>
    %252 = arith.mulf %251, %197 : vector<2x32xf32>
    %253 = vector.broadcast %172 : vector<2x1xf32> to vector<2x32xf32>
    %254 = arith.mulf %253, %222 : vector<2x32xf32>
    %255 = tpu.concatenate %229, %243 in 0 : vector<2x32xf32>, vector<2x32xf32> -> vector<4x32xf32>
    %cst_70 = arith.constant dense<0.000000e+00> : vector<4x256xf32>
    %256 = tpu.matmul %255, %66, %cst_70 {dimension_numbers = #tpu.dot_dimension_numbers<[1], [0], [0], [1], [0, 0, 1, 1], [], []>} : vector<4x32xf32>, vector<32x256xf32>, vector<4x256xf32> -> vector<4x256xf32>
    %257 = vector.extract_strided_slice %64 {offsets = [4, 0], sizes = [2, 128], strides = [1, 1]} : vector<16x256xf32> to vector<2x128xf32>
    %258 = vector.extract_strided_slice %256 {offsets = [0, 0], sizes = [2, 128], strides = [1, 1]} : vector<4x256xf32> to vector<2x128xf32>
    %259 = arith.addf %257, %258 : vector<2x128xf32>
    %260 = vector.extract_strided_slice %64 {offsets = [10, 128], sizes = [2, 128], strides = [1, 1]} : vector<16x256xf32> to vector<2x128xf32>
    %261 = vector.extract_strided_slice %256 {offsets = [2, 128], sizes = [2, 128], strides = [1, 1]} : vector<4x256xf32> to vector<2x128xf32>
    %262 = arith.addf %260, %261 : vector<2x128xf32>
    %263 = vector.extract_strided_slice %65 {offsets = [4, 0], sizes = [2, 1], strides = [1, 1]} : vector<16x1xf32> to vector<2x1xf32>
    %264 = vector.extract_strided_slice %65 {offsets = [10, 0], sizes = [2, 1], strides = [1, 1]} : vector<16x1xf32> to vector<2x1xf32>
    %265 = vector.extract_strided_slice %259 {offsets = [0, 0], sizes = [2, 32], strides = [1, 1]} : vector<2x128xf32> to vector<2x32xf32>
    %266 = arith.negf %265 : vector<2x32xf32>
    %267 = math.exp %266 : vector<2x32xf32>
    %cst_71 = arith.constant 1.000000e+00 : f32
    %268 = vector.broadcast %cst_71 : f32 to vector<2x32xf32>
    %269 = arith.addf %268, %267 : vector<2x32xf32>
    %270 = arith.divf %268, %269 : vector<2x32xf32>
    %271 = vector.extract_strided_slice %259 {offsets = [0, 32], sizes = [2, 32], strides = [1, 1]} : vector<2x128xf32> to vector<2x32xf32>
    %272 = arith.negf %271 : vector<2x32xf32>
    %273 = math.exp %272 : vector<2x32xf32>
    %cst_72 = arith.constant 1.000000e+00 : f32
    %274 = vector.broadcast %cst_72 : f32 to vector<2x32xf32>
    %275 = arith.addf %274, %273 : vector<2x32xf32>
    %276 = arith.divf %274, %275 : vector<2x32xf32>
    %277 = vector.extract_strided_slice %259 {offsets = [0, 64], sizes = [2, 32], strides = [1, 1]} : vector<2x128xf32> to vector<2x32xf32>
    %278 = math.tanh %277 : vector<2x32xf32>
    %279 = vector.extract_strided_slice %259 {offsets = [0, 96], sizes = [2, 32], strides = [1, 1]} : vector<2x128xf32> to vector<2x32xf32>
    %280 = arith.negf %279 : vector<2x32xf32>
    %281 = math.exp %280 : vector<2x32xf32>
    %cst_73 = arith.constant 1.000000e+00 : f32
    %282 = vector.broadcast %cst_73 : f32 to vector<2x32xf32>
    %283 = arith.addf %282, %281 : vector<2x32xf32>
    %284 = arith.divf %282, %283 : vector<2x32xf32>
    %285 = arith.mulf %276, %236 : vector<2x32xf32>
    %286 = arith.mulf %270, %278 : vector<2x32xf32>
    %287 = arith.addf %285, %286 : vector<2x32xf32>
    %288 = math.tanh %287 : vector<2x32xf32>
    %289 = arith.mulf %284, %288 : vector<2x32xf32>
    %290 = vector.extract_strided_slice %262 {offsets = [0, 0], sizes = [2, 32], strides = [1, 1]} : vector<2x128xf32> to vector<2x32xf32>
    %291 = arith.negf %290 : vector<2x32xf32>
    %292 = math.exp %291 : vector<2x32xf32>
    %cst_74 = arith.constant 1.000000e+00 : f32
    %293 = vector.broadcast %cst_74 : f32 to vector<2x32xf32>
    %294 = arith.addf %293, %292 : vector<2x32xf32>
    %295 = arith.divf %293, %294 : vector<2x32xf32>
    %296 = vector.extract_strided_slice %262 {offsets = [0, 32], sizes = [2, 32], strides = [1, 1]} : vector<2x128xf32> to vector<2x32xf32>
    %297 = arith.negf %296 : vector<2x32xf32>
    %298 = math.exp %297 : vector<2x32xf32>
    %cst_75 = arith.constant 1.000000e+00 : f32
    %299 = vector.broadcast %cst_75 : f32 to vector<2x32xf32>
    %300 = arith.addf %299, %298 : vector<2x32xf32>
    %301 = arith.divf %299, %300 : vector<2x32xf32>
    %302 = vector.extract_strided_slice %262 {offsets = [0, 64], sizes = [2, 32], strides = [1, 1]} : vector<2x128xf32> to vector<2x32xf32>
    %303 = math.tanh %302 : vector<2x32xf32>
    %304 = vector.extract_strided_slice %262 {offsets = [0, 96], sizes = [2, 32], strides = [1, 1]} : vector<2x128xf32> to vector<2x32xf32>
    %305 = arith.negf %304 : vector<2x32xf32>
    %306 = math.exp %305 : vector<2x32xf32>
    %cst_76 = arith.constant 1.000000e+00 : f32
    %307 = vector.broadcast %cst_76 : f32 to vector<2x32xf32>
    %308 = arith.addf %307, %306 : vector<2x32xf32>
    %309 = arith.divf %307, %308 : vector<2x32xf32>
    %310 = arith.mulf %301, %250 : vector<2x32xf32>
    %311 = arith.mulf %295, %303 : vector<2x32xf32>
    %312 = arith.addf %310, %311 : vector<2x32xf32>
    %313 = math.tanh %312 : vector<2x32xf32>
    %314 = arith.mulf %309, %313 : vector<2x32xf32>
    %315 = vector.broadcast %263 : vector<2x1xf32> to vector<2x32xf32>
    %316 = arith.mulf %315, %289 : vector<2x32xf32>
    %cst_77 = arith.constant 1.000000e+00 : f32
    %317 = vector.broadcast %cst_77 : f32 to vector<2x1xf32>
    %318 = arith.subf %317, %263 : vector<2x1xf32>
    %319 = vector.broadcast %318 : vector<2x1xf32> to vector<2x32xf32>
    %320 = arith.mulf %319, %229 : vector<2x32xf32>
    %321 = arith.addf %316, %320 : vector<2x32xf32>
    %322 = vector.broadcast %263 : vector<2x1xf32> to vector<2x32xf32>
    %323 = arith.mulf %322, %287 : vector<2x32xf32>
    %cst_78 = arith.constant 1.000000e+00 : f32
    %324 = vector.broadcast %cst_78 : f32 to vector<2x1xf32>
    %325 = arith.subf %324, %263 : vector<2x1xf32>
    %326 = vector.broadcast %325 : vector<2x1xf32> to vector<2x32xf32>
    %327 = arith.mulf %326, %236 : vector<2x32xf32>
    %328 = arith.addf %323, %327 : vector<2x32xf32>
    %329 = vector.broadcast %264 : vector<2x1xf32> to vector<2x32xf32>
    %330 = arith.mulf %329, %314 : vector<2x32xf32>
    %cst_79 = arith.constant 1.000000e+00 : f32
    %331 = vector.broadcast %cst_79 : f32 to vector<2x1xf32>
    %332 = arith.subf %331, %264 : vector<2x1xf32>
    %333 = vector.broadcast %332 : vector<2x1xf32> to vector<2x32xf32>
    %334 = arith.mulf %333, %243 : vector<2x32xf32>
    %335 = arith.addf %330, %334 : vector<2x32xf32>
    %336 = vector.broadcast %264 : vector<2x1xf32> to vector<2x32xf32>
    %337 = arith.mulf %336, %312 : vector<2x32xf32>
    %cst_80 = arith.constant 1.000000e+00 : f32
    %338 = vector.broadcast %cst_80 : f32 to vector<2x1xf32>
    %339 = arith.subf %338, %264 : vector<2x1xf32>
    %340 = vector.broadcast %339 : vector<2x1xf32> to vector<2x32xf32>
    %341 = arith.mulf %340, %250 : vector<2x32xf32>
    %342 = arith.addf %337, %341 : vector<2x32xf32>
    %343 = vector.broadcast %263 : vector<2x1xf32> to vector<2x32xf32>
    %344 = arith.mulf %343, %289 : vector<2x32xf32>
    %345 = vector.broadcast %264 : vector<2x1xf32> to vector<2x32xf32>
    %346 = arith.mulf %345, %314 : vector<2x32xf32>
    %347 = tpu.concatenate %321, %335 in 0 : vector<2x32xf32>, vector<2x32xf32> -> vector<4x32xf32>
    %cst_81 = arith.constant dense<0.000000e+00> : vector<4x256xf32>
    %348 = tpu.matmul %347, %66, %cst_81 {dimension_numbers = #tpu.dot_dimension_numbers<[1], [0], [0], [1], [0, 0, 1, 1], [], []>} : vector<4x32xf32>, vector<32x256xf32>, vector<4x256xf32> -> vector<4x256xf32>
    %349 = vector.extract_strided_slice %64 {offsets = [6, 0], sizes = [2, 128], strides = [1, 1]} : vector<16x256xf32> to vector<2x128xf32>
    %350 = vector.extract_strided_slice %348 {offsets = [0, 0], sizes = [2, 128], strides = [1, 1]} : vector<4x256xf32> to vector<2x128xf32>
    %351 = arith.addf %349, %350 : vector<2x128xf32>
    %352 = vector.extract_strided_slice %64 {offsets = [8, 128], sizes = [2, 128], strides = [1, 1]} : vector<16x256xf32> to vector<2x128xf32>
    %353 = vector.extract_strided_slice %348 {offsets = [2, 128], sizes = [2, 128], strides = [1, 1]} : vector<4x256xf32> to vector<2x128xf32>
    %354 = arith.addf %352, %353 : vector<2x128xf32>
    %355 = vector.extract_strided_slice %65 {offsets = [6, 0], sizes = [2, 1], strides = [1, 1]} : vector<16x1xf32> to vector<2x1xf32>
    %356 = vector.extract_strided_slice %65 {offsets = [8, 0], sizes = [2, 1], strides = [1, 1]} : vector<16x1xf32> to vector<2x1xf32>
    %357 = vector.extract_strided_slice %351 {offsets = [0, 0], sizes = [2, 32], strides = [1, 1]} : vector<2x128xf32> to vector<2x32xf32>
    %358 = arith.negf %357 : vector<2x32xf32>
    %359 = math.exp %358 : vector<2x32xf32>
    %cst_82 = arith.constant 1.000000e+00 : f32
    %360 = vector.broadcast %cst_82 : f32 to vector<2x32xf32>
    %361 = arith.addf %360, %359 : vector<2x32xf32>
    %362 = arith.divf %360, %361 : vector<2x32xf32>
    %363 = vector.extract_strided_slice %351 {offsets = [0, 32], sizes = [2, 32], strides = [1, 1]} : vector<2x128xf32> to vector<2x32xf32>
    %364 = arith.negf %363 : vector<2x32xf32>
    %365 = math.exp %364 : vector<2x32xf32>
    %cst_83 = arith.constant 1.000000e+00 : f32
    %366 = vector.broadcast %cst_83 : f32 to vector<2x32xf32>
    %367 = arith.addf %366, %365 : vector<2x32xf32>
    %368 = arith.divf %366, %367 : vector<2x32xf32>
    %369 = vector.extract_strided_slice %351 {offsets = [0, 64], sizes = [2, 32], strides = [1, 1]} : vector<2x128xf32> to vector<2x32xf32>
    %370 = math.tanh %369 : vector<2x32xf32>
    %371 = vector.extract_strided_slice %351 {offsets = [0, 96], sizes = [2, 32], strides = [1, 1]} : vector<2x128xf32> to vector<2x32xf32>
    %372 = arith.negf %371 : vector<2x32xf32>
    %373 = math.exp %372 : vector<2x32xf32>
    %cst_84 = arith.constant 1.000000e+00 : f32
    %374 = vector.broadcast %cst_84 : f32 to vector<2x32xf32>
    %375 = arith.addf %374, %373 : vector<2x32xf32>
    %376 = arith.divf %374, %375 : vector<2x32xf32>
    %377 = arith.mulf %368, %328 : vector<2x32xf32>
    %378 = arith.mulf %362, %370 : vector<2x32xf32>
    %379 = arith.addf %377, %378 : vector<2x32xf32>
    %380 = math.tanh %379 : vector<2x32xf32>
    %381 = arith.mulf %376, %380 : vector<2x32xf32>
    %382 = vector.extract_strided_slice %354 {offsets = [0, 0], sizes = [2, 32], strides = [1, 1]} : vector<2x128xf32> to vector<2x32xf32>
    %383 = arith.negf %382 : vector<2x32xf32>
    %384 = math.exp %383 : vector<2x32xf32>
    %cst_85 = arith.constant 1.000000e+00 : f32
    %385 = vector.broadcast %cst_85 : f32 to vector<2x32xf32>
    %386 = arith.addf %385, %384 : vector<2x32xf32>
    %387 = arith.divf %385, %386 : vector<2x32xf32>
    %388 = vector.extract_strided_slice %354 {offsets = [0, 32], sizes = [2, 32], strides = [1, 1]} : vector<2x128xf32> to vector<2x32xf32>
    %389 = arith.negf %388 : vector<2x32xf32>
    %390 = math.exp %389 : vector<2x32xf32>
    %cst_86 = arith.constant 1.000000e+00 : f32
    %391 = vector.broadcast %cst_86 : f32 to vector<2x32xf32>
    %392 = arith.addf %391, %390 : vector<2x32xf32>
    %393 = arith.divf %391, %392 : vector<2x32xf32>
    %394 = vector.extract_strided_slice %354 {offsets = [0, 64], sizes = [2, 32], strides = [1, 1]} : vector<2x128xf32> to vector<2x32xf32>
    %395 = math.tanh %394 : vector<2x32xf32>
    %396 = vector.extract_strided_slice %354 {offsets = [0, 96], sizes = [2, 32], strides = [1, 1]} : vector<2x128xf32> to vector<2x32xf32>
    %397 = arith.negf %396 : vector<2x32xf32>
    %398 = math.exp %397 : vector<2x32xf32>
    %cst_87 = arith.constant 1.000000e+00 : f32
    %399 = vector.broadcast %cst_87 : f32 to vector<2x32xf32>
    %400 = arith.addf %399, %398 : vector<2x32xf32>
    %401 = arith.divf %399, %400 : vector<2x32xf32>
    %402 = arith.mulf %393, %342 : vector<2x32xf32>
    %403 = arith.mulf %387, %395 : vector<2x32xf32>
    %404 = arith.addf %402, %403 : vector<2x32xf32>
    %405 = math.tanh %404 : vector<2x32xf32>
    %406 = arith.mulf %401, %405 : vector<2x32xf32>
    %407 = vector.broadcast %355 : vector<2x1xf32> to vector<2x32xf32>
    %408 = arith.mulf %407, %381 : vector<2x32xf32>
    %cst_88 = arith.constant 1.000000e+00 : f32
    %409 = vector.broadcast %cst_88 : f32 to vector<2x1xf32>
    %410 = arith.subf %409, %355 : vector<2x1xf32>
    %411 = vector.broadcast %410 : vector<2x1xf32> to vector<2x32xf32>
    %412 = arith.mulf %411, %321 : vector<2x32xf32>
    %413 = arith.addf %408, %412 : vector<2x32xf32>
    %414 = vector.broadcast %355 : vector<2x1xf32> to vector<2x32xf32>
    %415 = arith.mulf %414, %379 : vector<2x32xf32>
    %cst_89 = arith.constant 1.000000e+00 : f32
    %416 = vector.broadcast %cst_89 : f32 to vector<2x1xf32>
    %417 = arith.subf %416, %355 : vector<2x1xf32>
    %418 = vector.broadcast %417 : vector<2x1xf32> to vector<2x32xf32>
    %419 = arith.mulf %418, %328 : vector<2x32xf32>
    %420 = arith.addf %415, %419 : vector<2x32xf32>
    %421 = vector.broadcast %356 : vector<2x1xf32> to vector<2x32xf32>
    %422 = arith.mulf %421, %406 : vector<2x32xf32>
    %cst_90 = arith.constant 1.000000e+00 : f32
    %423 = vector.broadcast %cst_90 : f32 to vector<2x1xf32>
    %424 = arith.subf %423, %356 : vector<2x1xf32>
    %425 = vector.broadcast %424 : vector<2x1xf32> to vector<2x32xf32>
    %426 = arith.mulf %425, %335 : vector<2x32xf32>
    %427 = arith.addf %422, %426 : vector<2x32xf32>
    %428 = vector.broadcast %356 : vector<2x1xf32> to vector<2x32xf32>
    %429 = arith.mulf %428, %404 : vector<2x32xf32>
    %cst_91 = arith.constant 1.000000e+00 : f32
    %430 = vector.broadcast %cst_91 : f32 to vector<2x1xf32>
    %431 = arith.subf %430, %356 : vector<2x1xf32>
    %432 = vector.broadcast %431 : vector<2x1xf32> to vector<2x32xf32>
    %433 = arith.mulf %432, %342 : vector<2x32xf32>
    %434 = arith.addf %429, %433 : vector<2x32xf32>
    %435 = vector.broadcast %355 : vector<2x1xf32> to vector<2x32xf32>
    %436 = arith.mulf %435, %381 : vector<2x32xf32>
    %437 = vector.broadcast %356 : vector<2x1xf32> to vector<2x32xf32>
    %438 = arith.mulf %437, %406 : vector<2x32xf32>
    %439 = tpu.concatenate %413, %427 in 0 : vector<2x32xf32>, vector<2x32xf32> -> vector<4x32xf32>
    %cst_92 = arith.constant dense<0.000000e+00> : vector<4x256xf32>
    %440 = tpu.matmul %439, %66, %cst_92 {dimension_numbers = #tpu.dot_dimension_numbers<[1], [0], [0], [1], [0, 0, 1, 1], [], []>} : vector<4x32xf32>, vector<32x256xf32>, vector<4x256xf32> -> vector<4x256xf32>
    %441 = vector.extract_strided_slice %64 {offsets = [8, 0], sizes = [2, 128], strides = [1, 1]} : vector<16x256xf32> to vector<2x128xf32>
    %442 = vector.extract_strided_slice %440 {offsets = [0, 0], sizes = [2, 128], strides = [1, 1]} : vector<4x256xf32> to vector<2x128xf32>
    %443 = arith.addf %441, %442 : vector<2x128xf32>
    %444 = vector.extract_strided_slice %64 {offsets = [6, 128], sizes = [2, 128], strides = [1, 1]} : vector<16x256xf32> to vector<2x128xf32>
    %445 = vector.extract_strided_slice %440 {offsets = [2, 128], sizes = [2, 128], strides = [1, 1]} : vector<4x256xf32> to vector<2x128xf32>
    %446 = arith.addf %444, %445 : vector<2x128xf32>
    %447 = vector.extract_strided_slice %65 {offsets = [8, 0], sizes = [2, 1], strides = [1, 1]} : vector<16x1xf32> to vector<2x1xf32>
    %448 = vector.extract_strided_slice %65 {offsets = [6, 0], sizes = [2, 1], strides = [1, 1]} : vector<16x1xf32> to vector<2x1xf32>
    %449 = vector.extract_strided_slice %443 {offsets = [0, 0], sizes = [2, 32], strides = [1, 1]} : vector<2x128xf32> to vector<2x32xf32>
    %450 = arith.negf %449 : vector<2x32xf32>
    %451 = math.exp %450 : vector<2x32xf32>
    %cst_93 = arith.constant 1.000000e+00 : f32
    %452 = vector.broadcast %cst_93 : f32 to vector<2x32xf32>
    %453 = arith.addf %452, %451 : vector<2x32xf32>
    %454 = arith.divf %452, %453 : vector<2x32xf32>
    %455 = vector.extract_strided_slice %443 {offsets = [0, 32], sizes = [2, 32], strides = [1, 1]} : vector<2x128xf32> to vector<2x32xf32>
    %456 = arith.negf %455 : vector<2x32xf32>
    %457 = math.exp %456 : vector<2x32xf32>
    %cst_94 = arith.constant 1.000000e+00 : f32
    %458 = vector.broadcast %cst_94 : f32 to vector<2x32xf32>
    %459 = arith.addf %458, %457 : vector<2x32xf32>
    %460 = arith.divf %458, %459 : vector<2x32xf32>
    %461 = vector.extract_strided_slice %443 {offsets = [0, 64], sizes = [2, 32], strides = [1, 1]} : vector<2x128xf32> to vector<2x32xf32>
    %462 = math.tanh %461 : vector<2x32xf32>
    %463 = vector.extract_strided_slice %443 {offsets = [0, 96], sizes = [2, 32], strides = [1, 1]} : vector<2x128xf32> to vector<2x32xf32>
    %464 = arith.negf %463 : vector<2x32xf32>
    %465 = math.exp %464 : vector<2x32xf32>
    %cst_95 = arith.constant 1.000000e+00 : f32
    %466 = vector.broadcast %cst_95 : f32 to vector<2x32xf32>
    %467 = arith.addf %466, %465 : vector<2x32xf32>
    %468 = arith.divf %466, %467 : vector<2x32xf32>
    %469 = arith.mulf %460, %420 : vector<2x32xf32>
    %470 = arith.mulf %454, %462 : vector<2x32xf32>
    %471 = arith.addf %469, %470 : vector<2x32xf32>
    %472 = math.tanh %471 : vector<2x32xf32>
    %473 = arith.mulf %468, %472 : vector<2x32xf32>
    %474 = vector.extract_strided_slice %446 {offsets = [0, 0], sizes = [2, 32], strides = [1, 1]} : vector<2x128xf32> to vector<2x32xf32>
    %475 = arith.negf %474 : vector<2x32xf32>
    %476 = math.exp %475 : vector<2x32xf32>
    %cst_96 = arith.constant 1.000000e+00 : f32
    %477 = vector.broadcast %cst_96 : f32 to vector<2x32xf32>
    %478 = arith.addf %477, %476 : vector<2x32xf32>
    %479 = arith.divf %477, %478 : vector<2x32xf32>
    %480 = vector.extract_strided_slice %446 {offsets = [0, 32], sizes = [2, 32], strides = [1, 1]} : vector<2x128xf32> to vector<2x32xf32>
    %481 = arith.negf %480 : vector<2x32xf32>
    %482 = math.exp %481 : vector<2x32xf32>
    %cst_97 = arith.constant 1.000000e+00 : f32
    %483 = vector.broadcast %cst_97 : f32 to vector<2x32xf32>
    %484 = arith.addf %483, %482 : vector<2x32xf32>
    %485 = arith.divf %483, %484 : vector<2x32xf32>
    %486 = vector.extract_strided_slice %446 {offsets = [0, 64], sizes = [2, 32], strides = [1, 1]} : vector<2x128xf32> to vector<2x32xf32>
    %487 = math.tanh %486 : vector<2x32xf32>
    %488 = vector.extract_strided_slice %446 {offsets = [0, 96], sizes = [2, 32], strides = [1, 1]} : vector<2x128xf32> to vector<2x32xf32>
    %489 = arith.negf %488 : vector<2x32xf32>
    %490 = math.exp %489 : vector<2x32xf32>
    %cst_98 = arith.constant 1.000000e+00 : f32
    %491 = vector.broadcast %cst_98 : f32 to vector<2x32xf32>
    %492 = arith.addf %491, %490 : vector<2x32xf32>
    %493 = arith.divf %491, %492 : vector<2x32xf32>
    %494 = arith.mulf %485, %434 : vector<2x32xf32>
    %495 = arith.mulf %479, %487 : vector<2x32xf32>
    %496 = arith.addf %494, %495 : vector<2x32xf32>
    %497 = math.tanh %496 : vector<2x32xf32>
    %498 = arith.mulf %493, %497 : vector<2x32xf32>
    %499 = vector.broadcast %447 : vector<2x1xf32> to vector<2x32xf32>
    %500 = arith.mulf %499, %473 : vector<2x32xf32>
    %cst_99 = arith.constant 1.000000e+00 : f32
    %501 = vector.broadcast %cst_99 : f32 to vector<2x1xf32>
    %502 = arith.subf %501, %447 : vector<2x1xf32>
    %503 = vector.broadcast %502 : vector<2x1xf32> to vector<2x32xf32>
    %504 = arith.mulf %503, %413 : vector<2x32xf32>
    %505 = arith.addf %500, %504 : vector<2x32xf32>
    %506 = vector.broadcast %447 : vector<2x1xf32> to vector<2x32xf32>
    %507 = arith.mulf %506, %471 : vector<2x32xf32>
    %cst_100 = arith.constant 1.000000e+00 : f32
    %508 = vector.broadcast %cst_100 : f32 to vector<2x1xf32>
    %509 = arith.subf %508, %447 : vector<2x1xf32>
    %510 = vector.broadcast %509 : vector<2x1xf32> to vector<2x32xf32>
    %511 = arith.mulf %510, %420 : vector<2x32xf32>
    %512 = arith.addf %507, %511 : vector<2x32xf32>
    %513 = vector.broadcast %448 : vector<2x1xf32> to vector<2x32xf32>
    %514 = arith.mulf %513, %498 : vector<2x32xf32>
    %cst_101 = arith.constant 1.000000e+00 : f32
    %515 = vector.broadcast %cst_101 : f32 to vector<2x1xf32>
    %516 = arith.subf %515, %448 : vector<2x1xf32>
    %517 = vector.broadcast %516 : vector<2x1xf32> to vector<2x32xf32>
    %518 = arith.mulf %517, %427 : vector<2x32xf32>
    %519 = arith.addf %514, %518 : vector<2x32xf32>
    %520 = vector.broadcast %448 : vector<2x1xf32> to vector<2x32xf32>
    %521 = arith.mulf %520, %496 : vector<2x32xf32>
    %cst_102 = arith.constant 1.000000e+00 : f32
    %522 = vector.broadcast %cst_102 : f32 to vector<2x1xf32>
    %523 = arith.subf %522, %448 : vector<2x1xf32>
    %524 = vector.broadcast %523 : vector<2x1xf32> to vector<2x32xf32>
    %525 = arith.mulf %524, %434 : vector<2x32xf32>
    %526 = arith.addf %521, %525 : vector<2x32xf32>
    %527 = vector.broadcast %447 : vector<2x1xf32> to vector<2x32xf32>
    %528 = arith.mulf %527, %473 : vector<2x32xf32>
    %529 = vector.broadcast %448 : vector<2x1xf32> to vector<2x32xf32>
    %530 = arith.mulf %529, %498 : vector<2x32xf32>
    %531 = tpu.concatenate %505, %519 in 0 : vector<2x32xf32>, vector<2x32xf32> -> vector<4x32xf32>
    %cst_103 = arith.constant dense<0.000000e+00> : vector<4x256xf32>
    %532 = tpu.matmul %531, %66, %cst_103 {dimension_numbers = #tpu.dot_dimension_numbers<[1], [0], [0], [1], [0, 0, 1, 1], [], []>} : vector<4x32xf32>, vector<32x256xf32>, vector<4x256xf32> -> vector<4x256xf32>
    %533 = vector.extract_strided_slice %64 {offsets = [10, 0], sizes = [2, 128], strides = [1, 1]} : vector<16x256xf32> to vector<2x128xf32>
    %534 = vector.extract_strided_slice %532 {offsets = [0, 0], sizes = [2, 128], strides = [1, 1]} : vector<4x256xf32> to vector<2x128xf32>
    %535 = arith.addf %533, %534 : vector<2x128xf32>
    %536 = vector.extract_strided_slice %64 {offsets = [4, 128], sizes = [2, 128], strides = [1, 1]} : vector<16x256xf32> to vector<2x128xf32>
    %537 = vector.extract_strided_slice %532 {offsets = [2, 128], sizes = [2, 128], strides = [1, 1]} : vector<4x256xf32> to vector<2x128xf32>
    %538 = arith.addf %536, %537 : vector<2x128xf32>
    %539 = vector.extract_strided_slice %65 {offsets = [10, 0], sizes = [2, 1], strides = [1, 1]} : vector<16x1xf32> to vector<2x1xf32>
    %540 = vector.extract_strided_slice %65 {offsets = [4, 0], sizes = [2, 1], strides = [1, 1]} : vector<16x1xf32> to vector<2x1xf32>
    %541 = vector.extract_strided_slice %535 {offsets = [0, 0], sizes = [2, 32], strides = [1, 1]} : vector<2x128xf32> to vector<2x32xf32>
    %542 = arith.negf %541 : vector<2x32xf32>
    %543 = math.exp %542 : vector<2x32xf32>
    %cst_104 = arith.constant 1.000000e+00 : f32
    %544 = vector.broadcast %cst_104 : f32 to vector<2x32xf32>
    %545 = arith.addf %544, %543 : vector<2x32xf32>
    %546 = arith.divf %544, %545 : vector<2x32xf32>
    %547 = vector.extract_strided_slice %535 {offsets = [0, 32], sizes = [2, 32], strides = [1, 1]} : vector<2x128xf32> to vector<2x32xf32>
    %548 = arith.negf %547 : vector<2x32xf32>
    %549 = math.exp %548 : vector<2x32xf32>
    %cst_105 = arith.constant 1.000000e+00 : f32
    %550 = vector.broadcast %cst_105 : f32 to vector<2x32xf32>
    %551 = arith.addf %550, %549 : vector<2x32xf32>
    %552 = arith.divf %550, %551 : vector<2x32xf32>
    %553 = vector.extract_strided_slice %535 {offsets = [0, 64], sizes = [2, 32], strides = [1, 1]} : vector<2x128xf32> to vector<2x32xf32>
    %554 = math.tanh %553 : vector<2x32xf32>
    %555 = vector.extract_strided_slice %535 {offsets = [0, 96], sizes = [2, 32], strides = [1, 1]} : vector<2x128xf32> to vector<2x32xf32>
    %556 = arith.negf %555 : vector<2x32xf32>
    %557 = math.exp %556 : vector<2x32xf32>
    %cst_106 = arith.constant 1.000000e+00 : f32
    %558 = vector.broadcast %cst_106 : f32 to vector<2x32xf32>
    %559 = arith.addf %558, %557 : vector<2x32xf32>
    %560 = arith.divf %558, %559 : vector<2x32xf32>
    %561 = arith.mulf %552, %512 : vector<2x32xf32>
    %562 = arith.mulf %546, %554 : vector<2x32xf32>
    %563 = arith.addf %561, %562 : vector<2x32xf32>
    %564 = math.tanh %563 : vector<2x32xf32>
    %565 = arith.mulf %560, %564 : vector<2x32xf32>
    %566 = vector.extract_strided_slice %538 {offsets = [0, 0], sizes = [2, 32], strides = [1, 1]} : vector<2x128xf32> to vector<2x32xf32>
    %567 = arith.negf %566 : vector<2x32xf32>
    %568 = math.exp %567 : vector<2x32xf32>
    %cst_107 = arith.constant 1.000000e+00 : f32
    %569 = vector.broadcast %cst_107 : f32 to vector<2x32xf32>
    %570 = arith.addf %569, %568 : vector<2x32xf32>
    %571 = arith.divf %569, %570 : vector<2x32xf32>
    %572 = vector.extract_strided_slice %538 {offsets = [0, 32], sizes = [2, 32], strides = [1, 1]} : vector<2x128xf32> to vector<2x32xf32>
    %573 = arith.negf %572 : vector<2x32xf32>
    %574 = math.exp %573 : vector<2x32xf32>
    %cst_108 = arith.constant 1.000000e+00 : f32
    %575 = vector.broadcast %cst_108 : f32 to vector<2x32xf32>
    %576 = arith.addf %575, %574 : vector<2x32xf32>
    %577 = arith.divf %575, %576 : vector<2x32xf32>
    %578 = vector.extract_strided_slice %538 {offsets = [0, 64], sizes = [2, 32], strides = [1, 1]} : vector<2x128xf32> to vector<2x32xf32>
    %579 = math.tanh %578 : vector<2x32xf32>
    %580 = vector.extract_strided_slice %538 {offsets = [0, 96], sizes = [2, 32], strides = [1, 1]} : vector<2x128xf32> to vector<2x32xf32>
    %581 = arith.negf %580 : vector<2x32xf32>
    %582 = math.exp %581 : vector<2x32xf32>
    %cst_109 = arith.constant 1.000000e+00 : f32
    %583 = vector.broadcast %cst_109 : f32 to vector<2x32xf32>
    %584 = arith.addf %583, %582 : vector<2x32xf32>
    %585 = arith.divf %583, %584 : vector<2x32xf32>
    %586 = arith.mulf %577, %526 : vector<2x32xf32>
    %587 = arith.mulf %571, %579 : vector<2x32xf32>
    %588 = arith.addf %586, %587 : vector<2x32xf32>
    %589 = math.tanh %588 : vector<2x32xf32>
    %590 = arith.mulf %585, %589 : vector<2x32xf32>
    %591 = vector.broadcast %539 : vector<2x1xf32> to vector<2x32xf32>
    %592 = arith.mulf %591, %565 : vector<2x32xf32>
    %cst_110 = arith.constant 1.000000e+00 : f32
    %593 = vector.broadcast %cst_110 : f32 to vector<2x1xf32>
    %594 = arith.subf %593, %539 : vector<2x1xf32>
    %595 = vector.broadcast %594 : vector<2x1xf32> to vector<2x32xf32>
    %596 = arith.mulf %595, %505 : vector<2x32xf32>
    %597 = arith.addf %592, %596 : vector<2x32xf32>
    %598 = vector.broadcast %539 : vector<2x1xf32> to vector<2x32xf32>
    %599 = arith.mulf %598, %563 : vector<2x32xf32>
    %cst_111 = arith.constant 1.000000e+00 : f32
    %600 = vector.broadcast %cst_111 : f32 to vector<2x1xf32>
    %601 = arith.subf %600, %539 : vector<2x1xf32>
    %602 = vector.broadcast %601 : vector<2x1xf32> to vector<2x32xf32>
    %603 = arith.mulf %602, %512 : vector<2x32xf32>
    %604 = arith.addf %599, %603 : vector<2x32xf32>
    %605 = vector.broadcast %540 : vector<2x1xf32> to vector<2x32xf32>
    %606 = arith.mulf %605, %590 : vector<2x32xf32>
    %cst_112 = arith.constant 1.000000e+00 : f32
    %607 = vector.broadcast %cst_112 : f32 to vector<2x1xf32>
    %608 = arith.subf %607, %540 : vector<2x1xf32>
    %609 = vector.broadcast %608 : vector<2x1xf32> to vector<2x32xf32>
    %610 = arith.mulf %609, %519 : vector<2x32xf32>
    %611 = arith.addf %606, %610 : vector<2x32xf32>
    %612 = vector.broadcast %540 : vector<2x1xf32> to vector<2x32xf32>
    %613 = arith.mulf %612, %588 : vector<2x32xf32>
    %cst_113 = arith.constant 1.000000e+00 : f32
    %614 = vector.broadcast %cst_113 : f32 to vector<2x1xf32>
    %615 = arith.subf %614, %540 : vector<2x1xf32>
    %616 = vector.broadcast %615 : vector<2x1xf32> to vector<2x32xf32>
    %617 = arith.mulf %616, %526 : vector<2x32xf32>
    %618 = arith.addf %613, %617 : vector<2x32xf32>
    %619 = vector.broadcast %539 : vector<2x1xf32> to vector<2x32xf32>
    %620 = arith.mulf %619, %565 : vector<2x32xf32>
    %621 = vector.broadcast %540 : vector<2x1xf32> to vector<2x32xf32>
    %622 = arith.mulf %621, %590 : vector<2x32xf32>
    %623 = tpu.concatenate %597, %611 in 0 : vector<2x32xf32>, vector<2x32xf32> -> vector<4x32xf32>
    %cst_114 = arith.constant dense<0.000000e+00> : vector<4x256xf32>
    %624 = tpu.matmul %623, %66, %cst_114 {dimension_numbers = #tpu.dot_dimension_numbers<[1], [0], [0], [1], [0, 0, 1, 1], [], []>} : vector<4x32xf32>, vector<32x256xf32>, vector<4x256xf32> -> vector<4x256xf32>
    %625 = vector.extract_strided_slice %64 {offsets = [12, 0], sizes = [2, 128], strides = [1, 1]} : vector<16x256xf32> to vector<2x128xf32>
    %626 = vector.extract_strided_slice %624 {offsets = [0, 0], sizes = [2, 128], strides = [1, 1]} : vector<4x256xf32> to vector<2x128xf32>
    %627 = arith.addf %625, %626 : vector<2x128xf32>
    %628 = vector.extract_strided_slice %64 {offsets = [2, 128], sizes = [2, 128], strides = [1, 1]} : vector<16x256xf32> to vector<2x128xf32>
    %629 = vector.extract_strided_slice %624 {offsets = [2, 128], sizes = [2, 128], strides = [1, 1]} : vector<4x256xf32> to vector<2x128xf32>
    %630 = arith.addf %628, %629 : vector<2x128xf32>
    %631 = vector.extract_strided_slice %65 {offsets = [12, 0], sizes = [2, 1], strides = [1, 1]} : vector<16x1xf32> to vector<2x1xf32>
    %632 = vector.extract_strided_slice %65 {offsets = [2, 0], sizes = [2, 1], strides = [1, 1]} : vector<16x1xf32> to vector<2x1xf32>
    %633 = vector.extract_strided_slice %627 {offsets = [0, 0], sizes = [2, 32], strides = [1, 1]} : vector<2x128xf32> to vector<2x32xf32>
    %634 = arith.negf %633 : vector<2x32xf32>
    %635 = math.exp %634 : vector<2x32xf32>
    %cst_115 = arith.constant 1.000000e+00 : f32
    %636 = vector.broadcast %cst_115 : f32 to vector<2x32xf32>
    %637 = arith.addf %636, %635 : vector<2x32xf32>
    %638 = arith.divf %636, %637 : vector<2x32xf32>
    %639 = vector.extract_strided_slice %627 {offsets = [0, 32], sizes = [2, 32], strides = [1, 1]} : vector<2x128xf32> to vector<2x32xf32>
    %640 = arith.negf %639 : vector<2x32xf32>
    %641 = math.exp %640 : vector<2x32xf32>
    %cst_116 = arith.constant 1.000000e+00 : f32
    %642 = vector.broadcast %cst_116 : f32 to vector<2x32xf32>
    %643 = arith.addf %642, %641 : vector<2x32xf32>
    %644 = arith.divf %642, %643 : vector<2x32xf32>
    %645 = vector.extract_strided_slice %627 {offsets = [0, 64], sizes = [2, 32], strides = [1, 1]} : vector<2x128xf32> to vector<2x32xf32>
    %646 = math.tanh %645 : vector<2x32xf32>
    %647 = vector.extract_strided_slice %627 {offsets = [0, 96], sizes = [2, 32], strides = [1, 1]} : vector<2x128xf32> to vector<2x32xf32>
    %648 = arith.negf %647 : vector<2x32xf32>
    %649 = math.exp %648 : vector<2x32xf32>
    %cst_117 = arith.constant 1.000000e+00 : f32
    %650 = vector.broadcast %cst_117 : f32 to vector<2x32xf32>
    %651 = arith.addf %650, %649 : vector<2x32xf32>
    %652 = arith.divf %650, %651 : vector<2x32xf32>
    %653 = arith.mulf %644, %604 : vector<2x32xf32>
    %654 = arith.mulf %638, %646 : vector<2x32xf32>
    %655 = arith.addf %653, %654 : vector<2x32xf32>
    %656 = math.tanh %655 : vector<2x32xf32>
    %657 = arith.mulf %652, %656 : vector<2x32xf32>
    %658 = vector.extract_strided_slice %630 {offsets = [0, 0], sizes = [2, 32], strides = [1, 1]} : vector<2x128xf32> to vector<2x32xf32>
    %659 = arith.negf %658 : vector<2x32xf32>
    %660 = math.exp %659 : vector<2x32xf32>
    %cst_118 = arith.constant 1.000000e+00 : f32
    %661 = vector.broadcast %cst_118 : f32 to vector<2x32xf32>
    %662 = arith.addf %661, %660 : vector<2x32xf32>
    %663 = arith.divf %661, %662 : vector<2x32xf32>
    %664 = vector.extract_strided_slice %630 {offsets = [0, 32], sizes = [2, 32], strides = [1, 1]} : vector<2x128xf32> to vector<2x32xf32>
    %665 = arith.negf %664 : vector<2x32xf32>
    %666 = math.exp %665 : vector<2x32xf32>
    %cst_119 = arith.constant 1.000000e+00 : f32
    %667 = vector.broadcast %cst_119 : f32 to vector<2x32xf32>
    %668 = arith.addf %667, %666 : vector<2x32xf32>
    %669 = arith.divf %667, %668 : vector<2x32xf32>
    %670 = vector.extract_strided_slice %630 {offsets = [0, 64], sizes = [2, 32], strides = [1, 1]} : vector<2x128xf32> to vector<2x32xf32>
    %671 = math.tanh %670 : vector<2x32xf32>
    %672 = vector.extract_strided_slice %630 {offsets = [0, 96], sizes = [2, 32], strides = [1, 1]} : vector<2x128xf32> to vector<2x32xf32>
    %673 = arith.negf %672 : vector<2x32xf32>
    %674 = math.exp %673 : vector<2x32xf32>
    %cst_120 = arith.constant 1.000000e+00 : f32
    %675 = vector.broadcast %cst_120 : f32 to vector<2x32xf32>
    %676 = arith.addf %675, %674 : vector<2x32xf32>
    %677 = arith.divf %675, %676 : vector<2x32xf32>
    %678 = arith.mulf %669, %618 : vector<2x32xf32>
    %679 = arith.mulf %663, %671 : vector<2x32xf32>
    %680 = arith.addf %678, %679 : vector<2x32xf32>
    %681 = math.tanh %680 : vector<2x32xf32>
    %682 = arith.mulf %677, %681 : vector<2x32xf32>
    %683 = vector.broadcast %631 : vector<2x1xf32> to vector<2x32xf32>
    %684 = arith.mulf %683, %657 : vector<2x32xf32>
    %cst_121 = arith.constant 1.000000e+00 : f32
    %685 = vector.broadcast %cst_121 : f32 to vector<2x1xf32>
    %686 = arith.subf %685, %631 : vector<2x1xf32>
    %687 = vector.broadcast %686 : vector<2x1xf32> to vector<2x32xf32>
    %688 = arith.mulf %687, %597 : vector<2x32xf32>
    %689 = arith.addf %684, %688 : vector<2x32xf32>
    %690 = vector.broadcast %631 : vector<2x1xf32> to vector<2x32xf32>
    %691 = arith.mulf %690, %655 : vector<2x32xf32>
    %cst_122 = arith.constant 1.000000e+00 : f32
    %692 = vector.broadcast %cst_122 : f32 to vector<2x1xf32>
    %693 = arith.subf %692, %631 : vector<2x1xf32>
    %694 = vector.broadcast %693 : vector<2x1xf32> to vector<2x32xf32>
    %695 = arith.mulf %694, %604 : vector<2x32xf32>
    %696 = arith.addf %691, %695 : vector<2x32xf32>
    %697 = vector.broadcast %632 : vector<2x1xf32> to vector<2x32xf32>
    %698 = arith.mulf %697, %682 : vector<2x32xf32>
    %cst_123 = arith.constant 1.000000e+00 : f32
    %699 = vector.broadcast %cst_123 : f32 to vector<2x1xf32>
    %700 = arith.subf %699, %632 : vector<2x1xf32>
    %701 = vector.broadcast %700 : vector<2x1xf32> to vector<2x32xf32>
    %702 = arith.mulf %701, %611 : vector<2x32xf32>
    %703 = arith.addf %698, %702 : vector<2x32xf32>
    %704 = vector.broadcast %632 : vector<2x1xf32> to vector<2x32xf32>
    %705 = arith.mulf %704, %680 : vector<2x32xf32>
    %cst_124 = arith.constant 1.000000e+00 : f32
    %706 = vector.broadcast %cst_124 : f32 to vector<2x1xf32>
    %707 = arith.subf %706, %632 : vector<2x1xf32>
    %708 = vector.broadcast %707 : vector<2x1xf32> to vector<2x32xf32>
    %709 = arith.mulf %708, %618 : vector<2x32xf32>
    %710 = arith.addf %705, %709 : vector<2x32xf32>
    %711 = vector.broadcast %631 : vector<2x1xf32> to vector<2x32xf32>
    %712 = arith.mulf %711, %657 : vector<2x32xf32>
    %713 = vector.broadcast %632 : vector<2x1xf32> to vector<2x32xf32>
    %714 = arith.mulf %713, %682 : vector<2x32xf32>
    %715 = tpu.concatenate %689, %703 in 0 : vector<2x32xf32>, vector<2x32xf32> -> vector<4x32xf32>
    %cst_125 = arith.constant dense<0.000000e+00> : vector<4x256xf32>
    %716 = tpu.matmul %715, %66, %cst_125 {dimension_numbers = #tpu.dot_dimension_numbers<[1], [0], [0], [1], [0, 0, 1, 1], [], []>} : vector<4x32xf32>, vector<32x256xf32>, vector<4x256xf32> -> vector<4x256xf32>
    %717 = vector.extract_strided_slice %64 {offsets = [14, 0], sizes = [2, 128], strides = [1, 1]} : vector<16x256xf32> to vector<2x128xf32>
    %718 = vector.extract_strided_slice %716 {offsets = [0, 0], sizes = [2, 128], strides = [1, 1]} : vector<4x256xf32> to vector<2x128xf32>
    %719 = arith.addf %717, %718 : vector<2x128xf32>
    %720 = vector.extract_strided_slice %64 {offsets = [0, 128], sizes = [2, 128], strides = [1, 1]} : vector<16x256xf32> to vector<2x128xf32>
    %721 = vector.extract_strided_slice %716 {offsets = [2, 128], sizes = [2, 128], strides = [1, 1]} : vector<4x256xf32> to vector<2x128xf32>
    %722 = arith.addf %720, %721 : vector<2x128xf32>
    %723 = vector.extract_strided_slice %65 {offsets = [14, 0], sizes = [2, 1], strides = [1, 1]} : vector<16x1xf32> to vector<2x1xf32>
    %724 = vector.extract_strided_slice %65 {offsets = [0, 0], sizes = [2, 1], strides = [1, 1]} : vector<16x1xf32> to vector<2x1xf32>
    %725 = vector.extract_strided_slice %719 {offsets = [0, 0], sizes = [2, 32], strides = [1, 1]} : vector<2x128xf32> to vector<2x32xf32>
    %726 = arith.negf %725 : vector<2x32xf32>
    %727 = math.exp %726 : vector<2x32xf32>
    %cst_126 = arith.constant 1.000000e+00 : f32
    %728 = vector.broadcast %cst_126 : f32 to vector<2x32xf32>
    %729 = arith.addf %728, %727 : vector<2x32xf32>
    %730 = arith.divf %728, %729 : vector<2x32xf32>
    %731 = vector.extract_strided_slice %719 {offsets = [0, 32], sizes = [2, 32], strides = [1, 1]} : vector<2x128xf32> to vector<2x32xf32>
    %732 = arith.negf %731 : vector<2x32xf32>
    %733 = math.exp %732 : vector<2x32xf32>
    %cst_127 = arith.constant 1.000000e+00 : f32
    %734 = vector.broadcast %cst_127 : f32 to vector<2x32xf32>
    %735 = arith.addf %734, %733 : vector<2x32xf32>
    %736 = arith.divf %734, %735 : vector<2x32xf32>
    %737 = vector.extract_strided_slice %719 {offsets = [0, 64], sizes = [2, 32], strides = [1, 1]} : vector<2x128xf32> to vector<2x32xf32>
    %738 = math.tanh %737 : vector<2x32xf32>
    %739 = vector.extract_strided_slice %719 {offsets = [0, 96], sizes = [2, 32], strides = [1, 1]} : vector<2x128xf32> to vector<2x32xf32>
    %740 = arith.negf %739 : vector<2x32xf32>
    %741 = math.exp %740 : vector<2x32xf32>
    %cst_128 = arith.constant 1.000000e+00 : f32
    %742 = vector.broadcast %cst_128 : f32 to vector<2x32xf32>
    %743 = arith.addf %742, %741 : vector<2x32xf32>
    %744 = arith.divf %742, %743 : vector<2x32xf32>
    %745 = arith.mulf %736, %696 : vector<2x32xf32>
    %746 = arith.mulf %730, %738 : vector<2x32xf32>
    %747 = arith.addf %745, %746 : vector<2x32xf32>
    %748 = math.tanh %747 : vector<2x32xf32>
    %749 = arith.mulf %744, %748 : vector<2x32xf32>
    %750 = vector.extract_strided_slice %722 {offsets = [0, 0], sizes = [2, 32], strides = [1, 1]} : vector<2x128xf32> to vector<2x32xf32>
    %751 = arith.negf %750 : vector<2x32xf32>
    %752 = math.exp %751 : vector<2x32xf32>
    %cst_129 = arith.constant 1.000000e+00 : f32
    %753 = vector.broadcast %cst_129 : f32 to vector<2x32xf32>
    %754 = arith.addf %753, %752 : vector<2x32xf32>
    %755 = arith.divf %753, %754 : vector<2x32xf32>
    %756 = vector.extract_strided_slice %722 {offsets = [0, 32], sizes = [2, 32], strides = [1, 1]} : vector<2x128xf32> to vector<2x32xf32>
    %757 = arith.negf %756 : vector<2x32xf32>
    %758 = math.exp %757 : vector<2x32xf32>
    %cst_130 = arith.constant 1.000000e+00 : f32
    %759 = vector.broadcast %cst_130 : f32 to vector<2x32xf32>
    %760 = arith.addf %759, %758 : vector<2x32xf32>
    %761 = arith.divf %759, %760 : vector<2x32xf32>
    %762 = vector.extract_strided_slice %722 {offsets = [0, 64], sizes = [2, 32], strides = [1, 1]} : vector<2x128xf32> to vector<2x32xf32>
    %763 = math.tanh %762 : vector<2x32xf32>
    %764 = vector.extract_strided_slice %722 {offsets = [0, 96], sizes = [2, 32], strides = [1, 1]} : vector<2x128xf32> to vector<2x32xf32>
    %765 = arith.negf %764 : vector<2x32xf32>
    %766 = math.exp %765 : vector<2x32xf32>
    %cst_131 = arith.constant 1.000000e+00 : f32
    %767 = vector.broadcast %cst_131 : f32 to vector<2x32xf32>
    %768 = arith.addf %767, %766 : vector<2x32xf32>
    %769 = arith.divf %767, %768 : vector<2x32xf32>
    %770 = arith.mulf %761, %710 : vector<2x32xf32>
    %771 = arith.mulf %755, %763 : vector<2x32xf32>
    %772 = arith.addf %770, %771 : vector<2x32xf32>
    %773 = math.tanh %772 : vector<2x32xf32>
    %774 = arith.mulf %769, %773 : vector<2x32xf32>
    %775 = vector.broadcast %723 : vector<2x1xf32> to vector<2x32xf32>
    %776 = arith.mulf %775, %749 : vector<2x32xf32>
    %777 = vector.broadcast %724 : vector<2x1xf32> to vector<2x32xf32>
    %778 = arith.mulf %777, %774 : vector<2x32xf32>
    %779 = tpu.concatenate %160, %252, %344, %436, %528, %620, %712, %776 in 0 : vector<2x32xf32>, vector<2x32xf32>, vector<2x32xf32>, vector<2x32xf32>, vector<2x32xf32>, vector<2x32xf32>, vector<2x32xf32>, vector<2x32xf32> -> vector<16x32xf32>
    %780 = tpu.concatenate %778, %714, %622, %530, %438, %346, %254, %162 in 0 : vector<2x32xf32>, vector<2x32xf32>, vector<2x32xf32>, vector<2x32xf32>, vector<2x32xf32>, vector<2x32xf32>, vector<2x32xf32>, vector<2x32xf32> -> vector<16x32xf32>
    %c0_132 = arith.constant 0 : index
    %c0_133 = arith.constant 0 : index
    %781 = vector.load %arg16[%c0_132, %c0_133] : memref<32x16xf32, #tpu.memory_space<vmem>>, vector<32x16xf32>
    %cst_134 = arith.constant dense<0.000000e+00> : vector<16x16xf32>
    %782 = tpu.matmul %779, %781, %cst_134 {dimension_numbers = #tpu.dot_dimension_numbers<[1], [0], [0], [1], [0, 0, 1, 1], [], []>} : vector<16x32xf32>, vector<32x16xf32>, vector<16x16xf32> -> vector<16x16xf32>
    %c0_135 = arith.constant 0 : index
    %c0_136 = arith.constant 0 : index
    %783 = vector.load %arg17[%c0_135, %c0_136] : memref<32x16xf32, #tpu.memory_space<vmem>>, vector<32x16xf32>
    %cst_137 = arith.constant dense<0.000000e+00> : vector<16x16xf32>
    %784 = tpu.matmul %780, %783, %cst_137 {dimension_numbers = #tpu.dot_dimension_numbers<[1], [0], [0], [1], [0, 0, 1, 1], [], []>} : vector<16x32xf32>, vector<32x16xf32>, vector<16x16xf32> -> vector<16x16xf32>
    %785 = arith.addf %782, %784 : vector<16x16xf32>
    %c0_138 = arith.constant 0 : index
    %c0_139 = arith.constant 0 : index
    %786 = vector.load %arg18[%c0_138, %c0_139] : memref<1x16xf32, #tpu.memory_space<vmem>>, vector<1x16xf32>
    %787 = vector.broadcast %786 : vector<1x16xf32> to vector<16x16xf32>
    %788 = arith.addf %785, %787 : vector<16x16xf32>
    %cst_140 = arith.constant 0.000000e+00 : f32
    %789 = vector.broadcast %cst_140 : f32 to vector<16x16xf32>
    %790 = arith.cmpf ogt, %788, %789 : vector<16x16xf32>
    %cst_141 = arith.constant 0.000000e+00 : f32
    %791 = vector.broadcast %cst_141 : f32 to vector<16x16xf32>
    %792 = arith.minimumf %788, %791 : vector<16x16xf32>
    %793 = math.exp %792 : vector<16x16xf32>
    %cst_142 = arith.constant 1.000000e+00 : f32
    %794 = vector.broadcast %cst_142 : f32 to vector<16x16xf32>
    %795 = arith.subf %793, %794 : vector<16x16xf32>
    %796 = arith.select %790, %788, %795 : vector<16x16xi1>, vector<16x16xf32>
    %c0_143 = arith.constant 0 : index
    %c0_144 = arith.constant 0 : index
    %797 = vector.load %arg19[%c0_143, %c0_144] : memref<16x5xf32, #tpu.memory_space<vmem>>, vector<16x5xf32>
    %cst_145 = arith.constant dense<0.000000e+00> : vector<16x5xf32>
    %798 = tpu.matmul %796, %797, %cst_145 {dimension_numbers = #tpu.dot_dimension_numbers<[1], [0], [0], [1], [0, 0, 1, 1], [], []>} : vector<16x16xf32>, vector<16x5xf32>, vector<16x5xf32> -> vector<16x5xf32>
    %c0_146 = arith.constant 0 : index
    %c0_147 = arith.constant 0 : index
    %799 = vector.load %arg20[%c0_146, %c0_147] : memref<1x5xf32, #tpu.memory_space<vmem>>, vector<1x5xf32>
    %800 = vector.broadcast %799 : vector<1x5xf32> to vector<16x5xf32>
    %801 = arith.addf %798, %800 : vector<16x5xf32>
    %c0_148 = arith.constant 0 : index
    %c0_149 = arith.constant 0 : index
    %802 = vector.load %arg21[%c0_148, %c0_149] : memref<16x5xf32, #tpu.memory_space<vmem>>, vector<16x5xf32>
    tpu.vector_store %arg21[%c0_148, %c0_149], %801 {strides = array<i32>} : memref<16x5xf32, #tpu.memory_space<vmem>>, vector<16x5xf32>,
    return
  }
  func.func @transform_0(%arg0: i32) -> (i32, i32) {
    %c0_i32 = arith.constant 0 : i32
    %c0_i32_0 = arith.constant 0 : i32
    %c0_i32_1 = arith.constant 0 : i32
    return %c0_i32, %c0_i32_0 : i32, i32
  }
  func.func @transform_1(%arg0: i32) -> (i32, i32) {
    %c0_i32 = arith.constant 0 : i32
    %c0_i32_0 = arith.constant 0 : i32
    %c0_i32_1 = arith.constant 0 : i32
    return %c0_i32, %c0_i32_0 : i32, i32
  }
  func.func @transform_2(%arg0: i32) -> (i32, i32) {
    %c0_i32 = arith.constant 0 : i32
    %c0_i32_0 = arith.constant 0 : i32
    %c0_i32_1 = arith.constant 0 : i32
    return %c0_i32, %c0_i32_0 : i32, i32
  }
  func.func @transform_3(%arg0: i32) -> (i32, i32) {
    %c0_i32 = arith.constant 0 : i32
    %c0_i32_0 = arith.constant 0 : i32
    %c0_i32_1 = arith.constant 0 : i32
    return %c0_i32, %c0_i32_0 : i32, i32
  }
  func.func @transform_4(%arg0: i32) -> (i32, i32) {
    %c0_i32 = arith.constant 0 : i32
    %c0_i32_0 = arith.constant 0 : i32
    %c0_i32_1 = arith.constant 0 : i32
    return %c0_i32, %c0_i32_0 : i32, i32
  }
  func.func @transform_5(%arg0: i32) -> (i32, i32, i32) {
    %c0_i32 = arith.constant 0 : i32
    %c0_i32_0 = arith.constant 0 : i32
    %c0_i32_1 = arith.constant 0 : i32
    %c0_i32_2 = arith.constant 0 : i32
    return %c0_i32, %c0_i32_0, %c0_i32_1 : i32, i32, i32
  }
  func.func @transform_6(%arg0: i32) -> (i32, i32) {
    %c0_i32 = arith.constant 0 : i32
    %c0_i32_0 = arith.constant 0 : i32
    %c0_i32_1 = arith.constant 0 : i32
    return %c0_i32, %c0_i32_0 : i32, i32
  }
  func.func @transform_7(%arg0: i32) -> (i32, i32) {
    %c0_i32 = arith.constant 0 : i32
    %c0_i32_0 = arith.constant 0 : i32
    %c0_i32_1 = arith.constant 0 : i32
    return %c0_i32, %c0_i32_0 : i32, i32
  }
  func.func @transform_8(%arg0: i32) -> (i32, i32, i32) {
    %c0_i32 = arith.constant 0 : i32
    %c0_i32_0 = arith.constant 0 : i32
    %c0_i32_1 = arith.constant 0 : i32
    %c0_i32_2 = arith.constant 0 : i32
    return %c0_i32, %c0_i32_0, %c0_i32_1 : i32, i32, i32
  }
  func.func @transform_9(%arg0: i32) -> (i32, i32) {
    %c0_i32 = arith.constant 0 : i32
    %c0_i32_0 = arith.constant 0 : i32
    %c0_i32_1 = arith.constant 0 : i32
    return %c0_i32, %c0_i32_0 : i32, i32
  }
  func.func @transform_10(%arg0: i32) -> (i32, i32) {
    %c0_i32 = arith.constant 0 : i32
    %c0_i32_0 = arith.constant 0 : i32
    %c0_i32_1 = arith.constant 0 : i32
    return %c0_i32, %c0_i32_0 : i32, i32
  }
  func.func @transform_11(%arg0: i32) -> (i32, i32) {
    %c0_i32 = arith.constant 0 : i32
    %c0_i32_0 = arith.constant 0 : i32
    %c0_i32_1 = arith.constant 0 : i32
    return %c0_i32, %c0_i32_0 : i32, i32
  }
  func.func @transform_12(%arg0: i32) -> (i32, i32) {
    %c0_i32 = arith.constant 0 : i32
    %c0_i32_0 = arith.constant 0 : i32
    %c0_i32_1 = arith.constant 0 : i32
    return %c0_i32, %c0_i32_0 : i32, i32
  }
  func.func @transform_13(%arg0: i32) -> (i32, i32) {
    %c0_i32 = arith.constant 0 : i32
    %c0_i32_0 = arith.constant 0 : i32
    %c0_i32_1 = arith.constant 0 : i32
    return %c0_i32, %c0_i32_0 : i32, i32
  }
  func.func @transform_14(%arg0: i32) -> (i32, i32) {
    %c0_i32 = arith.constant 0 : i32
    %c0_i32_0 = arith.constant 0 : i32
    %c0_i32_1 = arith.constant 0 : i32
    return %c0_i32, %c0_i32_0 : i32, i32
  }
  func.func @transform_15(%arg0: i32) -> (i32, i32) {
    %c0_i32 = arith.constant 0 : i32
    %c0_i32_0 = arith.constant 0 : i32
    %c0_i32_1 = arith.constant 0 : i32
    return %c0_i32, %c0_i32_0 : i32, i32
  }
  func.func @transform_16(%arg0: i32) -> (i32, i32) {
    %c0_i32 = arith.constant 0 : i32
    %c0_i32_0 = arith.constant 0 : i32
    %c0_i32_1 = arith.constant 0 : i32
    return %c0_i32, %c0_i32_0 : i32, i32
  }
  func.func @transform_17(%arg0: i32) -> (i32, i32) {
    %c0_i32 = arith.constant 0 : i32
    %c0_i32_0 = arith.constant 0 : i32
    %c0_i32_1 = arith.constant 0 : i32
    return %c0_i32, %c0_i32_0 : i32, i32
  }
  func.func @transform_18(%arg0: i32) -> (i32, i32) {
    %c0_i32 = arith.constant 0 : i32
    %c0_i32_0 = arith.constant 0 : i32
    %c0_i32_1 = arith.constant 0 : i32
    return %c0_i32, %c0_i32_0 : i32, i32
  }
  func.func @transform_19(%arg0: i32) -> (i32, i32) {
    %c0_i32 = arith.constant 0 : i32
    %c0_i32_0 = arith.constant 0 : i32
    %c0_i32_1 = arith.constant 0 : i32
    return %c0_i32, %c0_i32_0 : i32, i32
  }
  func.func @transform_20(%arg0: i32) -> (i32, i32) {
    %c0_i32 = arith.constant 0 : i32
    %c0_i32_0 = arith.constant 0 : i32
    %c0_i32_1 = arith.constant 0 : i32
    return %c0_i32, %c0_i32_0 : i32, i32
  }
}

</mosaic_0001>

<llo_original>
// kernel: blstm_cnn_forward.1
$region0: #{blstm_cnn_forward.1}
  #allocation0 [shape = 'u32[]', space=smem, size = 0x4, offset = 0x4, fixed_abs, tag = 'smem constant byte address 0x4 - core index']
  #allocation1 [shape = 'u32[144,128]{1,0:T(1,128)}', space=vmem, size = 0x12000, scoped, tag = 'internal scratch']
  %s0 = inlined_call_operand.vmem [shape: f32[256,150], index: 0, kind: input, shape index: {}]
  %s1 = inlined_call_operand.vmem [shape: f32[256,1], index: 1, kind: input, shape index: {}]
  %s2 = inlined_call_operand.vmem [shape: f32[16,16], index: 2, kind: input, shape index: {}]
  %s3 = inlined_call_operand.vmem [shape: f32[16,1], index: 3, kind: input, shape index: {}]
  %s4 = inlined_call_operand.vmem [shape: f32[16,1], index: 4, kind: input, shape index: {}]
  %s5 = inlined_call_operand.vmem [shape: f32[1,12,1], index: 5, kind: input, shape index: {}]
  %s6 = inlined_call_operand.vmem [shape: f32[150,60], index: 6, kind: input, shape index: {}]
  %s7 = inlined_call_operand.vmem [shape: f32[1,60], index: 7, kind: input, shape index: {}]
  %s8 = inlined_call_operand.vmem [shape: f32[3,60,30], index: 8, kind: input, shape index: {}]
  %s9 = inlined_call_operand.vmem [shape: f32[1,30], index: 9, kind: input, shape index: {}]
  %s10 = inlined_call_operand.vmem [shape: f32[16,256], index: 10, kind: input, shape index: {}]
  %s11 = inlined_call_operand.vmem [shape: f32[30,256], index: 11, kind: input, shape index: {}]
  %s12 = inlined_call_operand.vmem [shape: f32[1,256], index: 12, kind: input, shape index: {}]
  %s13 = inlined_call_operand.vmem [shape: f32[1,256], index: 13, kind: input, shape index: {}]
  %s14 = inlined_call_operand.vmem [shape: f32[32,256], index: 14, kind: input, shape index: {}]
  %s15 = inlined_call_operand.vmem [shape: f32[32,16], index: 15, kind: input, shape index: {}]
  %s16 = inlined_call_operand.vmem [shape: f32[32,16], index: 16, kind: input, shape index: {}]
  %s17 = inlined_call_operand.vmem [shape: f32[1,16], index: 17, kind: input, shape index: {}]
  %s18 = inlined_call_operand.vmem [shape: f32[16,5], index: 18, kind: input, shape index: {}]
  %s19 = inlined_call_operand.vmem [shape: f32[1,5], index: 19, kind: input, shape index: {}]
  %s20 = inlined_call_operand.vmem [shape: f32[16,5], index: 20, kind: output, shape index: {}]
  %s21 = sld [smem:[#allocation0]]
  $region90: #{blstm_cnn_forward.1} parent=0
    _
  %s23 = ssub.s32 1, %s21
  %s24 = scalar_select 0, %s23, %s21
  // Predicated region
  $region2: #{blstm_cnn_forward.1} parent=0 // pred_check
    _
  $region3: #{blstm_cnn_forward.1} parent=0 // pred_check_branch
    %26 = sbr.rel (0) target = $region5
  $region4: #{blstm_cnn_forward.1} parent=0 // pred_region
    _
  $region5: #{blstm_cnn_forward.1} parent=0 // pred_fallthru
    _
  // Predicated region
  $region6: #{blstm_cnn_forward.1} parent=0 // pred_check
    _
  $region7: #{blstm_cnn_forward.1} parent=0 // pred_check_branch
    %28 = sbr.rel (0) target = $region9
  $region8: #{blstm_cnn_forward.1} parent=0 // pred_region
    _
  $region9: #{blstm_cnn_forward.1} parent=0 // pred_fallthru
    _
  // Predicated region
  $region10: #{blstm_cnn_forward.1} parent=0 // pred_check
    _
  $region11: #{blstm_cnn_forward.1} parent=0 // pred_check_branch
    %30 = sbr.rel (0) target = $region13
  $region12: #{blstm_cnn_forward.1} parent=0 // pred_region
    _
  $region13: #{blstm_cnn_forward.1} parent=0 // pred_fallthru
    _
  // Predicated region
  $region14: #{blstm_cnn_forward.1} parent=0 // pred_check
    _
  $region15: #{blstm_cnn_forward.1} parent=0 // pred_check_branch
    %32 = sbr.rel (0) target = $region17
  $region16: #{blstm_cnn_forward.1} parent=0 // pred_region
    _
  $region17: #{blstm_cnn_forward.1} parent=0 // pred_fallthru
    _
  // Predicated region
  $region18: #{blstm_cnn_forward.1} parent=0 // pred_check
    _
  $region19: #{blstm_cnn_forward.1} parent=0 // pred_check_branch
    %34 = sbr.rel (0) target = $region21
  $region20: #{blstm_cnn_forward.1} parent=0 // pred_region
    _
  $region21: #{blstm_cnn_forward.1} parent=0 // pred_fallthru
    _
  // Predicated region
  $region22: #{blstm_cnn_forward.1} parent=0 // pred_check
    _
  $region23: #{blstm_cnn_forward.1} parent=0 // pred_check_branch
    %36 = sbr.rel (0) target = $region25
  $region24: #{blstm_cnn_forward.1} parent=0 // pred_region
    _
  $region25: #{blstm_cnn_forward.1} parent=0 // pred_fallthru
    _
  // Predicated region
  $region26: #{blstm_cnn_forward.1} parent=0 // pred_check
    _
  $region27: #{blstm_cnn_forward.1} parent=0 // pred_check_branch
    %38 = sbr.rel (0) target = $region29
  $region28: #{blstm_cnn_forward.1} parent=0 // pred_region
    _
  $region29: #{blstm_cnn_forward.1} parent=0 // pred_fallthru
    _
  // Predicated region
  $region30: #{blstm_cnn_forward.1} parent=0 // pred_check
    _
  $region31: #{blstm_cnn_forward.1} parent=0 // pred_check_branch
    %40 = sbr.rel (0) target = $region33
  $region32: #{blstm_cnn_forward.1} parent=0 // pred_region
    _
  $region33: #{blstm_cnn_forward.1} parent=0 // pred_fallthru
    _
  // Predicated region
  $region34: #{blstm_cnn_forward.1} parent=0 // pred_check
    _
  $region35: #{blstm_cnn_forward.1} parent=0 // pred_check_branch
    %42 = sbr.rel (0) target = $region37
  $region36: #{blstm_cnn_forward.1} parent=0 // pred_region
    _
  $region37: #{blstm_cnn_forward.1} parent=0 // pred_fallthru
    _
  // Predicated region
  $region38: #{blstm_cnn_forward.1} parent=0 // pred_check
    _
  $region39: #{blstm_cnn_forward.1} parent=0 // pred_check_branch
    %44 = sbr.rel (0) target = $region41
  $region40: #{blstm_cnn_forward.1} parent=0 // pred_region
    _
  $region41: #{blstm_cnn_forward.1} parent=0 // pred_fallthru
    _
  // Predicated region
  $region42: #{blstm_cnn_forward.1} parent=0 // pred_check
    _
  $region43: #{blstm_cnn_forward.1} parent=0 // pred_check_branch
    %46 = sbr.rel (0) target = $region45
  $region44: #{blstm_cnn_forward.1} parent=0 // pred_region
    _
  $region45: #{blstm_cnn_forward.1} parent=0 // pred_fallthru
    _
  // Predicated region
  $region46: #{blstm_cnn_forward.1} parent=0 // pred_check
    _
  $region47: #{blstm_cnn_forward.1} parent=0 // pred_check_branch
    %48 = sbr.rel (0) target = $region49
  $region48: #{blstm_cnn_forward.1} parent=0 // pred_region
    _
  $region49: #{blstm_cnn_forward.1} parent=0 // pred_fallthru
    _
  // Predicated region
  $region50: #{blstm_cnn_forward.1} parent=0 // pred_check
    _
  $region51: #{blstm_cnn_forward.1} parent=0 // pred_check_branch
    %50 = sbr.rel (0) target = $region53
  $region52: #{blstm_cnn_forward.1} parent=0 // pred_region
    _
  $region53: #{blstm_cnn_forward.1} parent=0 // pred_fallthru
    _
  // Predicated region
  $region54: #{blstm_cnn_forward.1} parent=0 // pred_check
    _
  $region55: #{blstm_cnn_forward.1} parent=0 // pred_check_branch
    %52 = sbr.rel (0) target = $region57
  $region56: #{blstm_cnn_forward.1} parent=0 // pred_region
    _
  $region57: #{blstm_cnn_forward.1} parent=0 // pred_fallthru
    _
  // Predicated region
  $region58: #{blstm_cnn_forward.1} parent=0 // pred_check
    _
  $region59: #{blstm_cnn_forward.1} parent=0 // pred_check_branch
    %54 = sbr.rel (0) target = $region61
  $region60: #{blstm_cnn_forward.1} parent=0 // pred_region
    _
  $region61: #{blstm_cnn_forward.1} parent=0 // pred_fallthru
    _
  // Predicated region
  $region62: #{blstm_cnn_forward.1} parent=0 // pred_check
    _
  $region63: #{blstm_cnn_forward.1} parent=0 // pred_check_branch
    %56 = sbr.rel (0) target = $region65
  $region64: #{blstm_cnn_forward.1} parent=0 // pred_region
    _
  $region65: #{blstm_cnn_forward.1} parent=0 // pred_fallthru
    _
  // Predicated region
  $region66: #{blstm_cnn_forward.1} parent=0 // pred_check
    _
  $region67: #{blstm_cnn_forward.1} parent=0 // pred_check_branch
    %58 = sbr.rel (0) target = $region69
  $region68: #{blstm_cnn_forward.1} parent=0 // pred_region
    _
  $region69: #{blstm_cnn_forward.1} parent=0 // pred_fallthru
    _
  // Predicated region
  $region70: #{blstm_cnn_forward.1} parent=0 // pred_check
    _
  $region71: #{blstm_cnn_forward.1} parent=0 // pred_check_branch
    %60 = sbr.rel (0) target = $region73
  $region72: #{blstm_cnn_forward.1} parent=0 // pred_region
    _
  $region73: #{blstm_cnn_forward.1} parent=0 // pred_fallthru
    _
  // Predicated region
  $region74: #{blstm_cnn_forward.1} parent=0 // pred_check
    _
  $region75: #{blstm_cnn_forward.1} parent=0 // pred_check_branch
    %62 = sbr.rel (0) target = $region77
  $region76: #{blstm_cnn_forward.1} parent=0 // pred_region
    _
  $region77: #{blstm_cnn_forward.1} parent=0 // pred_fallthru
    _
  // Predicated region
  $region78: #{blstm_cnn_forward.1} parent=0 // pred_check
    _
  $region79: #{blstm_cnn_forward.1} parent=0 // pred_check_branch
    %64 = sbr.rel (0) target = $region81
  $region80: #{blstm_cnn_forward.1} parent=0 // pred_region
    _
  $region81: #{blstm_cnn_forward.1} parent=0 // pred_fallthru
    _
  %v65 = vld [vmem:[%s0] sm:$0xff]
  %v66 = vld [vmem:[%s0 + $0x8] sm:$0xff]
  %v67 = vld [vmem:[%s0 + $0x10] sm:$0xff]
  %v68 = vld [vmem:[%s0 + $0x18] sm:$0xff]
  %v69 = vld [vmem:[%s0 + $0x20] sm:$0xff]
  %v70 = vld [vmem:[%s0 + $0x28] sm:$0xff]
  %v71 = vld [vmem:[%s0 + $0x30] sm:$0xff]
  %v72 = vld [vmem:[%s0 + $0x38] sm:$0xff]
  %v73 = vld [vmem:[%s0 + $0x40] sm:$0xff]
  %v74 = vld [vmem:[%s0 + $0x48] sm:$0xff]
  %v75 = vld [vmem:[%s0 + $0x50] sm:$0xff]
  %v76 = vld [vmem:[%s0 + $0x58] sm:$0xff]
  %v77 = vld [vmem:[%s0 + $0x60] sm:$0xff]
  %v78 = vld [vmem:[%s0 + $0x68] sm:$0xff]
  %v79 = vld [vmem:[%s0 + $0x70] sm:$0xff]
  %v80 = vld [vmem:[%s0 + $0x78] sm:$0xff]
  %v81 = vld [vmem:[%s0 + $0x80] sm:$0xff]
  %v82 = vld [vmem:[%s0 + $0x88] sm:$0xff]
  %v83 = vld [vmem:[%s0 + $0x90] sm:$0xff]
  %v84 = vld [vmem:[%s0 + $0x98] sm:$0xff]
  %v85 = vld [vmem:[%s0 + $0xa0] sm:$0xff]
  %v86 = vld [vmem:[%s0 + $0xa8] sm:$0xff]
  %v87 = vld [vmem:[%s0 + $0xb0] sm:$0xff]
  %v88 = vld [vmem:[%s0 + $0xb8] sm:$0xff]
  %v89 = vld [vmem:[%s0 + $0xc0] sm:$0xff]
  %v90 = vld [vmem:[%s0 + $0xc8] sm:$0xff]
  %v91 = vld [vmem:[%s0 + $0xd0] sm:$0xff]
  %v92 = vld [vmem:[%s0 + $0xd8] sm:$0xff]
  %v93 = vld [vmem:[%s0 + $0xe0] sm:$0xff]
  %v94 = vld [vmem:[%s0 + $0xe8] sm:$0xff]
  %v95 = vld [vmem:[%s0 + $0xf0] sm:$0xff]
  %v96 = vld [vmem:[%s0 + $0xf8] sm:$0xff]
  %v97 = vld [vmem:[%s0 + $0x100] sm:$0xff]
  %v98 = vld [vmem:[%s0 + $0x108] sm:$0xff]
  %v99 = vld [vmem:[%s0 + $0x110] sm:$0xff]
  %v100 = vld [vmem:[%s0 + $0x118] sm:$0xff]
  %v101 = vld [vmem:[%s0 + $0x120] sm:$0xff]
  %v102 = vld [vmem:[%s0 + $0x128] sm:$0xff]
  %v103 = vld [vmem:[%s0 + $0x130] sm:$0xff]
  %v104 = vld [vmem:[%s0 + $0x138] sm:$0xff]
  %v105 = vld [vmem:[%s0 + $0x140] sm:$0xff]
  %v106 = vld [vmem:[%s0 + $0x148] sm:$0xff]
  %v107 = vld [vmem:[%s0 + $0x150] sm:$0xff]
  %v108 = vld [vmem:[%s0 + $0x158] sm:$0xff]
  %v109 = vld [vmem:[%s0 + $0x160] sm:$0xff]
  %v110 = vld [vmem:[%s0 + $0x168] sm:$0xff]
  %v111 = vld [vmem:[%s0 + $0x170] sm:$0xff]
  %v112 = vld [vmem:[%s0 + $0x178] sm:$0xff]
  %v113 = vld [vmem:[%s0 + $0x180] sm:$0xff]
  %v114 = vld [vmem:[%s0 + $0x188] sm:$0xff]
  %v115 = vld [vmem:[%s0 + $0x190] sm:$0xff]
  %v116 = vld [vmem:[%s0 + $0x198] sm:$0xff]
  %v117 = vld [vmem:[%s0 + $0x1a0] sm:$0xff]
  %v118 = vld [vmem:[%s0 + $0x1a8] sm:$0xff]
  %v119 = vld [vmem:[%s0 + $0x1b0] sm:$0xff]
  %v120 = vld [vmem:[%s0 + $0x1b8] sm:$0xff]
  %v121 = vld [vmem:[%s0 + $0x1c0] sm:$0xff]
  %v122 = vld [vmem:[%s0 + $0x1c8] sm:$0xff]
  %v123 = vld [vmem:[%s0 + $0x1d0] sm:$0xff]
  %v124 = vld [vmem:[%s0 + $0x1d8] sm:$0xff]
  %v125 = vld [vmem:[%s0 + $0x1e0] sm:$0xff]
  %v126 = vld [vmem:[%s0 + $0x1e8] sm:$0xff]
  %v127 = vld [vmem:[%s0 + $0x1f0] sm:$0xff]
  %v128 = vld [vmem:[%s0 + $0x1f8] sm:$0xff]
  %v129 = vld [vmem:[%s6] sm:$0xff]
  %v130 = vld [vmem:[%s6 + $0x8] sm:$0xff]
  %v131 = vld [vmem:[%s6 + $0x10] sm:$0xff]
  %v132 = vld [vmem:[%s6 + $0x18] sm:$0xff]
  %v133 = vld [vmem:[%s6 + $0x20] sm:$0xff]
  %v134 = vld [vmem:[%s6 + $0x28] sm:$0xff]
  %v135 = vld [vmem:[%s6 + $0x30] sm:$0xff]
  %v136 = vld [vmem:[%s6 + $0x38] sm:$0xff]
  %v137 = vld [vmem:[%s6 + $0x40] sm:$0xff]
  %v138 = vld [vmem:[%s6 + $0x48] sm:$0xff]
  %v139 = vld [vmem:[%s6 + $0x50] sm:$0xff]
  %v140 = vld [vmem:[%s6 + $0x58] sm:$0xff]
  %v141 = vld [vmem:[%s6 + $0x60] sm:$0xff]
  %v142 = vld [vmem:[%s6 + $0x68] sm:$0xff]
  %v143 = vld [vmem:[%s6 + $0x70] sm:$0xff]
  %v144 = vld [vmem:[%s6 + $0x78] sm:$0xff]
  %v145 = vld [vmem:[%s6 + $0x80] sm:$0xff]
  %v146 = vld [vmem:[%s6 + $0x88] sm:$0xff]
  %v147 = vld [vmem:[%s6 + $0x90] sm:$0x3f]
  %v148 = vld [vmem:[%s7] sm:$0x1]
  %v150 = vlaneseq
  %v151 = vshrl.u32 %v150, 7
  %v152 = vsub.s32 0, %v151
  %v153 = vrot.slane %v148, %v152
  %vm155 = vcmask 179200
  %v157 = vsel %vm155, %v66, 0
  %v160 = vsel %vm155, %v68, 0
  %v163 = vsel %vm155, %v70, 0
  %v166 = vsel %vm155, %v72, 0
  %v169 = vsel %vm155, %v74, 0
  %v172 = vsel %vm155, %v76, 0
  %v175 = vsel %vm155, %v78, 0
  %v178 = vsel %vm155, %v80, 0
  %v181 = vsel %vm155, %v82, 0
  %v184 = vsel %vm155, %v84, 0
  %v187 = vsel %vm155, %v86, 0
  %v190 = vsel %vm155, %v88, 0
  %v193 = vsel %vm155, %v90, 0
  %v196 = vsel %vm155, %v92, 0
  %v199 = vsel %vm155, %v94, 0
  %v202 = vsel %vm155, %v96, 0
  %v205 = vsel %vm155, %v98, 0
  %v208 = vsel %vm155, %v100, 0
  %v211 = vsel %vm155, %v102, 0
  %v214 = vsel %vm155, %v104, 0
  %v217 = vsel %vm155, %v106, 0
  %v220 = vsel %vm155, %v108, 0
  %v223 = vsel %vm155, %v110, 0
  %v226 = vsel %vm155, %v112, 0
  %v229 = vsel %vm155, %v114, 0
  %v232 = vsel %vm155, %v116, 0
  %v235 = vsel %vm155, %v118, 0
  %v238 = vsel %vm155, %v120, 0
  %v241 = vsel %vm155, %v122, 0
  %v244 = vsel %vm155, %v124, 0
  %v247 = vsel %vm155, %v126, 0
  %v250 = vsel %vm155, %v128, 0
  %vm252 = vcmask 1045504
  %v254 = vsel %vm252, %v147, 0
  %256 = vmatprep.subr.mxu0 0.0
  %257 = vmatpush1.msra.mxu0 %v129
  %258 = vmatprep.subr.mxu0 0.0
  %259 = vmatpush1.msra.mxu0 %v130
  %260 = vmatprep.subr.mxu0 0.0
  %261 = vmatpush1.msra.mxu0 %v131
  %262 = vmatprep.subr.mxu0 0.0
  %263 = vmatpush1.msra.mxu0 %v132
  %264 = vmatprep.subr.mxu0 0.0
  %265 = vmatpush1.msra.mxu0 %v133
  %266 = vmatprep.subr.mxu0 0.0
  %267 = vmatpush1.msra.mxu0 %v134
  %268 = vmatprep.subr.mxu0 0.0
  %269 = vmatpush1.msra.mxu0 %v135
  %270 = vmatprep.subr.mxu0 0.0
  %271 = vmatpush1.msra.mxu0 %v136
  %272 = vmatprep.subr.mxu0 0.0
  %273 = vmatpush1.msra.mxu0 %v137
  %274 = vmatprep.subr.mxu0 0.0
  %275 = vmatpush1.msra.mxu0 %v138
  %276 = vmatprep.subr.mxu0 0.0
  %277 = vmatpush1.msra.mxu0 %v139
  %278 = vmatprep.subr.mxu0 0.0
  %279 = vmatpush1.msra.mxu0 %v140
  %280 = vmatprep.subr.mxu0 0.0
  %281 = vmatpush1.msra.mxu0 %v141
  %282 = vmatprep.subr.mxu0 0.0
  %283 = vmatpush1.msra.mxu0 %v142
  %284 = vmatprep.subr.mxu0 0.0
  %285 = vmatpush1.msra.mxu0 %v143
  %286 = vmatprep.subr.mxu0 0.0
  %287 = vmatpush1.msra.mxu0 %v144
  %288 = vmatprep.subr.mxu0 0.0
  %289 = vmatpush1.msra.mxu0 %v145
  %290 = vmatprep.subr.mxu0 0.0
  %291 = vmatpush1.msra.mxu0 %v146
  %292 = vmatprep.subr.mxu0 0.0
  %293 = vmatpush1.msra.mxu0 %v254
  %294 = vmatprep.subr.mxu0 0.0
  %295 = vmatpush1.msra.mxu0 0.0
  %296 = vmatprep.subr.mxu0 0.0
  %297 = vmatpush1.msra.mxu0 0.0
  %298 = vmatprep.subr.mxu0 0.0
  %299 = vmatpush1.msra.mxu0 0.0
  %300 = vmatprep.subr.mxu0 0.0
  %301 = vmatpush1.msra.mxu0 0.0
  %302 = vmatprep.subr.mxu0 0.0
  %303 = vmatpush1.msra.mxu0 0.0
  %304 = vmatprep.subr.mxu0 0.0
  %305 = vmatpush1.msra.mxu0 0.0
  %306 = vmatprep.subr.mxu0 0.0
  %307 = vmatpush1.msra.mxu0 0.0
  %308 = vmatprep.subr.mxu0 0.0
  %309 = vmatpush1.msra.mxu0 0.0
  %310 = vmatprep.subr.mxu0 0.0
  %311 = vmatpush1.msra.mxu0 0.0
  %312 = vmatprep.subr.mxu0 0.0
  %313 = vmatpush1.msra.mxu0 0.0
  %314 = vmatprep.subr.mxu0 0.0
  %315 = vmatpush1.msra.mxu0 0.0
  %316 = vmatprep.subr.mxu0 0.0
  %317 = vmatpush1.msra.mxu0 0.0
  %318 = vmatprep.subr.mxu0 0.0
  %319 = vmatpush1.msra.mxu0 0.0
  %320 = vmatprep.mubr.f32.mxu0 %v157
  %321 = vmatmul.mubr.f32.gmra.mrb[0].mxu0 %v65
  %v322 = vpop.f32.mrb[0].mxu0
  %v323 = vadd.f32 %v153, %v322
  %v324 = vpop.f32.mrb[0].mxu0
  %325 = vmatprep.mubr.f32.mxu0 %v160
  %326 = vmatmul.mubr.f32.gmra.mrb[0].mxu0 %v67
  %v327 = vpop.f32.mrb[0].mxu0
  %v328 = vadd.f32 %v153, %v327
  %v329 = vpop.f32.mrb[0].mxu0
  %330 = vmatprep.mubr.f32.mxu0 %v163
  %331 = vmatmul.mubr.f32.gmra.mrb[0].mxu0 %v69
  %v332 = vpop.f32.mrb[0].mxu0
  %v333 = vadd.f32 %v153, %v332
  %v334 = vpop.f32.mrb[0].mxu0
  %335 = vmatprep.mubr.f32.mxu0 %v166
  %336 = vmatmul.mubr.f32.gmra.mrb[0].mxu0 %v71
  %v337 = vpop.f32.mrb[0].mxu0
  %v338 = vadd.f32 %v153, %v337
  %v339 = vpop.f32.mrb[0].mxu0
  %340 = vmatprep.mubr.f32.mxu0 %v169
  %341 = vmatmul.mubr.f32.gmra.mrb[0].mxu0 %v73
  %v342 = vpop.f32.mrb[0].mxu0
  %v343 = vadd.f32 %v153, %v342
  %v344 = vpop.f32.mrb[0].mxu0
  %345 = vmatprep.mubr.f32.mxu0 %v172
  %346 = vmatmul.mubr.f32.gmra.mrb[0].mxu0 %v75
  %v347 = vpop.f32.mrb[0].mxu0
  %v348 = vadd.f32 %v153, %v347
  %v349 = vpop.f32.mrb[0].mxu0
  %350 = vmatprep.mubr.f32.mxu0 %v175
  %351 = vmatmul.mubr.f32.gmra.mrb[0].mxu0 %v77
  %v352 = vpop.f32.mrb[0].mxu0
  %v353 = vadd.f32 %v153, %v352
  %v354 = vpop.f32.mrb[0].mxu0
  %355 = vmatprep.mubr.f32.mxu0 %v178
  %356 = vmatmul.mubr.f32.gmra.mrb[0].mxu0 %v79
  %v357 = vpop.f32.mrb[0].mxu0
  %v358 = vadd.f32 %v153, %v357
  %v359 = vpop.f32.mrb[0].mxu0
  %360 = vmatprep.mubr.f32.mxu0 %v181
  %361 = vmatmul.mubr.f32.gmra.mrb[0].mxu0 %v81
  %v362 = vpop.f32.mrb[0].mxu0
  %v363 = vadd.f32 %v153, %v362
  %v364 = vpop.f32.mrb[0].mxu0
  %365 = vmatprep.mubr.f32.mxu0 %v184
  %366 = vmatmul.mubr.f32.gmra.mrb[0].mxu0 %v83
  %v367 = vpop.f32.mrb[0].mxu0
  %v368 = vadd.f32 %v153, %v367
  %v369 = vpop.f32.mrb[0].mxu0
  %370 = vmatprep.mubr.f32.mxu0 %v187
  %371 = vmatmul.mubr.f32.gmra.mrb[0].mxu0 %v85
  %v372 = vpop.f32.mrb[0].mxu0
  %v373 = vadd.f32 %v153, %v372
  %v374 = vpop.f32.mrb[0].mxu0
  %375 = vmatprep.mubr.f32.mxu0 %v190
  %376 = vmatmul.mubr.f32.gmra.mrb[0].mxu0 %v87
  %v377 = vpop.f32.mrb[0].mxu0
  %v378 = vadd.f32 %v153, %v377
  %v379 = vpop.f32.mrb[0].mxu0
  %380 = vmatprep.mubr.f32.mxu0 %v193
  %381 = vmatmul.mubr.f32.gmra.mrb[0].mxu0 %v89
  %v382 = vpop.f32.mrb[0].mxu0
  %v383 = vadd.f32 %v153, %v382
  %v384 = vpop.f32.mrb[0].mxu0
  %385 = vmatprep.mubr.f32.mxu0 %v196
  %386 = vmatmul.mubr.f32.gmra.mrb[0].mxu0 %v91
  %v387 = vpop.f32.mrb[0].mxu0
  %v388 = vadd.f32 %v153, %v387
  %v389 = vpop.f32.mrb[0].mxu0
  %390 = vmatprep.mubr.f32.mxu0 %v199
  %391 = vmatmul.mubr.f32.gmra.mrb[0].mxu0 %v93
  %v392 = vpop.f32.mrb[0].mxu0
  %v393 = vadd.f32 %v153, %v392
  %v394 = vpop.f32.mrb[0].mxu0
  %395 = vmatprep.mubr.f32.mxu0 %v202
  %396 = vmatmul.mubr.f32.gmra.mrb[0].mxu0 %v95
  %v397 = vpop.f32.mrb[0].mxu0
  %v398 = vadd.f32 %v153, %v397
  %v399 = vpop.f32.mrb[0].mxu0
  %400 = vmatprep.mubr.f32.mxu0 %v205
  %401 = vmatmul.mubr.f32.gmra.mrb[0].mxu0 %v97
  %v402 = vpop.f32.mrb[0].mxu0
  %v403 = vadd.f32 %v153, %v402
  %v404 = vpop.f32.mrb[0].mxu0
  %405 = vmatprep.mubr.f32.mxu0 %v208
  %406 = vmatmul.mubr.f32.gmra.mrb[0].mxu0 %v99
  %v407 = vpop.f32.mrb[0].mxu0
  %v408 = vadd.f32 %v153, %v407
  %v409 = vpop.f32.mrb[0].mxu0
  %410 = vmatprep.mubr.f32.mxu0 %v211
  %411 = vmatmul.mubr.f32.gmra.mrb[0].mxu0 %v101
  %v412 = vpop.f32.mrb[0].mxu0
  %v413 = vadd.f32 %v153, %v412
  %v414 = vpop.f32.mrb[0].mxu0
  %415 = vmatprep.mubr.f32.mxu0 %v214
  %416 = vmatmul.mubr.f32.gmra.mrb[0].mxu0 %v103
  %v417 = vpop.f32.mrb[0].mxu0
  %v418 = vadd.f32 %v153, %v417
  %v419 = vpop.f32.mrb[0].mxu0
  %420 = vmatprep.mubr.f32.mxu0 %v217
  %421 = vmatmul.mubr.f32.gmra.mrb[0].mxu0 %v105
  %v422 = vpop.f32.mrb[0].mxu0
  %v423 = vadd.f32 %v153, %v422
  %v424 = vpop.f32.mrb[0].mxu0
  %425 = vmatprep.mubr.f32.mxu0 %v220
  %426 = vmatmul.mubr.f32.gmra.mrb[0].mxu0 %v107
  %v427 = vpop.f32.mrb[0].mxu0
  %v428 = vadd.f32 %v153, %v427
  %v429 = vpop.f32.mrb[0].mxu0
  %430 = vmatprep.mubr.f32.mxu0 %v223
  %431 = vmatmul.mubr.f32.gmra.mrb[0].mxu0 %v109
  %v432 = vpop.f32.mrb[0].mxu0
  %v433 = vadd.f32 %v153, %v432
  %v434 = vpop.f32.mrb[0].mxu0
  %435 = vmatprep.mubr.f32.mxu0 %v226
  %436 = vmatmul.mubr.f32.gmra.mrb[0].mxu0 %v111
  %v437 = vpop.f32.mrb[0].mxu0
  %v438 = vadd.f32 %v153, %v437
  %v439 = vpop.f32.mrb[0].mxu0
  %440 = vmatprep.mubr.f32.mxu0 %v229
  %441 = vmatmul.mubr.f32.gmra.mrb[0].mxu0 %v113
  %v442 = vpop.f32.mrb[0].mxu0
  %v443 = vadd.f32 %v153, %v442
  %v444 = vpop.f32.mrb[0].mxu0
  %445 = vmatprep.mubr.f32.mxu0 %v232
  %446 = vmatmul.mubr.f32.gmra.mrb[0].mxu0 %v115
  %v447 = vpop.f32.mrb[0].mxu0
  %v448 = vadd.f32 %v153, %v447
  %v449 = vpop.f32.mrb[0].mxu0
  %450 = vmatprep.mubr.f32.mxu0 %v235
  %451 = vmatmul.mubr.f32.gmra.mrb[0].mxu0 %v117
  %v452 = vpop.f32.mrb[0].mxu0
  %v453 = vadd.f32 %v153, %v452
  %v454 = vpop.f32.mrb[0].mxu0
  %455 = vmatprep.mubr.f32.mxu0 %v238
  %456 = vmatmul.mubr.f32.gmra.mrb[0].mxu0 %v119
  %v457 = vpop.f32.mrb[0].mxu0
  %v458 = vadd.f32 %v153, %v457
  %v459 = vpop.f32.mrb[0].mxu0
  %460 = vmatprep.mubr.f32.mxu0 %v241
  %461 = vmatmul.mubr.f32.gmra.mrb[0].mxu0 %v121
  %v462 = vpop.f32.mrb[0].mxu0
  %v463 = vadd.f32 %v153, %v462
  %v464 = vpop.f32.mrb[0].mxu0
  %465 = vmatprep.mubr.f32.mxu0 %v244
  %466 = vmatmul.mubr.f32.gmra.mrb[0].mxu0 %v123
  %v467 = vpop.f32.mrb[0].mxu0
  %v468 = vadd.f32 %v153, %v467
  %v469 = vpop.f32.mrb[0].mxu0
  %470 = vmatprep.mubr.f32.mxu0 %v247
  %471 = vmatmul.mubr.f32.gmra.mrb[0].mxu0 %v125
  %v472 = vpop.f32.mrb[0].mxu0
  %v473 = vadd.f32 %v153, %v472
  %v474 = vpop.f32.mrb[0].mxu0
  %475 = vmatprep.mubr.f32.mxu0 %v250
  %476 = vmatmul.mubr.f32.gmra.mrb[0].mxu0 %v127
  %v477 = vpop.f32.mrb[0].mxu0
  %v478 = vadd.f32 %v153, %v477
  %v479 = vpop.f32.mrb[0].mxu0
  %480 = vdwg.mxu0
  %v481 = vmax.f32 %v323, 0.0
  %v482 = vmax.f32 %v328, 0.0
  %v483 = vmax.f32 %v333, 0.0
  %v484 = vmax.f32 %v338, 0.0
  %v485 = vmax.f32 %v343, 0.0
  %v486 = vmax.f32 %v348, 0.0
  %v487 = vmax.f32 %v353, 0.0
  %v488 = vmax.f32 %v358, 0.0
  %v489 = vmax.f32 %v363, 0.0
  %v490 = vmax.f32 %v368, 0.0
  %v491 = vmax.f32 %v373, 0.0
  %v492 = vmax.f32 %v378, 0.0
  %v493 = vmax.f32 %v383, 0.0
  %v494 = vmax.f32 %v388, 0.0
  %v495 = vmax.f32 %v393, 0.0
  %v496 = vmax.f32 %v398, 0.0
  %v497 = vmax.f32 %v403, 0.0
  %v498 = vmax.f32 %v408, 0.0
  %v499 = vmax.f32 %v413, 0.0
  %v500 = vmax.f32 %v418, 0.0
  %v501 = vmax.f32 %v423, 0.0
  %v502 = vmax.f32 %v428, 0.0
  %v503 = vmax.f32 %v433, 0.0
  %v504 = vmax.f32 %v438, 0.0
  %v505 = vmax.f32 %v443, 0.0
  %v506 = vmax.f32 %v448, 0.0
  %v507 = vmax.f32 %v453, 0.0
  %v508 = vmax.f32 %v458, 0.0
  %v509 = vmax.f32 %v463, 0.0
  %v510 = vmax.f32 %v468, 0.0
  %v511 = vmax.f32 %v473, 0.0
  %v512 = vmax.f32 %v478, 0.0
  %v513 = vld [vmem:[%s1] sm:$0xff]
  %v514 = vld [vmem:[%s1 + $0x8] sm:$0xff]
  %v515 = vld [vmem:[%s1 + $0x10] sm:$0xff]
  %v516 = vld [vmem:[%s1 + $0x18] sm:$0xff]
  %v517 = vld [vmem:[%s1 + $0x20] sm:$0xff]
  %v518 = vld [vmem:[%s1 + $0x28] sm:$0xff]
  %v519 = vld [vmem:[%s1 + $0x30] sm:$0xff]
  %v520 = vld [vmem:[%s1 + $0x38] sm:$0xff]
  %v521 = vld [vmem:[%s1 + $0x40] sm:$0xff]
  %v522 = vld [vmem:[%s1 + $0x48] sm:$0xff]
  %v523 = vld [vmem:[%s1 + $0x50] sm:$0xff]
  %v524 = vld [vmem:[%s1 + $0x58] sm:$0xff]
  %v525 = vld [vmem:[%s1 + $0x60] sm:$0xff]
  %v526 = vld [vmem:[%s1 + $0x68] sm:$0xff]
  %v527 = vld [vmem:[%s1 + $0x70] sm:$0xff]
  %v528 = vld [vmem:[%s1 + $0x78] sm:$0xff]
  %v529 = vld [vmem:[%s1 + $0x80] sm:$0xff]
  %v530 = vld [vmem:[%s1 + $0x88] sm:$0xff]
  %v531 = vld [vmem:[%s1 + $0x90] sm:$0xff]
  %v532 = vld [vmem:[%s1 + $0x98] sm:$0xff]
  %v533 = vld [vmem:[%s1 + $0xa0] sm:$0xff]
  %v534 = vld [vmem:[%s1 + $0xa8] sm:$0xff]
  %v535 = vld [vmem:[%s1 + $0xb0] sm:$0xff]
  %v536 = vld [vmem:[%s1 + $0xb8] sm:$0xff]
  %v537 = vld [vmem:[%s1 + $0xc0] sm:$0xff]
  %v538 = vld [vmem:[%s1 + $0xc8] sm:$0xff]
  %v539 = vld [vmem:[%s1 + $0xd0] sm:$0xff]
  %v540 = vld [vmem:[%s1 + $0xd8] sm:$0xff]
  %v541 = vld [vmem:[%s1 + $0xe0] sm:$0xff]
  %v542 = vld [vmem:[%s1 + $0xe8] sm:$0xff]
  %v543 = vld [vmem:[%s1 + $0xf0] sm:$0xff]
  %v544 = vld [vmem:[%s1 + $0xf8] sm:$0xff]
  %546 = vset.pattern.permute.xlu0 0
  %547 = vperm.xlu0 %546, %v513
  %v548 = vpop.permute.xlu0 %547
  %551 = vset.pattern.permute.xlu0 0
  %552 = vperm.xlu0 %551, %v514
  %v553 = vpop.permute.xlu0 %552
  %556 = vset.pattern.permute.xlu0 0
  %557 = vperm.xlu0 %556, %v515
  %v558 = vpop.permute.xlu0 %557
  %561 = vset.pattern.permute.xlu0 0
  %562 = vperm.xlu0 %561, %v516
  %v563 = vpop.permute.xlu0 %562
  %566 = vset.pattern.permute.xlu0 0
  %567 = vperm.xlu0 %566, %v517
  %v568 = vpop.permute.xlu0 %567
  %571 = vset.pattern.permute.xlu0 0
  %572 = vperm.xlu0 %571, %v518
  %v573 = vpop.permute.xlu0 %572
  %576 = vset.pattern.permute.xlu0 0
  %577 = vperm.xlu0 %576, %v519
  %v578 = vpop.permute.xlu0 %577
  %581 = vset.pattern.permute.xlu0 0
  %582 = vperm.xlu0 %581, %v520
  %v583 = vpop.permute.xlu0 %582
  %586 = vset.pattern.permute.xlu0 0
  %587 = vperm.xlu0 %586, %v521
  %v588 = vpop.permute.xlu0 %587
  %591 = vset.pattern.permute.xlu0 0
  %592 = vperm.xlu0 %591, %v522
  %v593 = vpop.permute.xlu0 %592
  %596 = vset.pattern.permute.xlu0 0
  %597 = vperm.xlu0 %596, %v523
  %v598 = vpop.permute.xlu0 %597
  %601 = vset.pattern.permute.xlu0 0
  %602 = vperm.xlu0 %601, %v524
  %v603 = vpop.permute.xlu0 %602
  %606 = vset.pattern.permute.xlu0 0
  %607 = vperm.xlu0 %606, %v525
  %v608 = vpop.permute.xlu0 %607
  %611 = vset.pattern.permute.xlu0 0
  %612 = vperm.xlu0 %611, %v526
  %v613 = vpop.permute.xlu0 %612
  %616 = vset.pattern.permute.xlu0 0
  %617 = vperm.xlu0 %616, %v527
  %v618 = vpop.permute.xlu0 %617
  %621 = vset.pattern.permute.xlu0 0
  %622 = vperm.xlu0 %621, %v528
  %v623 = vpop.permute.xlu0 %622
  %626 = vset.pattern.permute.xlu0 0
  %627 = vperm.xlu0 %626, %v529
  %v628 = vpop.permute.xlu0 %627
  %631 = vset.pattern.permute.xlu0 0
  %632 = vperm.xlu0 %631, %v530
  %v633 = vpop.permute.xlu0 %632
  %636 = vset.pattern.permute.xlu0 0
  %637 = vperm.xlu0 %636, %v531
  %v638 = vpop.permute.xlu0 %637
  %641 = vset.pattern.permute.xlu0 0
  %642 = vperm.xlu0 %641, %v532
  %v643 = vpop.permute.xlu0 %642
  %646 = vset.pattern.permute.xlu0 0
  %647 = vperm.xlu0 %646, %v533
  %v648 = vpop.permute.xlu0 %647
  %651 = vset.pattern.permute.xlu0 0
  %652 = vperm.xlu0 %651, %v534
  %v653 = vpop.permute.xlu0 %652
  %656 = vset.pattern.permute.xlu0 0
  %657 = vperm.xlu0 %656, %v535
  %v658 = vpop.permute.xlu0 %657
  %661 = vset.pattern.permute.xlu0 0
  %662 = vperm.xlu0 %661, %v536
  %v663 = vpop.permute.xlu0 %662
  %666 = vset.pattern.permute.xlu0 0
  %667 = vperm.xlu0 %666, %v537
  %v668 = vpop.permute.xlu0 %667
  %671 = vset.pattern.permute.xlu0 0
  %672 = vperm.xlu0 %671, %v538
  %v673 = vpop.permute.xlu0 %672
  %676 = vset.pattern.permute.xlu0 0
  %677 = vperm.xlu0 %676, %v539
  %v678 = vpop.permute.xlu0 %677
  %681 = vset.pattern.permute.xlu0 0
  %682 = vperm.xlu0 %681, %v540
  %v683 = vpop.permute.xlu0 %682
  %686 = vset.pattern.permute.xlu0 0
  %687 = vperm.xlu0 %686, %v541
  %v688 = vpop.permute.xlu0 %687
  %691 = vset.pattern.permute.xlu0 0
  %692 = vperm.xlu0 %691, %v542
  %v693 = vpop.permute.xlu0 %692
  %696 = vset.pattern.permute.xlu0 0
  %697 = vperm.xlu0 %696, %v543
  %v698 = vpop.permute.xlu0 %697
  %701 = vset.pattern.permute.xlu0 0
  %702 = vperm.xlu0 %701, %v544
  %v703 = vpop.permute.xlu0 %702
  %v705 = vmul.f32 %v481, %v548
  %v706 = vmul.f32 %v482, %v553
  %v707 = vmul.f32 %v483, %v558
  %v708 = vmul.f32 %v484, %v563
  %v709 = vmul.f32 %v485, %v568
  %v710 = vmul.f32 %v486, %v573
  %v711 = vmul.f32 %v487, %v578
  %v712 = vmul.f32 %v488, %v583
  %v713 = vmul.f32 %v489, %v588
  %v714 = vmul.f32 %v490, %v593
  %v715 = vmul.f32 %v491, %v598
  %v716 = vmul.f32 %v492, %v603
  %v717 = vmul.f32 %v493, %v608
  %v718 = vmul.f32 %v494, %v613
  %v719 = vmul.f32 %v495, %v618
  %v720 = vmul.f32 %v496, %v623
  %v721 = vmul.f32 %v497, %v628
  %v722 = vmul.f32 %v498, %v633
  %v723 = vmul.f32 %v499, %v638
  %v724 = vmul.f32 %v500, %v643
  %v725 = vmul.f32 %v501, %v648
  %v726 = vmul.f32 %v502, %v653
  %v727 = vmul.f32 %v503, %v658
  %v728 = vmul.f32 %v504, %v663
  %v729 = vmul.f32 %v505, %v668
  %v730 = vmul.f32 %v506, %v673
  %v731 = vmul.f32 %v507, %v678
  %v732 = vmul.f32 %v508, %v683
  %v733 = vmul.f32 %v509, %v688
  %v734 = vmul.f32 %v510, %v693
  %v735 = vmul.f32 %v511, %v698
  %v736 = vmul.f32 %v512, %v703
  %vm769 = vcmask 1046528
  %v770 = vrot.slane %v705, 1
  %v771 = vrot.slane %v706, 1
  %v772 = vsel %vm769, %v770, %v771
  %v773 = vrot.slane %v707, 1
  %v774 = vrot.slane %v708, 1
  %v775 = vsel %vm769, %v773, %v774
  %v776 = vrot.slane %v709, 1
  %v777 = vrot.slane %v710, 1
  %v778 = vsel %vm769, %v776, %v777
  %v779 = vrot.slane %v711, 1
  %v780 = vrot.slane %v712, 1
  %v781 = vsel %vm769, %v779, %v780
  %v782 = vrot.slane %v713, 1
  %v783 = vrot.slane %v714, 1
  %v784 = vsel %vm769, %v782, %v783
  %v785 = vrot.slane %v715, 1
  %v786 = vrot.slane %v716, 1
  %v787 = vsel %vm769, %v785, %v786
  %v788 = vrot.slane %v717, 1
  %v789 = vrot.slane %v718, 1
  %v790 = vsel %vm769, %v788, %v789
  %v791 = vrot.slane %v719, 1
  %v792 = vrot.slane %v720, 1
  %v793 = vsel %vm769, %v791, %v792
  %v794 = vrot.slane %v721, 1
  %v795 = vrot.slane %v722, 1
  %v796 = vsel %vm769, %v794, %v795
  %v797 = vrot.slane %v723, 1
  %v798 = vrot.slane %v724, 1
  %v799 = vsel %vm769, %v797, %v798
  %v800 = vrot.slane %v725, 1
  %v801 = vrot.slane %v726, 1
  %v802 = vsel %vm769, %v800, %v801
  %v803 = vrot.slane %v727, 1
  %v804 = vrot.slane %v728, 1
  %v805 = vsel %vm769, %v803, %v804
  %v806 = vrot.slane %v729, 1
  %v807 = vrot.slane %v730, 1
  %v808 = vsel %vm769, %v806, %v807
  %v809 = vrot.slane %v731, 1
  %v810 = vrot.slane %v732, 1
  %v811 = vsel %vm769, %v809, %v810
  %v812 = vrot.slane %v733, 1
  %v813 = vrot.slane %v734, 1
  %v814 = vsel %vm769, %v812, %v813
  %v815 = vrot.slane %v735, 1
  %v816 = vrot.slane %v736, 1
  %v817 = vsel %vm769, %v815, %v816
  %v850 = vmax.f32 %v705, %v772
  %v851 = vmax.f32 %v706, %v771
  %v852 = vmax.f32 %v707, %v775
  %v853 = vmax.f32 %v708, %v774
  %v854 = vmax.f32 %v709, %v778
  %v855 = vmax.f32 %v710, %v777
  %v856 = vmax.f32 %v711, %v781
  %v857 = vmax.f32 %v712, %v780
  %v858 = vmax.f32 %v713, %v784
  %v859 = vmax.f32 %v714, %v783
  %v860 = vmax.f32 %v715, %v787
  %v861 = vmax.f32 %v716, %v786
  %v862 = vmax.f32 %v717, %v790
  %v863 = vmax.f32 %v718, %v789
  %v864 = vmax.f32 %v719, %v793
  %v865 = vmax.f32 %v720, %v792
  %v866 = vmax.f32 %v721, %v796
  %v867 = vmax.f32 %v722, %v795
  %v868 = vmax.f32 %v723, %v799
  %v869 = vmax.f32 %v724, %v798
  %v870 = vmax.f32 %v725, %v802
  %v871 = vmax.f32 %v726, %v801
  %v872 = vmax.f32 %v727, %v805
  %v873 = vmax.f32 %v728, %v804
  %v874 = vmax.f32 %v729, %v808
  %v875 = vmax.f32 %v730, %v807
  %v876 = vmax.f32 %v731, %v811
  %v877 = vmax.f32 %v732, %v810
  %v878 = vmax.f32 %v733, %v814
  %v879 = vmax.f32 %v734, %v813
  %v880 = vmax.f32 %v735, %v817
  %v881 = vmax.f32 %v736, %v816
  %v882 = vrot.slane %v705, 2
  %v883 = vrot.slane %v706, 2
  %v884 = vsel %vm252, %v882, %v883
  %v885 = vrot.slane %v707, 2
  %v886 = vrot.slane %v708, 2
  %v887 = vsel %vm252, %v885, %v886
  %v888 = vrot.slane %v709, 2
  %v889 = vrot.slane %v710, 2
  %v890 = vsel %vm252, %v888, %v889
  %v891 = vrot.slane %v711, 2
  %v892 = vrot.slane %v712, 2
  %v893 = vsel %vm252, %v891, %v892
  %v894 = vrot.slane %v713, 2
  %v895 = vrot.slane %v714, 2
  %v896 = vsel %vm252, %v894, %v895
  %v897 = vrot.slane %v715, 2
  %v898 = vrot.slane %v716, 2
  %v899 = vsel %vm252, %v897, %v898
  %v900 = vrot.slane %v717, 2
  %v901 = vrot.slane %v718, 2
  %v902 = vsel %vm252, %v900, %v901
  %v903 = vrot.slane %v719, 2
  %v904 = vrot.slane %v720, 2
  %v905 = vsel %vm252, %v903, %v904
  %v906 = vrot.slane %v721, 2
  %v907 = vrot.slane %v722, 2
  %v908 = vsel %vm252, %v906, %v907
  %v909 = vrot.slane %v723, 2
  %v910 = vrot.slane %v724, 2
  %v911 = vsel %vm252, %v909, %v910
  %v912 = vrot.slane %v725, 2
  %v913 = vrot.slane %v726, 2
  %v914 = vsel %vm252, %v912, %v913
  %v915 = vrot.slane %v727, 2
  %v916 = vrot.slane %v728, 2
  %v917 = vsel %vm252, %v915, %v916
  %v918 = vrot.slane %v729, 2
  %v919 = vrot.slane %v730, 2
  %v920 = vsel %vm252, %v918, %v919
  %v921 = vrot.slane %v731, 2
  %v922 = vrot.slane %v732, 2
  %v923 = vsel %vm252, %v921, %v922
  %v924 = vrot.slane %v733, 2
  %v925 = vrot.slane %v734, 2
  %v926 = vsel %vm252, %v924, %v925
  %v927 = vrot.slane %v735, 2
  %v928 = vrot.slane %v736, 2
  %v929 = vsel %vm252, %v927, %v928
  %v962 = vmax.f32 %v850, %v884
  %v963 = vmax.f32 %v851, %v883
  %v964 = vmax.f32 %v852, %v887
  %v965 = vmax.f32 %v853, %v886
  %v966 = vmax.f32 %v854, %v890
  %v967 = vmax.f32 %v855, %v889
  %v968 = vmax.f32 %v856, %v893
  %v969 = vmax.f32 %v857, %v892
  %v970 = vmax.f32 %v858, %v896
  %v971 = vmax.f32 %v859, %v895
  %v972 = vmax.f32 %v860, %v899
  %v973 = vmax.f32 %v861, %v898
  %v974 = vmax.f32 %v862, %v902
  %v975 = vmax.f32 %v863, %v901
  %v976 = vmax.f32 %v864, %v905
  %v977 = vmax.f32 %v865, %v904
  %v978 = vmax.f32 %v866, %v908
  %v979 = vmax.f32 %v867, %v907
  %v980 = vmax.f32 %v868, %v911
  %v981 = vmax.f32 %v869, %v910
  %v982 = vmax.f32 %v870, %v914
  %v983 = vmax.f32 %v871, %v913
  %v984 = vmax.f32 %v872, %v917
  %v985 = vmax.f32 %v873, %v916
  %v986 = vmax.f32 %v874, %v920
  %v987 = vmax.f32 %v875, %v919
  %v988 = vmax.f32 %v876, %v923
  %v989 = vmax.f32 %v877, %v922
  %v990 = vmax.f32 %v878, %v926
  %v991 = vmax.f32 %v879, %v925
  %v992 = vmax.f32 %v880, %v929
  %v993 = vmax.f32 %v881, %v928
  %vm994 = vcmask 1044480
  %v995 = vrot.slane %v705, 3
  %v996 = vrot.slane %v706, 3
  %v997 = vsel %vm994, %v995, %v996
  %v998 = vrot.slane %v707, 3
  %v999 = vrot.slane %v708, 3
  %v1000 = vsel %vm994, %v998, %v999
  %v1001 = vrot.slane %v709, 3
  %v1002 = vrot.slane %v710, 3
  %v1003 = vsel %vm994, %v1001, %v1002
  %v1004 = vrot.slane %v711, 3
  %v1005 = vrot.slane %v712, 3
  %v1006 = vsel %vm994, %v1004, %v1005
  %v1007 = vrot.slane %v713, 3
  %v1008 = vrot.slane %v714, 3
  %v1009 = vsel %vm994, %v1007, %v1008
  %v1010 = vrot.slane %v715, 3
  %v1011 = vrot.slane %v716, 3
  %v1012 = vsel %vm994, %v1010, %v1011
  %v1013 = vrot.slane %v717, 3
  %v1014 = vrot.slane %v718, 3
  %v1015 = vsel %vm994, %v1013, %v1014
  %v1016 = vrot.slane %v719, 3
  %v1017 = vrot.slane %v720, 3
  %v1018 = vsel %vm994, %v1016, %v1017
  %v1019 = vrot.slane %v721, 3
  %v1020 = vrot.slane %v722, 3
  %v1021 = vsel %vm994, %v1019, %v1020
  %v1022 = vrot.slane %v723, 3
  %v1023 = vrot.slane %v724, 3
  %v1024 = vsel %vm994, %v1022, %v1023
  %v1025 = vrot.slane %v725, 3
  %v1026 = vrot.slane %v726, 3
  %v1027 = vsel %vm994, %v1025, %v1026
  %v1028 = vrot.slane %v727, 3
  %v1029 = vrot.slane %v728, 3
  %v1030 = vsel %vm994, %v1028, %v1029
  %v1031 = vrot.slane %v729, 3
  %v1032 = vrot.slane %v730, 3
  %v1033 = vsel %vm994, %v1031, %v1032
  %v1034 = vrot.slane %v731, 3
  %v1035 = vrot.slane %v732, 3
  %v1036 = vsel %vm994, %v1034, %v1035
  %v1037 = vrot.slane %v733, 3
  %v1038 = vrot.slane %v734, 3
  %v1039 = vsel %vm994, %v1037, %v1038
  %v1040 = vrot.slane %v735, 3
  %v1041 = vrot.slane %v736, 3
  %v1042 = vsel %vm994, %v1040, %v1041
  %v1075 = vmax.f32 %v962, %v997
  %v1076 = vmax.f32 %v963, %v996
  %v1077 = vmax.f32 %v964, %v1000
  %v1078 = vmax.f32 %v965, %v999
  %v1079 = vmax.f32 %v966, %v1003
  %v1080 = vmax.f32 %v967, %v1002
  %v1081 = vmax.f32 %v968, %v1006
  %v1082 = vmax.f32 %v969, %v1005
  %v1083 = vmax.f32 %v970, %v1009
  %v1084 = vmax.f32 %v971, %v1008
  %v1085 = vmax.f32 %v972, %v1012
  %v1086 = vmax.f32 %v973, %v1011
  %v1087 = vmax.f32 %v974, %v1015
  %v1088 = vmax.f32 %v975, %v1014
  %v1089 = vmax.f32 %v976, %v1018
  %v1090 = vmax.f32 %v977, %v1017
  %v1091 = vmax.f32 %v978, %v1021
  %v1092 = vmax.f32 %v979, %v1020
  %v1093 = vmax.f32 %v980, %v1024
  %v1094 = vmax.f32 %v981, %v1023
  %v1095 = vmax.f32 %v982, %v1027
  %v1096 = vmax.f32 %v983, %v1026
  %v1097 = vmax.f32 %v984, %v1030
  %v1098 = vmax.f32 %v985, %v1029
  %v1099 = vmax.f32 %v986, %v1033
  %v1100 = vmax.f32 %v987, %v1032
  %v1101 = vmax.f32 %v988, %v1036
  %v1102 = vmax.f32 %v989, %v1035
  %v1103 = vmax.f32 %v990, %v1039
  %v1104 = vmax.f32 %v991, %v1038
  %v1105 = vmax.f32 %v992, %v1042
  %v1106 = vmax.f32 %v993, %v1041
  %vm1107 = vcmask 1043456
  %v1108 = vrot.slane %v705, 4
  %v1109 = vrot.slane %v706, 4
  %v1110 = vsel %vm1107, %v1108, %v1109
  %v1111 = vrot.slane %v707, 4
  %v1112 = vrot.slane %v708, 4
  %v1113 = vsel %vm1107, %v1111, %v1112
  %v1114 = vrot.slane %v709, 4
  %v1115 = vrot.slane %v710, 4
  %v1116 = vsel %vm1107, %v1114, %v1115
  %v1117 = vrot.slane %v711, 4
  %v1118 = vrot.slane %v712, 4
  %v1119 = vsel %vm1107, %v1117, %v1118
  %v1120 = vrot.slane %v713, 4
  %v1121 = vrot.slane %v714, 4
  %v1122 = vsel %vm1107, %v1120, %v1121
  %v1123 = vrot.slane %v715, 4
  %v1124 = vrot.slane %v716, 4
  %v1125 = vsel %vm1107, %v1123, %v1124
  %v1126 = vrot.slane %v717, 4
  %v1127 = vrot.slane %v718, 4
  %v1128 = vsel %vm1107, %v1126, %v1127
  %v1129 = vrot.slane %v719, 4
  %v1130 = vrot.slane %v720, 4
  %v1131 = vsel %vm1107, %v1129, %v1130
  %v1132 = vrot.slane %v721, 4
  %v1133 = vrot.slane %v722, 4
  %v1134 = vsel %vm1107, %v1132, %v1133
  %v1135 = vrot.slane %v723, 4
  %v1136 = vrot.slane %v724, 4
  %v1137 = vsel %vm1107, %v1135, %v1136
  %v1138 = vrot.slane %v725, 4
  %v1139 = vrot.slane %v726, 4
  %v1140 = vsel %vm1107, %v1138, %v1139
  %v1141 = vrot.slane %v727, 4
  %v1142 = vrot.slane %v728, 4
  %v1143 = vsel %vm1107, %v1141, %v1142
  %v1144 = vrot.slane %v729, 4
  %v1145 = vrot.slane %v730, 4
  %v1146 = vsel %vm1107, %v1144, %v1145
  %v1147 = vrot.slane %v731, 4
  %v1148 = vrot.slane %v732, 4
  %v1149 = vsel %vm1107, %v1147, %v1148
  %v1150 = vrot.slane %v733, 4
  %v1151 = vrot.slane %v734, 4
  %v1152 = vsel %vm1107, %v1150, %v1151
  %v1153 = vrot.slane %v735, 4
  %v1154 = vrot.slane %v736, 4
  %v1155 = vsel %vm1107, %v1153, %v1154
  %v1188 = vmax.f32 %v1075, %v1110
  %v1189 = vmax.f32 %v1076, %v1109
  %v1190 = vmax.f32 %v1077, %v1113
  %v1191 = vmax.f32 %v1078, %v1112
  %v1192 = vmax.f32 %v1079, %v1116
  %v1193 = vmax.f32 %v1080, %v1115
  %v1194 = vmax.f32 %v1081, %v1119
  %v1195 = vmax.f32 %v1082, %v1118
  %v1196 = vmax.f32 %v1083, %v1122
  %v1197 = vmax.f32 %v1084, %v1121
  %v1198 = vmax.f32 %v1085, %v1125
  %v1199 = vmax.f32 %v1086, %v1124
  %v1200 = vmax.f32 %v1087, %v1128
  %v1201 = vmax.f32 %v1088, %v1127
  %v1202 = vmax.f32 %v1089, %v1131
  %v1203 = vmax.f32 %v1090, %v1130
  %v1204 = vmax.f32 %v1091, %v1134
  %v1205 = vmax.f32 %v1092, %v1133
  %v1206 = vmax.f32 %v1093, %v1137
  %v1207 = vmax.f32 %v1094, %v1136
  %v1208 = vmax.f32 %v1095, %v1140
  %v1209 = vmax.f32 %v1096, %v1139
  %v1210 = vmax.f32 %v1097, %v1143
  %v1211 = vmax.f32 %v1098, %v1142
  %v1212 = vmax.f32 %v1099, %v1146
  %v1213 = vmax.f32 %v1100, %v1145
  %v1214 = vmax.f32 %v1101, %v1149
  %v1215 = vmax.f32 %v1102, %v1148
  %v1216 = vmax.f32 %v1103, %v1152
  %v1217 = vmax.f32 %v1104, %v1151
  %v1218 = vmax.f32 %v1105, %v1155
  %v1219 = vmax.f32 %v1106, %v1154
  %v1220 = vld [vmem:[%s5] sm:$0xff]
  %v1221 = vld [vmem:[%s5 + $0x8] sm:$0xf]
  %1223 = vset.pattern.permute.xlu0 0
  %1224 = vperm.xlu0 %1223, %v1220
  %v1225 = vpop.permute.xlu0 %1224
  %1228 = vset.pattern.permute.xlu0 0
  %1229 = vperm.xlu0 %1228, %v1221
  %v1230 = vpop.permute.xlu0 %1229
  %v1232 = vmul.f32 %v1188, %v1225
  %v1233 = vmul.f32 %v1189, %v1230
  %v1234 = vmul.f32 %v1190, %v1225
  %v1235 = vmul.f32 %v1191, %v1230
  %v1236 = vmul.f32 %v1192, %v1225
  %v1237 = vmul.f32 %v1193, %v1230
  %v1238 = vmul.f32 %v1194, %v1225
  %v1239 = vmul.f32 %v1195, %v1230
  %v1240 = vmul.f32 %v1196, %v1225
  %v1241 = vmul.f32 %v1197, %v1230
  %v1242 = vmul.f32 %v1198, %v1225
  %v1243 = vmul.f32 %v1199, %v1230
  %v1244 = vmul.f32 %v1200, %v1225
  %v1245 = vmul.f32 %v1201, %v1230
  %v1246 = vmul.f32 %v1202, %v1225
  %v1247 = vmul.f32 %v1203, %v1230
  %v1248 = vmul.f32 %v1204, %v1225
  %v1249 = vmul.f32 %v1205, %v1230
  %v1250 = vmul.f32 %v1206, %v1225
  %v1251 = vmul.f32 %v1207, %v1230
  %v1252 = vmul.f32 %v1208, %v1225
  %v1253 = vmul.f32 %v1209, %v1230
  %v1254 = vmul.f32 %v1210, %v1225
  %v1255 = vmul.f32 %v1211, %v1230
  %v1256 = vmul.f32 %v1212, %v1225
  %v1257 = vmul.f32 %v1213, %v1230
  %v1258 = vmul.f32 %v1214, %v1225
  %v1259 = vmul.f32 %v1215, %v1230
  %v1260 = vmul.f32 %v1216, %v1225
  %v1261 = vmul.f32 %v1217, %v1230
  %v1262 = vmul.f32 %v1218, %v1225
  %v1263 = vmul.f32 %v1219, %v1230
  %v1264 = vld [vmem:[%s9] sm:$0x1]
  %v1266 = vlaneseq
  %v1267 = vshrl.u32 %v1266, 7
  %v1268 = vsub.s32 0, %v1267
  %v1269 = vrot.slane %v1264, %v1268
  %v1271 = vadd.f32 %v1269, 0.0
  %v1272 = vld [vmem:[%s8] sm:$0xff]
  %v1273 = vld [vmem:[%s8 + $0x8] sm:$0xff]
  %v1274 = vld [vmem:[%s8 + $0x10] sm:$0xff]
  %v1275 = vld [vmem:[%s8 + $0x18] sm:$0xff]
  %v1276 = vld [vmem:[%s8 + $0x20] sm:$0xff]
  %v1277 = vld [vmem:[%s8 + $0x28] sm:$0xff]
  %v1278 = vld [vmem:[%s8 + $0x30] sm:$0xff]
  %v1279 = vld [vmem:[%s8 + $0x38] sm:$0xf]
  %vm1280 = vcmask 490496
  %v1282 = vsel %vm1280, %v1232, 0
  %v1285 = vsel %vm1280, %v1234, 0
  %v1288 = vsel %vm1280, %v1236, 0
  %v1291 = vsel %vm1280, %v1238, 0
  %v1294 = vsel %vm1280, %v1240, 0
  %v1297 = vsel %vm1280, %v1242, 0
  %v1300 = vsel %vm1280, %v1244, 0
  %v1303 = vsel %vm1280, %v1246, 0
  %v1306 = vsel %vm1280, %v1248, 0
  %v1309 = vsel %vm1280, %v1250, 0
  %v1312 = vsel %vm1280, %v1252, 0
  %v1315 = vsel %vm1280, %v1254, 0
  %v1318 = vsel %vm1280, %v1256, 0
  %v1321 = vsel %vm1280, %v1258, 0
  %v1324 = vsel %vm1280, %v1260, 0
  %v1327 = vsel %vm1280, %v1262, 0
  %v1330 = vsel %vm1107, %v1279, 0
  %1332 = vmatprep.subr.mxu0 0.0
  %1333 = vmatpush1.msra.mxu0 %v1272
  %1334 = vmatprep.subr.mxu0 0.0
  %1335 = vmatpush1.msra.mxu0 %v1273
  %1336 = vmatprep.subr.mxu0 0.0
  %1337 = vmatpush1.msra.mxu0 %v1274
  %1338 = vmatprep.subr.mxu0 0.0
  %1339 = vmatpush1.msra.mxu0 %v1275
  %1340 = vmatprep.subr.mxu0 0.0
  %1341 = vmatpush1.msra.mxu0 %v1276
  %1342 = vmatprep.subr.mxu0 0.0
  %1343 = vmatpush1.msra.mxu0 %v1277
  %1344 = vmatprep.subr.mxu0 0.0
  %1345 = vmatpush1.msra.mxu0 %v1278
  %1346 = vmatprep.subr.mxu0 0.0
  %1347 = vmatpush1.msra.mxu0 %v1330
  %1348 = vmatprep.subr.mxu0 0.0
  %1349 = vmatpush1.msra.mxu0 0.0
  %1350 = vmatprep.subr.mxu0 0.0
  %1351 = vmatpush1.msra.mxu0 0.0
  %1352 = vmatprep.subr.mxu0 0.0
  %1353 = vmatpush1.msra.mxu0 0.0
  %1354 = vmatprep.subr.mxu0 0.0
  %1355 = vmatpush1.msra.mxu0 0.0
  %1356 = vmatprep.subr.mxu0 0.0
  %1357 = vmatpush1.msra.mxu0 0.0
  %1358 = vmatprep.subr.mxu0 0.0
  %1359 = vmatpush1.msra.mxu0 0.0
  %1360 = vmatprep.subr.mxu0 0.0
  %1361 = vmatpush1.msra.mxu0 0.0
  %1362 = vmatprep.subr.mxu0 0.0
  %1363 = vmatpush1.msra.mxu0 0.0
  %1364 = vmatprep.subr.mxu0 0.0
  %1365 = vmatpush1.msra.mxu0 0.0
  %1366 = vmatprep.subr.mxu0 0.0
  %1367 = vmatpush1.msra.mxu0 0.0
  %1368 = vmatprep.subr.mxu0 0.0
  %1369 = vmatpush1.msra.mxu0 0.0
  %1370 = vmatprep.subr.mxu0 0.0
  %1371 = vmatpush1.msra.mxu0 0.0
  %1372 = vmatprep.subr.mxu0 0.0
  %1373 = vmatpush1.msra.mxu0 0.0
  %1374 = vmatprep.subr.mxu0 0.0
  %1375 = vmatpush1.msra.mxu0 0.0
  %1376 = vmatprep.subr.mxu0 0.0
  %1377 = vmatpush1.msra.mxu0 0.0
  %1378 = vmatprep.subr.mxu0 0.0
  %1379 = vmatpush1.msra.mxu0 0.0
  %1380 = vmatprep.subr.mxu0 0.0
  %1381 = vmatpush1.msra.mxu0 0.0
  %1382 = vmatprep.subr.mxu0 0.0
  %1383 = vmatpush1.msra.mxu0 0.0
  %1384 = vmatprep.subr.mxu0 0.0
  %1385 = vmatpush1.msra.mxu0 0.0
  %1386 = vmatprep.subr.mxu0 0.0
  %1387 = vmatpush1.msra.mxu0 0.0
  %1388 = vmatprep.subr.mxu0 0.0
  %1389 = vmatpush1.msra.mxu0 0.0
  %1390 = vmatprep.subr.mxu0 0.0
  %1391 = vmatpush1.msra.mxu0 0.0
  %1392 = vmatprep.subr.mxu0 0.0
  %1393 = vmatpush1.msra.mxu0 0.0
  %1394 = vmatprep.subr.mxu0 0.0
  %1395 = vmatpush1.msra.mxu0 0.0
  %1396 = vmatprep.mubr.f32.mxu0 0.0
  %1397 = vmatmul.mubr.f32.gmra.mrb[0].mxu0 %v1282
  %v1398 = vpop.f32.mrb[0].mxu0
  %v1399 = vadd.f32 0.0, %v1398
  %v1400 = vpop.f32.mrb[0].mxu0
  %1401 = vmatprep.mubr.f32.mxu0 0.0
  %1402 = vmatmul.mubr.f32.gmra.mrb[0].mxu0 %v1285
  %v1403 = vpop.f32.mrb[0].mxu0
  %v1404 = vadd.f32 0.0, %v1403
  %v1405 = vpop.f32.mrb[0].mxu0
  %1406 = vmatprep.mubr.f32.mxu0 0.0
  %1407 = vmatmul.mubr.f32.gmra.mrb[0].mxu0 %v1288
  %v1408 = vpop.f32.mrb[0].mxu0
  %v1409 = vadd.f32 0.0, %v1408
  %v1410 = vpop.f32.mrb[0].mxu0
  %1411 = vmatprep.mubr.f32.mxu0 0.0
  %1412 = vmatmul.mubr.f32.gmra.mrb[0].mxu0 %v1291
  %v1413 = vpop.f32.mrb[0].mxu0
  %v1414 = vadd.f32 0.0, %v1413
  %v1415 = vpop.f32.mrb[0].mxu0
  %1416 = vmatprep.mubr.f32.mxu0 0.0
  %1417 = vmatmul.mubr.f32.gmra.mrb[0].mxu0 %v1294
  %v1418 = vpop.f32.mrb[0].mxu0
  %v1419 = vadd.f32 0.0, %v1418
  %v1420 = vpop.f32.mrb[0].mxu0
  %1421 = vmatprep.mubr.f32.mxu0 0.0
  %1422 = vmatmul.mubr.f32.gmra.mrb[0].mxu0 %v1297
  %v1423 = vpop.f32.mrb[0].mxu0
  %v1424 = vadd.f32 0.0, %v1423
  %v1425 = vpop.f32.mrb[0].mxu0
  %1426 = vmatprep.mubr.f32.mxu0 0.0
  %1427 = vmatmul.mubr.f32.gmra.mrb[0].mxu0 %v1300
  %v1428 = vpop.f32.mrb[0].mxu0
  %v1429 = vadd.f32 0.0, %v1428
  %v1430 = vpop.f32.mrb[0].mxu0
  %1431 = vmatprep.mubr.f32.mxu0 0.0
  %1432 = vmatmul.mubr.f32.gmra.mrb[0].mxu0 %v1303
  %v1433 = vpop.f32.mrb[0].mxu0
  %v1434 = vadd.f32 0.0, %v1433
  %v1435 = vpop.f32.mrb[0].mxu0
  %1436 = vmatprep.mubr.f32.mxu0 0.0
  %1437 = vmatmul.mubr.f32.gmra.mrb[0].mxu0 %v1306
  %v1438 = vpop.f32.mrb[0].mxu0
  %v1439 = vadd.f32 0.0, %v1438
  %v1440 = vpop.f32.mrb[0].mxu0
  %1441 = vmatprep.mubr.f32.mxu0 0.0
  %1442 = vmatmul.mubr.f32.gmra.mrb[0].mxu0 %v1309
  %v1443 = vpop.f32.mrb[0].mxu0
  %v1444 = vadd.f32 0.0, %v1443
  %v1445 = vpop.f32.mrb[0].mxu0
  %1446 = vmatprep.mubr.f32.mxu0 0.0
  %1447 = vmatmul.mubr.f32.gmra.mrb[0].mxu0 %v1312
  %v1448 = vpop.f32.mrb[0].mxu0
  %v1449 = vadd.f32 0.0, %v1448
  %v1450 = vpop.f32.mrb[0].mxu0
  %1451 = vmatprep.mubr.f32.mxu0 0.0
  %1452 = vmatmul.mubr.f32.gmra.mrb[0].mxu0 %v1315
  %v1453 = vpop.f32.mrb[0].mxu0
  %v1454 = vadd.f32 0.0, %v1453
  %v1455 = vpop.f32.mrb[0].mxu0
  %1456 = vmatprep.mubr.f32.mxu0 0.0
  %1457 = vmatmul.mubr.f32.gmra.mrb[0].mxu0 %v1318
  %v1458 = vpop.f32.mrb[0].mxu0
  %v1459 = vadd.f32 0.0, %v1458
  %v1460 = vpop.f32.mrb[0].mxu0
  %1461 = vmatprep.mubr.f32.mxu0 0.0
  %1462 = vmatmul.mubr.f32.gmra.mrb[0].mxu0 %v1321
  %v1463 = vpop.f32.mrb[0].mxu0
  %v1464 = vadd.f32 0.0, %v1463
  %v1465 = vpop.f32.mrb[0].mxu0
  %1466 = vmatprep.mubr.f32.mxu0 0.0
  %1467 = vmatmul.mubr.f32.gmra.mrb[0].mxu0 %v1324
  %v1468 = vpop.f32.mrb[0].mxu0
  %v1469 = vadd.f32 0.0, %v1468
  %v1470 = vpop.f32.mrb[0].mxu0
  %1471 = vmatprep.mubr.f32.mxu0 0.0
  %1472 = vmatmul.mubr.f32.gmra.mrb[0].mxu0 %v1327
  %v1473 = vpop.f32.mrb[0].mxu0
  %v1474 = vadd.f32 0.0, %v1473
  %v1475 = vpop.f32.mrb[0].mxu0
  %1476 = vdwg.mxu0
  %v1477 = vadd.f32 %v1271, %v1399
  %v1478 = vadd.f32 %v1271, %v1404
  %v1479 = vadd.f32 %v1271, %v1409
  %v1480 = vadd.f32 %v1271, %v1414
  %v1481 = vadd.f32 %v1271, %v1419
  %v1482 = vadd.f32 %v1271, %v1424
  %v1483 = vadd.f32 %v1271, %v1429
  %v1484 = vadd.f32 %v1271, %v1434
  %v1485 = vadd.f32 %v1271, %v1439
  %v1486 = vadd.f32 %v1271, %v1444
  %v1487 = vadd.f32 %v1271, %v1449
  %v1488 = vadd.f32 %v1271, %v1454
  %v1489 = vadd.f32 %v1271, %v1459
  %v1490 = vadd.f32 %v1271, %v1464
  %v1491 = vadd.f32 %v1271, %v1469
  %v1492 = vadd.f32 %v1271, %v1474
  %v1509 = vrot.slane %v1232, 1
  %v1510 = vrot.slane %v1233, 1
  %v1511 = vsel %vm769, %v1509, %v1510
  %v1512 = vrot.slane %v1234, 1
  %v1513 = vrot.slane %v1235, 1
  %v1514 = vsel %vm769, %v1512, %v1513
  %v1515 = vrot.slane %v1236, 1
  %v1516 = vrot.slane %v1237, 1
  %v1517 = vsel %vm769, %v1515, %v1516
  %v1518 = vrot.slane %v1238, 1
  %v1519 = vrot.slane %v1239, 1
  %v1520 = vsel %vm769, %v1518, %v1519
  %v1521 = vrot.slane %v1240, 1
  %v1522 = vrot.slane %v1241, 1
  %v1523 = vsel %vm769, %v1521, %v1522
  %v1524 = vrot.slane %v1242, 1
  %v1525 = vrot.slane %v1243, 1
  %v1526 = vsel %vm769, %v1524, %v1525
  %v1527 = vrot.slane %v1244, 1
  %v1528 = vrot.slane %v1245, 1
  %v1529 = vsel %vm769, %v1527, %v1528
  %v1530 = vrot.slane %v1246, 1
  %v1531 = vrot.slane %v1247, 1
  %v1532 = vsel %vm769, %v1530, %v1531
  %v1533 = vrot.slane %v1248, 1
  %v1534 = vrot.slane %v1249, 1
  %v1535 = vsel %vm769, %v1533, %v1534
  %v1536 = vrot.slane %v1250, 1
  %v1537 = vrot.slane %v1251, 1
  %v1538 = vsel %vm769, %v1536, %v1537
  %v1539 = vrot.slane %v1252, 1
  %v1540 = vrot.slane %v1253, 1
  %v1541 = vsel %vm769, %v1539, %v1540
  %v1542 = vrot.slane %v1254, 1
  %v1543 = vrot.slane %v1255, 1
  %v1544 = vsel %vm769, %v1542, %v1543
  %v1545 = vrot.slane %v1256, 1
  %v1546 = vrot.slane %v1257, 1
  %v1547 = vsel %vm769, %v1545, %v1546
  %v1548 = vrot.slane %v1258, 1
  %v1549 = vrot.slane %v1259, 1
  %v1550 = vsel %vm769, %v1548, %v1549
  %v1551 = vrot.slane %v1260, 1
  %v1552 = vrot.slane %v1261, 1
  %v1553 = vsel %vm769, %v1551, %v1552
  %v1554 = vrot.slane %v1262, 1
  %v1555 = vrot.slane %v1263, 1
  %v1556 = vsel %vm769, %v1554, %v1555
  %s1557 = scalar_lea.vmem %s8, 64
  %v1558 = vld [vmem:[%s1557] sm:$0xff]
  %v1559 = vld [vmem:[%s1557 + $0x8] sm:$0xff]
  %v1560 = vld [vmem:[%s1557 + $0x10] sm:$0xff]
  %v1561 = vld [vmem:[%s1557 + $0x18] sm:$0xff]
  %v1562 = vld [vmem:[%s1557 + $0x20] sm:$0xff]
  %v1563 = vld [vmem:[%s1557 + $0x28] sm:$0xff]
  %v1564 = vld [vmem:[%s1557 + $0x30] sm:$0xff]
  %v1565 = vld [vmem:[%s1557 + $0x38] sm:$0xf]
  %v1566 = vsel %vm1280, %v1511, 0
  %v1568 = vsel %vm1280, %v1514, 0
  %v1570 = vsel %vm1280, %v1517, 0
  %v1572 = vsel %vm1280, %v1520, 0
  %v1574 = vsel %vm1280, %v1523, 0
  %v1576 = vsel %vm1280, %v1526, 0
  %v1578 = vsel %vm1280, %v1529, 0
  %v1580 = vsel %vm1280, %v1532, 0
  %v1582 = vsel %vm1280, %v1535, 0
  %v1584 = vsel %vm1280, %v1538, 0
  %v1586 = vsel %vm1280, %v1541, 0
  %v1588 = vsel %vm1280, %v1544, 0
  %v1590 = vsel %vm1280, %v1547, 0
  %v1592 = vsel %vm1280, %v1550, 0
  %v1594 = vsel %vm1280, %v1553, 0
  %v1596 = vsel %vm1280, %v1556, 0
  %v1599 = vsel %vm1107, %v1565, 0
  %1601 = vmatprep.subr.mxu0 0.0
  %1602 = vmatpush1.msra.mxu0 %v1558
  %1603 = vmatprep.subr.mxu0 0.0
  %1604 = vmatpush1.msra.mxu0 %v1559
  %1605 = vmatprep.subr.mxu0 0.0
  %1606 = vmatpush1.msra.mxu0 %v1560
  %1607 = vmatprep.subr.mxu0 0.0
  %1608 = vmatpush1.msra.mxu0 %v1561
  %1609 = vmatprep.subr.mxu0 0.0
  %1610 = vmatpush1.msra.mxu0 %v1562
  %1611 = vmatprep.subr.mxu0 0.0
  %1612 = vmatpush1.msra.mxu0 %v1563
  %1613 = vmatprep.subr.mxu0 0.0
  %1614 = vmatpush1.msra.mxu0 %v1564
  %1615 = vmatprep.subr.mxu0 0.0
  %1616 = vmatpush1.msra.mxu0 %v1599
  %1617 = vmatprep.subr.mxu0 0.0
  %1618 = vmatpush1.msra.mxu0 0.0
  %1619 = vmatprep.subr.mxu0 0.0
  %1620 = vmatpush1.msra.mxu0 0.0
  %1621 = vmatprep.subr.mxu0 0.0
  %1622 = vmatpush1.msra.mxu0 0.0
  %1623 = vmatprep.subr.mxu0 0.0
  %1624 = vmatpush1.msra.mxu0 0.0
  %1625 = vmatprep.subr.mxu0 0.0
  %1626 = vmatpush1.msra.mxu0 0.0
  %1627 = vmatprep.subr.mxu0 0.0
  %1628 = vmatpush1.msra.mxu0 0.0
  %1629 = vmatprep.subr.mxu0 0.0
  %1630 = vmatpush1.msra.mxu0 0.0
  %1631 = vmatprep.subr.mxu0 0.0
  %1632 = vmatpush1.msra.mxu0 0.0
  %1633 = vmatprep.subr.mxu0 0.0
  %1634 = vmatpush1.msra.mxu0 0.0
  %1635 = vmatprep.subr.mxu0 0.0
  %1636 = vmatpush1.msra.mxu0 0.0
  %1637 = vmatprep.subr.mxu0 0.0
  %1638 = vmatpush1.msra.mxu0 0.0
  %1639 = vmatprep.subr.mxu0 0.0
  %1640 = vmatpush1.msra.mxu0 0.0
  %1641 = vmatprep.subr.mxu0 0.0
  %1642 = vmatpush1.msra.mxu0 0.0
  %1643 = vmatprep.subr.mxu0 0.0
  %1644 = vmatpush1.msra.mxu0 0.0
  %1645 = vmatprep.subr.mxu0 0.0
  %1646 = vmatpush1.msra.mxu0 0.0
  %1647 = vmatprep.subr.mxu0 0.0
  %1648 = vmatpush1.msra.mxu0 0.0
  %1649 = vmatprep.subr.mxu0 0.0
  %1650 = vmatpush1.msra.mxu0 0.0
  %1651 = vmatprep.subr.mxu0 0.0
  %1652 = vmatpush1.msra.mxu0 0.0
  %1653 = vmatprep.subr.mxu0 0.0
  %1654 = vmatpush1.msra.mxu0 0.0
  %1655 = vmatprep.subr.mxu0 0.0
  %1656 = vmatpush1.msra.mxu0 0.0
  %1657 = vmatprep.subr.mxu0 0.0
  %1658 = vmatpush1.msra.mxu0 0.0
  %1659 = vmatprep.subr.mxu0 0.0
  %1660 = vmatpush1.msra.mxu0 0.0
  %1661 = vmatprep.subr.mxu0 0.0
  %1662 = vmatpush1.msra.mxu0 0.0
  %1663 = vmatprep.subr.mxu0 0.0
  %1664 = vmatpush1.msra.mxu0 0.0
  %1665 = vmatprep.mubr.f32.mxu0 0.0
  %1666 = vmatmul.mubr.f32.gmra.mrb[0].mxu0 %v1566
  %v1667 = vpop.f32.mrb[0].mxu0
  %v1668 = vadd.f32 0.0, %v1667
  %v1669 = vpop.f32.mrb[0].mxu0
  %1670 = vmatprep.mubr.f32.mxu0 0.0
  %1671 = vmatmul.mubr.f32.gmra.mrb[0].mxu0 %v1568
  %v1672 = vpop.f32.mrb[0].mxu0
  %v1673 = vadd.f32 0.0, %v1672
  %v1674 = vpop.f32.mrb[0].mxu0
  %1675 = vmatprep.mubr.f32.mxu0 0.0
  %1676 = vmatmul.mubr.f32.gmra.mrb[0].mxu0 %v1570
  %v1677 = vpop.f32.mrb[0].mxu0
  %v1678 = vadd.f32 0.0, %v1677
  %v1679 = vpop.f32.mrb[0].mxu0
  %1680 = vmatprep.mubr.f32.mxu0 0.0
  %1681 = vmatmul.mubr.f32.gmra.mrb[0].mxu0 %v1572
  %v1682 = vpop.f32.mrb[0].mxu0
  %v1683 = vadd.f32 0.0, %v1682
  %v1684 = vpop.f32.mrb[0].mxu0
  %1685 = vmatprep.mubr.f32.mxu0 0.0
  %1686 = vmatmul.mubr.f32.gmra.mrb[0].mxu0 %v1574
  %v1687 = vpop.f32.mrb[0].mxu0
  %v1688 = vadd.f32 0.0, %v1687
  %v1689 = vpop.f32.mrb[0].mxu0
  %1690 = vmatprep.mubr.f32.mxu0 0.0
  %1691 = vmatmul.mubr.f32.gmra.mrb[0].mxu0 %v1576
  %v1692 = vpop.f32.mrb[0].mxu0
  %v1693 = vadd.f32 0.0, %v1692
  %v1694 = vpop.f32.mrb[0].mxu0
  %1695 = vmatprep.mubr.f32.mxu0 0.0
  %1696 = vmatmul.mubr.f32.gmra.mrb[0].mxu0 %v1578
  %v1697 = vpop.f32.mrb[0].mxu0
  %v1698 = vadd.f32 0.0, %v1697
  %v1699 = vpop.f32.mrb[0].mxu0
  %1700 = vmatprep.mubr.f32.mxu0 0.0
  %1701 = vmatmul.mubr.f32.gmra.mrb[0].mxu0 %v1580
  %v1702 = vpop.f32.mrb[0].mxu0
  %v1703 = vadd.f32 0.0, %v1702
  %v1704 = vpop.f32.mrb[0].mxu0
  %1705 = vmatprep.mubr.f32.mxu0 0.0
  %1706 = vmatmul.mubr.f32.gmra.mrb[0].mxu0 %v1582
  %v1707 = vpop.f32.mrb[0].mxu0
  %v1708 = vadd.f32 0.0, %v1707
  %v1709 = vpop.f32.mrb[0].mxu0
  %1710 = vmatprep.mubr.f32.mxu0 0.0
  %1711 = vmatmul.mubr.f32.gmra.mrb[0].mxu0 %v1584
  %v1712 = vpop.f32.mrb[0].mxu0
  %v1713 = vadd.f32 0.0, %v1712
  %v1714 = vpop.f32.mrb[0].mxu0
  %1715 = vmatprep.mubr.f32.mxu0 0.0
  %1716 = vmatmul.mubr.f32.gmra.mrb[0].mxu0 %v1586
  %v1717 = vpop.f32.mrb[0].mxu0
  %v1718 = vadd.f32 0.0, %v1717
  %v1719 = vpop.f32.mrb[0].mxu0
  %1720 = vmatprep.mubr.f32.mxu0 0.0
  %1721 = vmatmul.mubr.f32.gmra.mrb[0].mxu0 %v1588
  %v1722 = vpop.f32.mrb[0].mxu0
  %v1723 = vadd.f32 0.0, %v1722
  %v1724 = vpop.f32.mrb[0].mxu0
  %1725 = vmatprep.mubr.f32.mxu0 0.0
  %1726 = vmatmul.mubr.f32.gmra.mrb[0].mxu0 %v1590
  %v1727 = vpop.f32.mrb[0].mxu0
  %v1728 = vadd.f32 0.0, %v1727
  %v1729 = vpop.f32.mrb[0].mxu0
  %1730 = vmatprep.mubr.f32.mxu0 0.0
  %1731 = vmatmul.mubr.f32.gmra.mrb[0].mxu0 %v1592
  %v1732 = vpop.f32.mrb[0].mxu0
  %v1733 = vadd.f32 0.0, %v1732
  %v1734 = vpop.f32.mrb[0].mxu0
  %1735 = vmatprep.mubr.f32.mxu0 0.0
  %1736 = vmatmul.mubr.f32.gmra.mrb[0].mxu0 %v1594
  %v1737 = vpop.f32.mrb[0].mxu0
  %v1738 = vadd.f32 0.0, %v1737
  %v1739 = vpop.f32.mrb[0].mxu0
  %1740 = vmatprep.mubr.f32.mxu0 0.0
  %1741 = vmatmul.mubr.f32.gmra.mrb[0].mxu0 %v1596
  %v1742 = vpop.f32.mrb[0].mxu0
  %v1743 = vadd.f32 0.0, %v1742
  %v1744 = vpop.f32.mrb[0].mxu0
  %1745 = vdwg.mxu0
  %v1746 = vadd.f32 %v1477, %v1668
  %v1747 = vadd.f32 %v1478, %v1673
  %v1748 = vadd.f32 %v1479, %v1678
  %v1749 = vadd.f32 %v1480, %v1683
  %v1750 = vadd.f32 %v1481, %v1688
  %v1751 = vadd.f32 %v1482, %v1693
  %v1752 = vadd.f32 %v1483, %v1698
  %v1753 = vadd.f32 %v1484, %v1703
  %v1754 = vadd.f32 %v1485, %v1708
  %v1755 = vadd.f32 %v1486, %v1713
  %v1756 = vadd.f32 %v1487, %v1718
  %v1757 = vadd.f32 %v1488, %v1723
  %v1758 = vadd.f32 %v1489, %v1728
  %v1759 = vadd.f32 %v1490, %v1733
  %v1760 = vadd.f32 %v1491, %v1738
  %v1761 = vadd.f32 %v1492, %v1743
  %v1762 = vrot.slane %v1232, 2
  %v1763 = vrot.slane %v1233, 2
  %v1764 = vsel %vm252, %v1762, %v1763
  %v1765 = vrot.slane %v1234, 2
  %v1766 = vrot.slane %v1235, 2
  %v1767 = vsel %vm252, %v1765, %v1766
  %v1768 = vrot.slane %v1236, 2
  %v1769 = vrot.slane %v1237, 2
  %v1770 = vsel %vm252, %v1768, %v1769
  %v1771 = vrot.slane %v1238, 2
  %v1772 = vrot.slane %v1239, 2
  %v1773 = vsel %vm252, %v1771, %v1772
  %v1774 = vrot.slane %v1240, 2
  %v1775 = vrot.slane %v1241, 2
  %v1776 = vsel %vm252, %v1774, %v1775
  %v1777 = vrot.slane %v1242, 2
  %v1778 = vrot.slane %v1243, 2
  %v1779 = vsel %vm252, %v1777, %v1778
  %v1780 = vrot.slane %v1244, 2
  %v1781 = vrot.slane %v1245, 2
  %v1782 = vsel %vm252, %v1780, %v1781
  %v1783 = vrot.slane %v1246, 2
  %v1784 = vrot.slane %v1247, 2
  %v1785 = vsel %vm252, %v1783, %v1784
  %v1786 = vrot.slane %v1248, 2
  %v1787 = vrot.slane %v1249, 2
  %v1788 = vsel %vm252, %v1786, %v1787
  %v1789 = vrot.slane %v1250, 2
  %v1790 = vrot.slane %v1251, 2
  %v1791 = vsel %vm252, %v1789, %v1790
  %v1792 = vrot.slane %v1252, 2
  %v1793 = vrot.slane %v1253, 2
  %v1794 = vsel %vm252, %v1792, %v1793
  %v1795 = vrot.slane %v1254, 2
  %v1796 = vrot.slane %v1255, 2
  %v1797 = vsel %vm252, %v1795, %v1796
  %v1798 = vrot.slane %v1256, 2
  %v1799 = vrot.slane %v1257, 2
  %v1800 = vsel %vm252, %v1798, %v1799
  %v1801 = vrot.slane %v1258, 2
  %v1802 = vrot.slane %v1259, 2
  %v1803 = vsel %vm252, %v1801, %v1802
  %v1804 = vrot.slane %v1260, 2
  %v1805 = vrot.slane %v1261, 2
  %v1806 = vsel %vm252, %v1804, %v1805
  %v1807 = vrot.slane %v1262, 2
  %v1808 = vrot.slane %v1263, 2
  %v1809 = vsel %vm252, %v1807, %v1808
  %s1810 = scalar_lea.vmem %s8, 128
  %v1811 = vld [vmem:[%s1810] sm:$0xff]
  %v1812 = vld [vmem:[%s1810 + $0x8] sm:$0xff]
  %v1813 = vld [vmem:[%s1810 + $0x10] sm:$0xff]
  %v1814 = vld [vmem:[%s1810 + $0x18] sm:$0xff]
  %v1815 = vld [vmem:[%s1810 + $0x20] sm:$0xff]
  %v1816 = vld [vmem:[%s1810 + $0x28] sm:$0xff]
  %v1817 = vld [vmem:[%s1810 + $0x30] sm:$0xff]
  %v1818 = vld [vmem:[%s1810 + $0x38] sm:$0xf]
  %v1819 = vsel %vm1280, %v1764, 0
  %v1821 = vsel %vm1280, %v1767, 0
  %v1823 = vsel %vm1280, %v1770, 0
  %v1825 = vsel %vm1280, %v1773, 0
  %v1827 = vsel %vm1280, %v1776, 0
  %v1829 = vsel %vm1280, %v1779, 0
  %v1831 = vsel %vm1280, %v1782, 0
  %v1833 = vsel %vm1280, %v1785, 0
  %v1835 = vsel %vm1280, %v1788, 0
  %v1837 = vsel %vm1280, %v1791, 0
  %v1839 = vsel %vm1280, %v1794, 0
  %v1841 = vsel %vm1280, %v1797, 0
  %v1843 = vsel %vm1280, %v1800, 0
  %v1845 = vsel %vm1280, %v1803, 0
  %v1847 = vsel %vm1280, %v1806, 0
  %v1849 = vsel %vm1280, %v1809, 0
  %v1852 = vsel %vm1107, %v1818, 0
  %1854 = vmatprep.subr.mxu0 0.0
  %1855 = vmatpush1.msra.mxu0 %v1811
  %1856 = vmatprep.subr.mxu0 0.0
  %1857 = vmatpush1.msra.mxu0 %v1812
  %1858 = vmatprep.subr.mxu0 0.0
  %1859 = vmatpush1.msra.mxu0 %v1813
  %1860 = vmatprep.subr.mxu0 0.0
  %1861 = vmatpush1.msra.mxu0 %v1814
  %1862 = vmatprep.subr.mxu0 0.0
  %1863 = vmatpush1.msra.mxu0 %v1815
  %1864 = vmatprep.subr.mxu0 0.0
  %1865 = vmatpush1.msra.mxu0 %v1816
  %1866 = vmatprep.subr.mxu0 0.0
  %1867 = vmatpush1.msra.mxu0 %v1817
  %1868 = vmatprep.subr.mxu0 0.0
  %1869 = vmatpush1.msra.mxu0 %v1852
  %1870 = vmatprep.subr.mxu0 0.0
  %1871 = vmatpush1.msra.mxu0 0.0
  %1872 = vmatprep.subr.mxu0 0.0
  %1873 = vmatpush1.msra.mxu0 0.0
  %1874 = vmatprep.subr.mxu0 0.0
  %1875 = vmatpush1.msra.mxu0 0.0
  %1876 = vmatprep.subr.mxu0 0.0
  %1877 = vmatpush1.msra.mxu0 0.0
  %1878 = vmatprep.subr.mxu0 0.0
  %1879 = vmatpush1.msra.mxu0 0.0
  %1880 = vmatprep.subr.mxu0 0.0
  %1881 = vmatpush1.msra.mxu0 0.0
  %1882 = vmatprep.subr.mxu0 0.0
  %1883 = vmatpush1.msra.mxu0 0.0
  %1884 = vmatprep.subr.mxu0 0.0
  %1885 = vmatpush1.msra.mxu0 0.0
  %1886 = vmatprep.subr.mxu0 0.0
  %1887 = vmatpush1.msra.mxu0 0.0
  %1888 = vmatprep.subr.mxu0 0.0
  %1889 = vmatpush1.msra.mxu0 0.0
  %1890 = vmatprep.subr.mxu0 0.0
  %1891 = vmatpush1.msra.mxu0 0.0
  %1892 = vmatprep.subr.mxu0 0.0
  %1893 = vmatpush1.msra.mxu0 0.0
  %1894 = vmatprep.subr.mxu0 0.0
  %1895 = vmatpush1.msra.mxu0 0.0
  %1896 = vmatprep.subr.mxu0 0.0
  %1897 = vmatpush1.msra.mxu0 0.0
  %1898 = vmatprep.subr.mxu0 0.0
  %1899 = vmatpush1.msra.mxu0 0.0
  %1900 = vmatprep.subr.mxu0 0.0
  %1901 = vmatpush1.msra.mxu0 0.0
  %1902 = vmatprep.subr.mxu0 0.0
  %1903 = vmatpush1.msra.mxu0 0.0
  %1904 = vmatprep.subr.mxu0 0.0
  %1905 = vmatpush1.msra.mxu0 0.0
  %1906 = vmatprep.subr.mxu0 0.0
  %1907 = vmatpush1.msra.mxu0 0.0
  %1908 = vmatprep.subr.mxu0 0.0
  %1909 = vmatpush1.msra.mxu0 0.0
  %1910 = vmatprep.subr.mxu0 0.0
  %1911 = vmatpush1.msra.mxu0 0.0
  %1912 = vmatprep.subr.mxu0 0.0
  %1913 = vmatpush1.msra.mxu0 0.0
  %1914 = vmatprep.subr.mxu0 0.0
  %1915 = vmatpush1.msra.mxu0 0.0
  %1916 = vmatprep.subr.mxu0 0.0
  %1917 = vmatpush1.msra.mxu0 0.0
  %1918 = vmatprep.mubr.f32.mxu0 0.0
  %1919 = vmatmul.mubr.f32.gmra.mrb[0].mxu0 %v1819
  %v1920 = vpop.f32.mrb[0].mxu0
  %v1921 = vadd.f32 0.0, %v1920
  %v1922 = vpop.f32.mrb[0].mxu0
  %1923 = vmatprep.mubr.f32.mxu0 0.0
  %1924 = vmatmul.mubr.f32.gmra.mrb[0].mxu0 %v1821
  %v1925 = vpop.f32.mrb[0].mxu0
  %v1926 = vadd.f32 0.0, %v1925
  %v1927 = vpop.f32.mrb[0].mxu0
  %1928 = vmatprep.mubr.f32.mxu0 0.0
  %1929 = vmatmul.mubr.f32.gmra.mrb[0].mxu0 %v1823
  %v1930 = vpop.f32.mrb[0].mxu0
  %v1931 = vadd.f32 0.0, %v1930
  %v1932 = vpop.f32.mrb[0].mxu0
  %1933 = vmatprep.mubr.f32.mxu0 0.0
  %1934 = vmatmul.mubr.f32.gmra.mrb[0].mxu0 %v1825
  %v1935 = vpop.f32.mrb[0].mxu0
  %v1936 = vadd.f32 0.0, %v1935
  %v1937 = vpop.f32.mrb[0].mxu0
  %1938 = vmatprep.mubr.f32.mxu0 0.0
  %1939 = vmatmul.mubr.f32.gmra.mrb[0].mxu0 %v1827
  %v1940 = vpop.f32.mrb[0].mxu0
  %v1941 = vadd.f32 0.0, %v1940
  %v1942 = vpop.f32.mrb[0].mxu0
  %1943 = vmatprep.mubr.f32.mxu0 0.0
  %1944 = vmatmul.mubr.f32.gmra.mrb[0].mxu0 %v1829
  %v1945 = vpop.f32.mrb[0].mxu0
  %v1946 = vadd.f32 0.0, %v1945
  %v1947 = vpop.f32.mrb[0].mxu0
  %1948 = vmatprep.mubr.f32.mxu0 0.0
  %1949 = vmatmul.mubr.f32.gmra.mrb[0].mxu0 %v1831
  %v1950 = vpop.f32.mrb[0].mxu0
  %v1951 = vadd.f32 0.0, %v1950
  %v1952 = vpop.f32.mrb[0].mxu0
  %1953 = vmatprep.mubr.f32.mxu0 0.0
  %1954 = vmatmul.mubr.f32.gmra.mrb[0].mxu0 %v1833
  %v1955 = vpop.f32.mrb[0].mxu0
  %v1956 = vadd.f32 0.0, %v1955
  %v1957 = vpop.f32.mrb[0].mxu0
  %1958 = vmatprep.mubr.f32.mxu0 0.0
  %1959 = vmatmul.mubr.f32.gmra.mrb[0].mxu0 %v1835
  %v1960 = vpop.f32.mrb[0].mxu0
  %v1961 = vadd.f32 0.0, %v1960
  %v1962 = vpop.f32.mrb[0].mxu0
  %1963 = vmatprep.mubr.f32.mxu0 0.0
  %1964 = vmatmul.mubr.f32.gmra.mrb[0].mxu0 %v1837
  %v1965 = vpop.f32.mrb[0].mxu0
  %v1966 = vadd.f32 0.0, %v1965
  %v1967 = vpop.f32.mrb[0].mxu0
  %1968 = vmatprep.mubr.f32.mxu0 0.0
  %1969 = vmatmul.mubr.f32.gmra.mrb[0].mxu0 %v1839
  %v1970 = vpop.f32.mrb[0].mxu0
  %v1971 = vadd.f32 0.0, %v1970
  %v1972 = vpop.f32.mrb[0].mxu0
  %1973 = vmatprep.mubr.f32.mxu0 0.0
  %1974 = vmatmul.mubr.f32.gmra.mrb[0].mxu0 %v1841
  %v1975 = vpop.f32.mrb[0].mxu0
  %v1976 = vadd.f32 0.0, %v1975
  %v1977 = vpop.f32.mrb[0].mxu0
  %1978 = vmatprep.mubr.f32.mxu0 0.0
  %1979 = vmatmul.mubr.f32.gmra.mrb[0].mxu0 %v1843
  %v1980 = vpop.f32.mrb[0].mxu0
  %v1981 = vadd.f32 0.0, %v1980
  %v1982 = vpop.f32.mrb[0].mxu0
  %1983 = vmatprep.mubr.f32.mxu0 0.0
  %1984 = vmatmul.mubr.f32.gmra.mrb[0].mxu0 %v1845
  %v1985 = vpop.f32.mrb[0].mxu0
  %v1986 = vadd.f32 0.0, %v1985
  %v1987 = vpop.f32.mrb[0].mxu0
  %1988 = vmatprep.mubr.f32.mxu0 0.0
  %1989 = vmatmul.mubr.f32.gmra.mrb[0].mxu0 %v1847
  %v1990 = vpop.f32.mrb[0].mxu0
  %v1991 = vadd.f32 0.0, %v1990
  %v1992 = vpop.f32.mrb[0].mxu0
  %1993 = vmatprep.mubr.f32.mxu0 0.0
  %1994 = vmatmul.mubr.f32.gmra.mrb[0].mxu0 %v1849
  %v1995 = vpop.f32.mrb[0].mxu0
  %v1996 = vadd.f32 0.0, %v1995
  %v1997 = vpop.f32.mrb[0].mxu0
  %1998 = vdwg.mxu0
  %v1999 = vadd.f32 %v1746, %v1921
  %v2000 = vadd.f32 %v1747, %v1926
  %v2001 = vadd.f32 %v1748, %v1931
  %v2002 = vadd.f32 %v1749, %v1936
  %v2003 = vadd.f32 %v1750, %v1941
  %v2004 = vadd.f32 %v1751, %v1946
  %v2005 = vadd.f32 %v1752, %v1951
  %v2006 = vadd.f32 %v1753, %v1956
  %v2007 = vadd.f32 %v1754, %v1961
  %v2008 = vadd.f32 %v1755, %v1966
  %v2009 = vadd.f32 %v1756, %v1971
  %v2010 = vadd.f32 %v1757, %v1976
  %v2011 = vadd.f32 %v1758, %v1981
  %v2012 = vadd.f32 %v1759, %v1986
  %v2013 = vadd.f32 %v1760, %v1991
  %v2014 = vadd.f32 %v1761, %v1996
  %v2015 = vmax.f32 %v1999, 0.0
  %v2016 = vmax.f32 %v2000, 0.0
  %v2017 = vmax.f32 %v2001, 0.0
  %v2018 = vmax.f32 %v2002, 0.0
  %v2019 = vmax.f32 %v2003, 0.0
  %v2020 = vmax.f32 %v2004, 0.0
  %v2021 = vmax.f32 %v2005, 0.0
  %v2022 = vmax.f32 %v2006, 0.0
  %v2023 = vmax.f32 %v2007, 0.0
  %v2024 = vmax.f32 %v2008, 0.0
  %v2025 = vmax.f32 %v2009, 0.0
  %v2026 = vmax.f32 %v2010, 0.0
  %v2027 = vmax.f32 %v2011, 0.0
  %v2028 = vmax.f32 %v2012, 0.0
  %v2029 = vmax.f32 %v2013, 0.0
  %v2030 = vmax.f32 %v2014, 0.0
  %vm2031 = vcmask 244736
  %v2032 = vsel %vm2031, %v2015, -inf
  %v2033 = vrot.slane %v2032, 4
  %v2034 = vmax.f32 %v2032, %v2033
  %v2035 = vrot.slane %v2034, 2
  %v2036 = vmax.f32 %v2034, %v2035
  %v2037 = vrot.slane %v2036, 1
  %v2038 = vmax.f32 %v2036, %v2037
  %v2039 = vsel %vm2031, %v2016, -inf
  %v2040 = vrot.slane %v2039, 4
  %v2041 = vmax.f32 %v2039, %v2040
  %v2042 = vrot.slane %v2041, 2
  %v2043 = vmax.f32 %v2041, %v2042
  %v2044 = vrot.slane %v2043, 1
  %v2045 = vmax.f32 %v2043, %v2044
  %v2046 = vsel %vm2031, %v2017, -inf
  %v2047 = vrot.slane %v2046, 4
  %v2048 = vmax.f32 %v2046, %v2047
  %v2049 = vrot.slane %v2048, 2
  %v2050 = vmax.f32 %v2048, %v2049
  %v2051 = vrot.slane %v2050, 1
  %v2052 = vmax.f32 %v2050, %v2051
  %v2053 = vsel %vm2031, %v2018, -inf
  %v2054 = vrot.slane %v2053, 4
  %v2055 = vmax.f32 %v2053, %v2054
  %v2056 = vrot.slane %v2055, 2
  %v2057 = vmax.f32 %v2055, %v2056
  %v2058 = vrot.slane %v2057, 1
  %v2059 = vmax.f32 %v2057, %v2058
  %v2060 = vsel %vm2031, %v2019, -inf
  %v2061 = vrot.slane %v2060, 4
  %v2062 = vmax.f32 %v2060, %v2061
  %v2063 = vrot.slane %v2062, 2
  %v2064 = vmax.f32 %v2062, %v2063
  %v2065 = vrot.slane %v2064, 1
  %v2066 = vmax.f32 %v2064, %v2065
  %v2067 = vsel %vm2031, %v2020, -inf
  %v2068 = vrot.slane %v2067, 4
  %v2069 = vmax.f32 %v2067, %v2068
  %v2070 = vrot.slane %v2069, 2
  %v2071 = vmax.f32 %v2069, %v2070
  %v2072 = vrot.slane %v2071, 1
  %v2073 = vmax.f32 %v2071, %v2072
  %v2074 = vsel %vm2031, %v2021, -inf
  %v2075 = vrot.slane %v2074, 4
  %v2076 = vmax.f32 %v2074, %v2075
  %v2077 = vrot.slane %v2076, 2
  %v2078 = vmax.f32 %v2076, %v2077
  %v2079 = vrot.slane %v2078, 1
  %v2080 = vmax.f32 %v2078, %v2079
  %v2081 = vsel %vm2031, %v2022, -inf
  %v2082 = vrot.slane %v2081, 4
  %v2083 = vmax.f32 %v2081, %v2082
  %v2084 = vrot.slane %v2083, 2
  %v2085 = vmax.f32 %v2083, %v2084
  %v2086 = vrot.slane %v2085, 1
  %v2087 = vmax.f32 %v2085, %v2086
  %v2088 = vsel %vm2031, %v2023, -inf
  %v2089 = vrot.slane %v2088, 4
  %v2090 = vmax.f32 %v2088, %v2089
  %v2091 = vrot.slane %v2090, 2
  %v2092 = vmax.f32 %v2090, %v2091
  %v2093 = vrot.slane %v2092, 1
  %v2094 = vmax.f32 %v2092, %v2093
  %v2095 = vsel %vm2031, %v2024, -inf
  %v2096 = vrot.slane %v2095, 4
  %v2097 = vmax.f32 %v2095, %v2096
  %v2098 = vrot.slane %v2097, 2
  %v2099 = vmax.f32 %v2097, %v2098
  %v2100 = vrot.slane %v2099, 1
  %v2101 = vmax.f32 %v2099, %v2100
  %v2102 = vsel %vm2031, %v2025, -inf
  %v2103 = vrot.slane %v2102, 4
  %v2104 = vmax.f32 %v2102, %v2103
  %v2105 = vrot.slane %v2104, 2
  %v2106 = vmax.f32 %v2104, %v2105
  %v2107 = vrot.slane %v2106, 1
  %v2108 = vmax.f32 %v2106, %v2107
  %v2109 = vsel %vm2031, %v2026, -inf
  %v2110 = vrot.slane %v2109, 4
  %v2111 = vmax.f32 %v2109, %v2110
  %v2112 = vrot.slane %v2111, 2
  %v2113 = vmax.f32 %v2111, %v2112
  %v2114 = vrot.slane %v2113, 1
  %v2115 = vmax.f32 %v2113, %v2114
  %v2116 = vsel %vm2031, %v2027, -inf
  %v2117 = vrot.slane %v2116, 4
  %v2118 = vmax.f32 %v2116, %v2117
  %v2119 = vrot.slane %v2118, 2
  %v2120 = vmax.f32 %v2118, %v2119
  %v2121 = vrot.slane %v2120, 1
  %v2122 = vmax.f32 %v2120, %v2121
  %v2123 = vsel %vm2031, %v2028, -inf
  %v2124 = vrot.slane %v2123, 4
  %v2125 = vmax.f32 %v2123, %v2124
  %v2126 = vrot.slane %v2125, 2
  %v2127 = vmax.f32 %v2125, %v2126
  %v2128 = vrot.slane %v2127, 1
  %v2129 = vmax.f32 %v2127, %v2128
  %v2130 = vsel %vm2031, %v2029, -inf
  %v2131 = vrot.slane %v2130, 4
  %v2132 = vmax.f32 %v2130, %v2131
  %v2133 = vrot.slane %v2132, 2
  %v2134 = vmax.f32 %v2132, %v2133
  %v2135 = vrot.slane %v2134, 1
  %v2136 = vmax.f32 %v2134, %v2135
  %v2137 = vsel %vm2031, %v2030, -inf
  %v2138 = vrot.slane %v2137, 4
  %v2139 = vmax.f32 %v2137, %v2138
  %v2140 = vrot.slane %v2139, 2
  %v2141 = vmax.f32 %v2139, %v2140
  %v2142 = vrot.slane %v2141, 1
  %v2143 = vmax.f32 %v2141, %v2142
  %v2144 = vld [vmem:[%s2] sm:$0xff]
  %v2145 = vld [vmem:[%s2 + $0x8] sm:$0xff]
  %v2146 = vld [vmem:[%s10] sm:$0xff]
  %v2147 = vld [vmem:[%s10 + $0x8] sm:$0xff]
  %v2148 = vld [vmem:[%s10 + $0x10] sm:$0xff]
  %v2149 = vld [vmem:[%s10 + $0x18] sm:$0xff]
  %v2150 = vld [vmem:[%s11] sm:$0xff]
  %v2151 = vld [vmem:[%s11 + $0x8] sm:$0xff]
  %v2152 = vld [vmem:[%s11 + $0x10] sm:$0xff]
  %v2153 = vld [vmem:[%s11 + $0x18] sm:$0xff]
  %v2154 = vld [vmem:[%s11 + $0x20] sm:$0xff]
  %v2155 = vld [vmem:[%s11 + $0x28] sm:$0xff]
  %v2156 = vld [vmem:[%s11 + $0x30] sm:$0x3f]
  %v2157 = vld [vmem:[%s11 + $0x38] sm:$0x3f]
  %vm2174 = vcmask 1041409
  %v2175 = vsel %vm2174, %v2045, %v2038
  %vm2176 = vcmask 1042434
  %v2177 = vsel %vm2176, %v2052, %v2175
  %vm2178 = vcmask 1043459
  %v2179 = vsel %vm2178, %v2059, %v2177
  %vm2180 = vcmask 1044484
  %v2181 = vsel %vm2180, %v2066, %v2179
  %vm2182 = vcmask 1045509
  %v2183 = vsel %vm2182, %v2073, %v2181
  %vm2184 = vcmask 1046534
  %v2185 = vsel %vm2184, %v2080, %v2183
  %vm2186 = vcmask 1047559
  %v2187 = vsel %vm2186, %v2087, %v2185
  %v2188 = vsel %vm2174, %v2101, %v2094
  %v2189 = vsel %vm2176, %v2108, %v2188
  %v2190 = vsel %vm2178, %v2115, %v2189
  %v2191 = vsel %vm2180, %v2122, %v2190
  %v2192 = vsel %vm2182, %v2129, %v2191
  %v2193 = vsel %vm2184, %v2136, %v2192
  %v2194 = vsel %vm2186, %v2143, %v2193
  %v2195 = vsel %vm2031, %v2187, 0
  %v2197 = vsel %vm2031, %v2194, 0
  %v2200 = vsel %vm252, %v2156, 0
  %v2203 = vsel %vm252, %v2157, 0
  %2205 = vmatprep.subr.mxu0 %v2151
  %2206 = vmatpush1.msra.mxu0 %v2150
  %2207 = vmatprep.subr.mxu0 %v2153
  %2208 = vmatpush1.msra.mxu0 %v2152
  %2209 = vmatprep.subr.mxu0 %v2155
  %2210 = vmatpush1.msra.mxu0 %v2154
  %2211 = vmatprep.subr.mxu0 %v2203
  %2212 = vmatpush1.msra.mxu0 %v2200
  %2213 = vmatprep.subr.mxu0 0.0
  %2214 = vmatpush1.msra.mxu0 0.0
  %2215 = vmatprep.subr.mxu0 0.0
  %2216 = vmatpush1.msra.mxu0 0.0
  %2217 = vmatprep.subr.mxu0 0.0
  %2218 = vmatpush1.msra.mxu0 0.0
  %2219 = vmatprep.subr.mxu0 0.0
  %2220 = vmatpush1.msra.mxu0 0.0
  %2221 = vmatprep.subr.mxu0 0.0
  %2222 = vmatpush1.msra.mxu0 0.0
  %2223 = vmatprep.subr.mxu0 0.0
  %2224 = vmatpush1.msra.mxu0 0.0
  %2225 = vmatprep.subr.mxu0 0.0
  %2226 = vmatpush1.msra.mxu0 0.0
  %2227 = vmatprep.subr.mxu0 0.0
  %2228 = vmatpush1.msra.mxu0 0.0
  %2229 = vmatprep.subr.mxu0 0.0
  %2230 = vmatpush1.msra.mxu0 0.0
  %2231 = vmatprep.subr.mxu0 0.0
  %2232 = vmatpush1.msra.mxu0 0.0
  %2233 = vmatprep.subr.mxu0 0.0
  %2234 = vmatpush1.msra.mxu0 0.0
  %2235 = vmatprep.subr.mxu0 0.0
  %2236 = vmatpush1.msra.mxu0 0.0
  %2237 = vmatprep.subr.mxu0 0.0
  %2238 = vmatpush1.msra.mxu0 0.0
  %2239 = vmatprep.subr.mxu0 0.0
  %2240 = vmatpush1.msra.mxu0 0.0
  %2241 = vmatprep.subr.mxu0 0.0
  %2242 = vmatpush1.msra.mxu0 0.0
  %2243 = vmatprep.subr.mxu0 0.0
  %2244 = vmatpush1.msra.mxu0 0.0
  %2245 = vmatprep.subr.mxu0 0.0
  %2246 = vmatpush1.msra.mxu0 0.0
  %2247 = vmatprep.subr.mxu0 0.0
  %2248 = vmatpush1.msra.mxu0 0.0
  %2249 = vmatprep.subr.mxu0 0.0
  %2250 = vmatpush1.msra.mxu0 0.0
  %2251 = vmatprep.subr.mxu0 0.0
  %2252 = vmatpush1.msra.mxu0 0.0
  %2253 = vmatprep.subr.mxu0 0.0
  %2254 = vmatpush1.msra.mxu0 0.0
  %2255 = vmatprep.subr.mxu0 0.0
  %2256 = vmatpush1.msra.mxu0 0.0
  %2257 = vmatprep.subr.mxu0 0.0
  %2258 = vmatpush1.msra.mxu0 0.0
  %2259 = vmatprep.subr.mxu0 0.0
  %2260 = vmatpush1.msra.mxu0 0.0
  %2261 = vmatprep.subr.mxu0 0.0
  %2262 = vmatpush1.msra.mxu0 0.0
  %2263 = vmatprep.subr.mxu0 0.0
  %2264 = vmatpush1.msra.mxu0 0.0
  %2265 = vmatprep.subr.mxu0 0.0
  %2266 = vmatpush1.msra.mxu0 0.0
  %2267 = vmatprep.subr.mxu0 0.0
  %2268 = vmatpush1.msra.mxu0 0.0
  %2269 = vmatprep.mubr.f32.mxu0 0.0
  %2270 = vmatmul.mubr.f32.gmra.mrb[0].mxu0 %v2195
  %v2271 = vpop.f32.mrb[0].mxu0
  %v2272 = vadd.f32 0.0, %v2271
  %v2273 = vpop.f32.mrb[0].mxu0
  %v2274 = vadd.f32 0.0, %v2273
  %2275 = vmatprep.mubr.f32.mxu0 0.0
  %2276 = vmatmul.mubr.f32.gmra.mrb[0].mxu0 %v2197
  %v2277 = vpop.f32.mrb[0].mxu0
  %v2278 = vadd.f32 0.0, %v2277
  %v2279 = vpop.f32.mrb[0].mxu0
  %v2280 = vadd.f32 0.0, %v2279
  %2281 = vdwg.mxu0
  %vm2282 = vcmask 130048
  %v2284 = vsel %vm2282, %v2144, 0
  %v2287 = vsel %vm2282, %v2145, 0
  %2289 = vmatprep.subr.mxu0 %v2147
  %2290 = vmatpush1.msra.mxu0 %v2146
  %2291 = vmatprep.subr.mxu0 %v2149
  %2292 = vmatpush1.msra.mxu0 %v2148
  %2293 = vmatprep.subr.mxu0 0.0
  %2294 = vmatpush1.msra.mxu0 0.0
  %2295 = vmatprep.subr.mxu0 0.0
  %2296 = vmatpush1.msra.mxu0 0.0
  %2297 = vmatprep.subr.mxu0 0.0
  %2298 = vmatpush1.msra.mxu0 0.0
  %2299 = vmatprep.subr.mxu0 0.0
  %2300 = vmatpush1.msra.mxu0 0.0
  %2301 = vmatprep.subr.mxu0 0.0
  %2302 = vmatpush1.msra.mxu0 0.0
  %2303 = vmatprep.subr.mxu0 0.0
  %2304 = vmatpush1.msra.mxu0 0.0
  %2305 = vmatprep.subr.mxu0 0.0
  %2306 = vmatpush1.msra.mxu0 0.0
  %2307 = vmatprep.subr.mxu0 0.0
  %2308 = vmatpush1.msra.mxu0 0.0
  %2309 = vmatprep.subr.mxu0 0.0
  %2310 = vmatpush1.msra.mxu0 0.0
  %2311 = vmatprep.subr.mxu0 0.0
  %2312 = vmatpush1.msra.mxu0 0.0
  %2313 = vmatprep.subr.mxu0 0.0
  %2314 = vmatpush1.msra.mxu0 0.0
  %2315 = vmatprep.subr.mxu0 0.0
  %2316 = vmatpush1.msra.mxu0 0.0
  %2317 = vmatprep.subr.mxu0 0.0
  %2318 = vmatpush1.msra.mxu0 0.0
  %2319 = vmatprep.subr.mxu0 0.0
  %2320 = vmatpush1.msra.mxu0 0.0
  %2321 = vmatprep.subr.mxu0 0.0
  %2322 = vmatpush1.msra.mxu0 0.0
  %2323 = vmatprep.subr.mxu0 0.0
  %2324 = vmatpush1.msra.mxu0 0.0
  %2325 = vmatprep.subr.mxu0 0.0
  %2326 = vmatpush1.msra.mxu0 0.0
  %2327 = vmatprep.subr.mxu0 0.0
  %2328 = vmatpush1.msra.mxu0 0.0
  %2329 = vmatprep.subr.mxu0 0.0
  %2330 = vmatpush1.msra.mxu0 0.0
  %2331 = vmatprep.subr.mxu0 0.0
  %2332 = vmatpush1.msra.mxu0 0.0
  %2333 = vmatprep.subr.mxu0 0.0
  %2334 = vmatpush1.msra.mxu0 0.0
  %2335 = vmatprep.subr.mxu0 0.0
  %2336 = vmatpush1.msra.mxu0 0.0
  %2337 = vmatprep.subr.mxu0 0.0
  %2338 = vmatpush1.msra.mxu0 0.0
  %2339 = vmatprep.subr.mxu0 0.0
  %2340 = vmatpush1.msra.mxu0 0.0
  %2341 = vmatprep.subr.mxu0 0.0
  %2342 = vmatpush1.msra.mxu0 0.0
  %2343 = vmatprep.subr.mxu0 0.0
  %2344 = vmatpush1.msra.mxu0 0.0
  %2345 = vmatprep.subr.mxu0 0.0
  %2346 = vmatpush1.msra.mxu0 0.0
  %2347 = vmatprep.subr.mxu0 0.0
  %2348 = vmatpush1.msra.mxu0 0.0
  %2349 = vmatprep.subr.mxu0 0.0
  %2350 = vmatpush1.msra.mxu0 0.0
  %2351 = vmatprep.subr.mxu0 0.0
  %2352 = vmatpush1.msra.mxu0 0.0
  %2353 = vmatprep.mubr.f32.mxu0 0.0
  %2354 = vmatmul.mubr.f32.gmra.mrb[0].mxu0 %v2284
  %v2355 = vpop.f32.mrb[0].mxu0
  %v2356 = vadd.f32 %v2272, %v2355
  %v2357 = vpop.f32.mrb[0].mxu0
  %v2358 = vadd.f32 %v2274, %v2357
  %2359 = vmatprep.mubr.f32.mxu0 0.0
  %2360 = vmatmul.mubr.f32.gmra.mrb[0].mxu0 %v2287
  %v2361 = vpop.f32.mrb[0].mxu0
  %v2362 = vadd.f32 %v2278, %v2361
  %v2363 = vpop.f32.mrb[0].mxu0
  %v2364 = vadd.f32 %v2280, %v2363
  %2365 = vdwg.mxu0
  %v2366 = vld [vmem:[%s3] sm:$0xff]
  %v2367 = vld [vmem:[%s3 + $0x8] sm:$0xff]
  %v2368 = vld [vmem:[%s12] sm:$0x3]
  %2370 = vset.pattern.permute.xlu0 0
  %2371 = vperm.xlu0 %2370, %v2366
  %v2372 = vpop.permute.xlu0 %2371
  %2375 = vset.pattern.permute.xlu0 0
  %2376 = vperm.xlu0 %2375, %v2367
  %v2377 = vpop.permute.xlu0 %2376
  %v2380 = vlaneseq
  %v2381 = vshrl.u32 %v2380, 7
  %v2382 = vsub.s32 0, %v2381
  %v2383 = vrot.slane %v2368, %v2382
  %v2384 = vlaneseq
  %v2385 = vshrl.u32 %v2384, 7
  %v2386 = vsub.s32 1, %v2385
  %v2387 = vrot.slane %v2368, %v2386
  %v2390 = vmul.f32 %v2372, %v2383
  %v2391 = vmul.f32 %v2372, %v2387
  %v2392 = vmul.f32 %v2377, %v2383
  %v2393 = vmul.f32 %v2377, %v2387
  %v2394 = vadd.f32 %v2356, %v2390
  %v2395 = vadd.f32 %v2358, %v2391
  %v2396 = vadd.f32 %v2362, %v2392
  %v2397 = vadd.f32 %v2364, %v2393
  %v2398 = vld [vmem:[%s13] sm:$0x3]
  %v2400 = vlaneseq
  %v2401 = vshrl.u32 %v2400, 7
  %v2402 = vsub.s32 0, %v2401
  %v2403 = vrot.slane %v2398, %v2402
  %v2404 = vlaneseq
  %v2405 = vshrl.u32 %v2404, 7
  %v2406 = vsub.s32 1, %v2405
  %v2407 = vrot.slane %v2398, %v2406
  %v2410 = vadd.f32 %v2394, %v2403
  %v2411 = vadd.f32 %v2395, %v2407
  %v2412 = vadd.f32 %v2396, %v2403
  %v2413 = vadd.f32 %v2397, %v2407
  %v2414 = vld [vmem:[%s4] sm:$0xff]
  %v2415 = vld [vmem:[%s4 + $0x8] sm:$0xff]
  %v2416 = vld [vmem:[%s14] sm:$0xff]
  %v2417 = vld [vmem:[%s14 + $0x8] sm:$0xff]
  %v2418 = vld [vmem:[%s14 + $0x10] sm:$0xff]
  %v2419 = vld [vmem:[%s14 + $0x18] sm:$0xff]
  %v2420 = vld [vmem:[%s14 + $0x20] sm:$0xff]
  %v2421 = vld [vmem:[%s14 + $0x28] sm:$0xff]
  %v2422 = vld [vmem:[%s14 + $0x30] sm:$0xff]
  %v2423 = vld [vmem:[%s14 + $0x38] sm:$0xff]
  %vm2424 = vcmask 261120
  %v2426 = vsel %vm2424, 0.0, 0
  %2428 = vmatprep.subr.mxu0 %v2417
  %2429 = vmatpush1.msra.mxu0 %v2416
  %2430 = vmatprep.subr.mxu0 %v2419
  %2431 = vmatpush1.msra.mxu0 %v2418
  %2432 = vmatprep.subr.mxu0 %v2421
  %2433 = vmatpush1.msra.mxu0 %v2420
  %2434 = vmatprep.subr.mxu0 %v2423
  %2435 = vmatpush1.msra.mxu0 %v2422
  %2436 = vmatprep.subr.mxu0 0.0
  %2437 = vmatpush1.msra.mxu0 0.0
  %2438 = vmatprep.subr.mxu0 0.0
  %2439 = vmatpush1.msra.mxu0 0.0
  %2440 = vmatprep.subr.mxu0 0.0
  %2441 = vmatpush1.msra.mxu0 0.0
  %2442 = vmatprep.subr.mxu0 0.0
  %2443 = vmatpush1.msra.mxu0 0.0
  %2444 = vmatprep.subr.mxu0 0.0
  %2445 = vmatpush1.msra.mxu0 0.0
  %2446 = vmatprep.subr.mxu0 0.0
  %2447 = vmatpush1.msra.mxu0 0.0
  %2448 = vmatprep.subr.mxu0 0.0
  %2449 = vmatpush1.msra.mxu0 0.0
  %2450 = vmatprep.subr.mxu0 0.0
  %2451 = vmatpush1.msra.mxu0 0.0
  %2452 = vmatprep.subr.mxu0 0.0
  %2453 = vmatpush1.msra.mxu0 0.0
  %2454 = vmatprep.subr.mxu0 0.0
  %2455 = vmatpush1.msra.mxu0 0.0
  %2456 = vmatprep.subr.mxu0 0.0
  %2457 = vmatpush1.msra.mxu0 0.0
  %2458 = vmatprep.subr.mxu0 0.0
  %2459 = vmatpush1.msra.mxu0 0.0
  %2460 = vmatprep.subr.mxu0 0.0
  %2461 = vmatpush1.msra.mxu0 0.0
  %2462 = vmatprep.subr.mxu0 0.0
  %2463 = vmatpush1.msra.mxu0 0.0
  %2464 = vmatprep.subr.mxu0 0.0
  %2465 = vmatpush1.msra.mxu0 0.0
  %2466 = vmatprep.subr.mxu0 0.0
  %2467 = vmatpush1.msra.mxu0 0.0
  %2468 = vmatprep.subr.mxu0 0.0
  %2469 = vmatpush1.msra.mxu0 0.0
  %2470 = vmatprep.subr.mxu0 0.0
  %2471 = vmatpush1.msra.mxu0 0.0
  %2472 = vmatprep.subr.mxu0 0.0
  %2473 = vmatpush1.msra.mxu0 0.0
  %2474 = vmatprep.subr.mxu0 0.0
  %2475 = vmatpush1.msra.mxu0 0.0
  %2476 = vmatprep.subr.mxu0 0.0
  %2477 = vmatpush1.msra.mxu0 0.0
  %2478 = vmatprep.subr.mxu0 0.0
  %2479 = vmatpush1.msra.mxu0 0.0
  %2480 = vmatprep.subr.mxu0 0.0
  %2481 = vmatpush1.msra.mxu0 0.0
  %2482 = vmatprep.subr.mxu0 0.0
  %2483 = vmatpush1.msra.mxu0 0.0
  %2484 = vmatprep.subr.mxu0 0.0
  %2485 = vmatpush1.msra.mxu0 0.0
  %2486 = vmatprep.subr.mxu0 0.0
  %2487 = vmatpush1.msra.mxu0 0.0
  %2488 = vmatprep.subr.mxu0 0.0
  %2489 = vmatpush1.msra.mxu0 0.0
  %2490 = vmatprep.subr.mxu0 0.0
  %2491 = vmatpush1.msra.mxu0 0.0
  %2492 = vmatprep.mubr.f32.mxu0 0.0
  %2493 = vmatmul.mubr.f32.gmra.mrb[0].mxu0 %v2426
  %v2494 = vpop.f32.mrb[0].mxu0
  %v2495 = vadd.f32 0.0, %v2494
  %v2496 = vpop.f32.mrb[0].mxu0
  %v2497 = vadd.f32 0.0, %v2496
  %2498 = vdwg.mxu0
  %v2499 = vadd.f32 %v2410, %v2495
  %v2501 = vrot.slane %v2497, 4
  %v2503 = vadd.f32 %v2413, %v2501
  %v2504 = vxor.u32 %v2499, 2147483648
  %v2505 = vmul.f32 %v2504, 1.442695
  %v2506 = vpow.pop %v2505
  %v2507 = vadd.f32 %v2506, 1.0
  %v2508 = vrcp.pop %v2507
  %v2509 = vmul.f32 1.0, %v2508
  %v2510 = vtanh.pop %v2499
  %v2511 = vmul.f32 %v2509, 0.0
  %2513 = vrot.lane.b32.xlu0 %v2510, 64
  %v2514 = vpop.permute.xlu0 %2513
  %v2516 = vmul.f32 %v2509, %v2514
  %2518 = vrot.lane.b32.xlu0 %v2516, 32
  %v2519 = vpop.permute.xlu0 %2518
  %v2521 = vadd.f32 %v2511, %v2519
  %v2522 = vtanh.pop %v2521
  %2524 = vrot.lane.b32.xlu0 %v2522, 64
  %v2525 = vpop.permute.xlu0 %2524
  %v2527 = vmul.f32 %v2509, %v2525
  %v2528 = vxor.u32 %v2503, 2147483648
  %v2529 = vmul.f32 %v2528, 1.442695
  %v2530 = vpow.pop %v2529
  %v2531 = vadd.f32 %v2530, 1.0
  %v2532 = vrcp.pop %v2531
  %v2533 = vmul.f32 1.0, %v2532
  %v2534 = vtanh.pop %v2503
  %v2535 = vmul.f32 %v2533, 0.0
  %2537 = vrot.lane.b32.xlu0 %v2534, 64
  %v2538 = vpop.permute.xlu0 %2537
  %v2540 = vmul.f32 %v2533, %v2538
  %2542 = vrot.lane.b32.xlu0 %v2540, 32
  %v2543 = vpop.permute.xlu0 %2542
  %v2545 = vadd.f32 %v2535, %v2543
  %v2546 = vtanh.pop %v2545
  %2548 = vrot.lane.b32.xlu0 %v2546, 64
  %v2549 = vpop.permute.xlu0 %2548
  %v2551 = vmul.f32 %v2533, %v2549
  %2553 = vset.pattern.permute.xlu0 0
  %2554 = vperm.xlu0 %2553, %v2414
  %v2555 = vpop.permute.xlu0 %2554
  %v2557 = vmul.f32 %v2555, %v2527
  %v2558 = vsub.f32 1.0, %v2414
  %2560 = vset.pattern.permute.xlu0 0
  %2561 = vperm.xlu0 %2560, %v2558
  %v2562 = vpop.permute.xlu0 %2561
  %v2564 = vmul.f32 %v2562, 0.0
  %v2565 = vadd.f32 %v2557, %v2564
  %v2566 = vmul.f32 %v2555, %v2521
  %v2567 = vadd.f32 %v2566, %v2564
  %2569 = vset.pattern.permute.xlu0 0
  %2570 = vperm.xlu0 %2569, %v2415
  %v2571 = vpop.permute.xlu0 %2570
  %v2573 = vmul.f32 %v2571, %v2551
  %v2574 = vsub.f32 1.0, %v2415
  %2576 = vset.pattern.permute.xlu0 0
  %2577 = vperm.xlu0 %2576, %v2574
  %v2578 = vpop.permute.xlu0 %2577
  %v2580 = vmul.f32 %v2578, 0.0
  %v2581 = vadd.f32 %v2573, %v2580
  %v2582 = vmul.f32 %v2571, %v2545
  %v2583 = vadd.f32 %v2582, %v2580
  %v2585 = vrot.slane %v2581, 4
  %vm2587 = vcmask 1041408
  %v2588 = vsel %vm2587, %v2565, %v2585
  %2590 = vrot.lane.b32.xlu0 %v2588, 32
  %v2591 = vpop.permute.xlu0 %2590
  %v2592 = vsel %vm2424, %v2591, 0
  %2594 = vmatprep.subr.mxu0 %v2417
  %2595 = vmatpush1.msra.mxu0 %v2416
  %2596 = vmatprep.subr.mxu0 %v2419
  %2597 = vmatpush1.msra.mxu0 %v2418
  %2598 = vmatprep.subr.mxu0 %v2421
  %2599 = vmatpush1.msra.mxu0 %v2420
  %2600 = vmatprep.subr.mxu0 %v2423
  %2601 = vmatpush1.msra.mxu0 %v2422
  %2602 = vmatprep.subr.mxu0 0.0
  %2603 = vmatpush1.msra.mxu0 0.0
  %2604 = vmatprep.subr.mxu0 0.0
  %2605 = vmatpush1.msra.mxu0 0.0
  %2606 = vmatprep.subr.mxu0 0.0
  %2607 = vmatpush1.msra.mxu0 0.0
  %2608 = vmatprep.subr.mxu0 0.0
  %2609 = vmatpush1.msra.mxu0 0.0
  %2610 = vmatprep.subr.mxu0 0.0
  %2611 = vmatpush1.msra.mxu0 0.0
  %2612 = vmatprep.subr.mxu0 0.0
  %2613 = vmatpush1.msra.mxu0 0.0
  %2614 = vmatprep.subr.mxu0 0.0
  %2615 = vmatpush1.msra.mxu0 0.0
  %2616 = vmatprep.subr.mxu0 0.0
  %2617 = vmatpush1.msra.mxu0 0.0
  %2618 = vmatprep.subr.mxu0 0.0
  %2619 = vmatpush1.msra.mxu0 0.0
  %2620 = vmatprep.subr.mxu0 0.0
  %2621 = vmatpush1.msra.mxu0 0.0
  %2622 = vmatprep.subr.mxu0 0.0
  %2623 = vmatpush1.msra.mxu0 0.0
  %2624 = vmatprep.subr.mxu0 0.0
  %2625 = vmatpush1.msra.mxu0 0.0
  %2626 = vmatprep.subr.mxu0 0.0
  %2627 = vmatpush1.msra.mxu0 0.0
  %2628 = vmatprep.subr.mxu0 0.0
  %2629 = vmatpush1.msra.mxu0 0.0
  %2630 = vmatprep.subr.mxu0 0.0
  %2631 = vmatpush1.msra.mxu0 0.0
  %2632 = vmatprep.subr.mxu0 0.0
  %2633 = vmatpush1.msra.mxu0 0.0
  %2634 = vmatprep.subr.mxu0 0.0
  %2635 = vmatpush1.msra.mxu0 0.0
  %2636 = vmatprep.subr.mxu0 0.0
  %2637 = vmatpush1.msra.mxu0 0.0
  %2638 = vmatprep.subr.mxu0 0.0
  %2639 = vmatpush1.msra.mxu0 0.0
  %2640 = vmatprep.subr.mxu0 0.0
  %2641 = vmatpush1.msra.mxu0 0.0
  %2642 = vmatprep.subr.mxu0 0.0
  %2643 = vmatpush1.msra.mxu0 0.0
  %2644 = vmatprep.subr.mxu0 0.0
  %2645 = vmatpush1.msra.mxu0 0.0
  %2646 = vmatprep.subr.mxu0 0.0
  %2647 = vmatpush1.msra.mxu0 0.0
  %2648 = vmatprep.subr.mxu0 0.0
  %2649 = vmatpush1.msra.mxu0 0.0
  %2650 = vmatprep.subr.mxu0 0.0
  %2651 = vmatpush1.msra.mxu0 0.0
  %2652 = vmatprep.subr.mxu0 0.0
  %2653 = vmatpush1.msra.mxu0 0.0
  %2654 = vmatprep.subr.mxu0 0.0
  %2655 = vmatpush1.msra.mxu0 0.0
  %2656 = vmatprep.subr.mxu0 0.0
  %2657 = vmatpush1.msra.mxu0 0.0
  %2658 = vmatprep.mubr.f32.mxu0 0.0
  %2659 = vmatmul.mubr.f32.gmra.mrb[0].mxu0 %v2592
  %v2660 = vpop.f32.mrb[0].mxu0
  %v2661 = vadd.f32 0.0, %v2660
  %v2662 = vpop.f32.mrb[0].mxu0
  %v2663 = vadd.f32 0.0, %v2662
  %2664 = vdwg.mxu0
  %v2666 = vrot.slane %v2661, 6
  %v2668 = vadd.f32 %v2410, %v2666
  %v2670 = vrot.slane %v2663, 6
  %v2672 = vadd.f32 %v2413, %v2670
  %v2673 = vxor.u32 %v2668, 2147483648
  %v2674 = vmul.f32 %v2673, 1.442695
  %v2675 = vpow.pop %v2674
  %v2676 = vadd.f32 %v2675, 1.0
  %v2677 = vrcp.pop %v2676
  %v2678 = vmul.f32 1.0, %v2677
  %v2679 = vtanh.pop %v2668
  %v2681 = vrot.slane %v2567, 6
  %v2683 = vmul.f32 %v2678, %v2681
  %2685 = vrot.lane.b32.xlu0 %v2679, 64
  %v2686 = vpop.permute.xlu0 %2685
  %v2688 = vmul.f32 %v2678, %v2686
  %2690 = vrot.lane.b32.xlu0 %v2688, 32
  %v2691 = vpop.permute.xlu0 %2690
  %v2693 = vadd.f32 %v2683, %v2691
  %v2694 = vtanh.pop %v2693
  %2696 = vrot.lane.b32.xlu0 %v2694, 64
  %v2697 = vpop.permute.xlu0 %2696
  %v2699 = vmul.f32 %v2678, %v2697
  %v2700 = vxor.u32 %v2672, 2147483648
  %v2701 = vmul.f32 %v2700, 1.442695
  %v2702 = vpow.pop %v2701
  %v2703 = vadd.f32 %v2702, 1.0
  %v2704 = vrcp.pop %v2703
  %v2705 = vmul.f32 1.0, %v2704
  %v2706 = vtanh.pop %v2672
  %v2708 = vrot.slane %v2583, 2
  %v2710 = vmul.f32 %v2705, %v2708
  %2712 = vrot.lane.b32.xlu0 %v2706, 64
  %v2713 = vpop.permute.xlu0 %2712
  %v2715 = vmul.f32 %v2705, %v2713
  %2717 = vrot.lane.b32.xlu0 %v2715, 32
  %v2718 = vpop.permute.xlu0 %2717
  %v2720 = vadd.f32 %v2710, %v2718
  %v2721 = vtanh.pop %v2720
  %2723 = vrot.lane.b32.xlu0 %v2721, 64
  %v2724 = vpop.permute.xlu0 %2723
  %v2726 = vmul.f32 %v2705, %v2724
  %v2727 = vmul.f32 %v2555, %v2699
  %v2729 = vrot.slane %v2565, 6
  %2730 = vrot.lane.b32.xlu0 %v2729, 32
  %v2731 = vpop.permute.xlu0 %2730
  %v2733 = vmul.f32 %v2562, %v2731
  %2735 = vrot.lane.b32.xlu0 %v2733, 96
  %v2736 = vpop.permute.xlu0 %2735
  %v2738 = vadd.f32 %v2727, %v2736
  %v2739 = vmul.f32 %v2555, %v2693
  %2740 = vrot.lane.b32.xlu0 %v2681, 96
  %v2741 = vpop.permute.xlu0 %2740
  %v2743 = vmul.f32 %v2562, %v2741
  %2745 = vrot.lane.b32.xlu0 %v2743, 32
  %v2746 = vpop.permute.xlu0 %2745
  %v2748 = vadd.f32 %v2739, %v2746
  %v2749 = vmul.f32 %v2571, %v2726
  %v2750 = vrot.slane %v2581, 2
  %2751 = vrot.lane.b32.xlu0 %v2750, 32
  %v2752 = vpop.permute.xlu0 %2751
  %v2754 = vmul.f32 %v2578, %v2752
  %2756 = vrot.lane.b32.xlu0 %v2754, 96
  %v2757 = vpop.permute.xlu0 %2756
  %v2759 = vadd.f32 %v2749, %v2757
  %v2760 = vmul.f32 %v2571, %v2720
  %2761 = vrot.lane.b32.xlu0 %v2708, 96
  %v2762 = vpop.permute.xlu0 %2761
  %v2764 = vmul.f32 %v2578, %v2762
  %2766 = vrot.lane.b32.xlu0 %v2764, 32
  %v2767 = vpop.permute.xlu0 %2766
  %v2769 = vadd.f32 %v2760, %v2767
  %v2771 = vrot.slane %v2738, 2
  %v2774 = vrot.slane %v2759, 2
  %v2776 = vsel %vm2587, %v2771, %v2774
  %2778 = vrot.lane.b32.xlu0 %v2776, 32
  %v2779 = vpop.permute.xlu0 %2778
  %v2780 = vsel %vm2424, %v2779, 0
  %2782 = vmatprep.subr.mxu0 %v2417
  %2783 = vmatpush1.msra.mxu0 %v2416
  %2784 = vmatprep.subr.mxu0 %v2419
  %2785 = vmatpush1.msra.mxu0 %v2418
  %2786 = vmatprep.subr.mxu0 %v2421
  %2787 = vmatpush1.msra.mxu0 %v2420
  %2788 = vmatprep.subr.mxu0 %v2423
  %2789 = vmatpush1.msra.mxu0 %v2422
  %2790 = vmatprep.subr.mxu0 0.0
  %2791 = vmatpush1.msra.mxu0 0.0
  %2792 = vmatprep.subr.mxu0 0.0
  %2793 = vmatpush1.msra.mxu0 0.0
  %2794 = vmatprep.subr.mxu0 0.0
  %2795 = vmatpush1.msra.mxu0 0.0
  %2796 = vmatprep.subr.mxu0 0.0
  %2797 = vmatpush1.msra.mxu0 0.0
  %2798 = vmatprep.subr.mxu0 0.0
  %2799 = vmatpush1.msra.mxu0 0.0
  %2800 = vmatprep.subr.mxu0 0.0
  %2801 = vmatpush1.msra.mxu0 0.0
  %2802 = vmatprep.subr.mxu0 0.0
  %2803 = vmatpush1.msra.mxu0 0.0
  %2804 = vmatprep.subr.mxu0 0.0
  %2805 = vmatpush1.msra.mxu0 0.0
  %2806 = vmatprep.subr.mxu0 0.0
  %2807 = vmatpush1.msra.mxu0 0.0
  %2808 = vmatprep.subr.mxu0 0.0
  %2809 = vmatpush1.msra.mxu0 0.0
  %2810 = vmatprep.subr.mxu0 0.0
  %2811 = vmatpush1.msra.mxu0 0.0
  %2812 = vmatprep.subr.mxu0 0.0
  %2813 = vmatpush1.msra.mxu0 0.0
  %2814 = vmatprep.subr.mxu0 0.0
  %2815 = vmatpush1.msra.mxu0 0.0
  %2816 = vmatprep.subr.mxu0 0.0
  %2817 = vmatpush1.msra.mxu0 0.0
  %2818 = vmatprep.subr.mxu0 0.0
  %2819 = vmatpush1.msra.mxu0 0.0
  %2820 = vmatprep.subr.mxu0 0.0
  %2821 = vmatpush1.msra.mxu0 0.0
  %2822 = vmatprep.subr.mxu0 0.0
  %2823 = vmatpush1.msra.mxu0 0.0
  %2824 = vmatprep.subr.mxu0 0.0
  %2825 = vmatpush1.msra.mxu0 0.0
  %2826 = vmatprep.subr.mxu0 0.0
  %2827 = vmatpush1.msra.mxu0 0.0
  %2828 = vmatprep.subr.mxu0 0.0
  %2829 = vmatpush1.msra.mxu0 0.0
  %2830 = vmatprep.subr.mxu0 0.0
  %2831 = vmatpush1.msra.mxu0 0.0
  %2832 = vmatprep.subr.mxu0 0.0
  %2833 = vmatpush1.msra.mxu0 0.0
  %2834 = vmatprep.subr.mxu0 0.0
  %2835 = vmatpush1.msra.mxu0 0.0
  %2836 = vmatprep.subr.mxu0 0.0
  %2837 = vmatpush1.msra.mxu0 0.0
  %2838 = vmatprep.subr.mxu0 0.0
  %2839 = vmatpush1.msra.mxu0 0.0
  %2840 = vmatprep.subr.mxu0 0.0
  %2841 = vmatpush1.msra.mxu0 0.0
  %2842 = vmatprep.subr.mxu0 0.0
  %2843 = vmatpush1.msra.mxu0 0.0
  %2844 = vmatprep.subr.mxu0 0.0
  %2845 = vmatpush1.msra.mxu0 0.0
  %2846 = vmatprep.mubr.f32.mxu0 0.0
  %2847 = vmatmul.mubr.f32.gmra.mrb[0].mxu0 %v2780
  %v2848 = vpop.f32.mrb[0].mxu0
  %v2849 = vadd.f32 0.0, %v2848
  %v2850 = vpop.f32.mrb[0].mxu0
  %v2851 = vadd.f32 0.0, %v2850
  %2852 = vdwg.mxu0
  %v2854 = vrot.slane %v2849, 4
  %v2856 = vadd.f32 %v2410, %v2854
  %v2857 = vadd.f32 %v2413, %v2851
  %v2858 = vxor.u32 %v2856, 2147483648
  %v2859 = vmul.f32 %v2858, 1.442695
  %v2860 = vpow.pop %v2859
  %v2861 = vadd.f32 %v2860, 1.0
  %v2862 = vrcp.pop %v2861
  %v2863 = vmul.f32 1.0, %v2862
  %v2864 = vtanh.pop %v2856
  %v2866 = vrot.slane %v2748, 6
  %v2868 = vmul.f32 %v2863, %v2866
  %2870 = vrot.lane.b32.xlu0 %v2864, 64
  %v2871 = vpop.permute.xlu0 %2870
  %v2873 = vmul.f32 %v2863, %v2871
  %2875 = vrot.lane.b32.xlu0 %v2873, 32
  %v2876 = vpop.permute.xlu0 %2875
  %v2878 = vadd.f32 %v2868, %v2876
  %v2879 = vtanh.pop %v2878
  %2881 = vrot.lane.b32.xlu0 %v2879, 64
  %v2882 = vpop.permute.xlu0 %2881
  %v2884 = vmul.f32 %v2863, %v2882
  %v2885 = vxor.u32 %v2857, 2147483648
  %v2886 = vmul.f32 %v2885, 1.442695
  %v2887 = vpow.pop %v2886
  %v2888 = vadd.f32 %v2887, 1.0
  %v2889 = vrcp.pop %v2888
  %v2890 = vmul.f32 1.0, %v2889
  %v2891 = vtanh.pop %v2857
  %v2893 = vrot.slane %v2769, 2
  %v2895 = vmul.f32 %v2890, %v2893
  %2897 = vrot.lane.b32.xlu0 %v2891, 64
  %v2898 = vpop.permute.xlu0 %2897
  %v2900 = vmul.f32 %v2890, %v2898
  %2902 = vrot.lane.b32.xlu0 %v2900, 32
  %v2903 = vpop.permute.xlu0 %2902
  %v2905 = vadd.f32 %v2895, %v2903
  %v2906 = vtanh.pop %v2905
  %2908 = vrot.lane.b32.xlu0 %v2906, 64
  %v2909 = vpop.permute.xlu0 %2908
  %v2911 = vmul.f32 %v2890, %v2909
  %v2912 = vmul.f32 %v2555, %v2884
  %v2913 = vrot.slane %v2738, 6
  %2914 = vrot.lane.b32.xlu0 %v2913, 32
  %v2915 = vpop.permute.xlu0 %2914
  %v2917 = vmul.f32 %v2562, %v2915
  %2919 = vrot.lane.b32.xlu0 %v2917, 96
  %v2920 = vpop.permute.xlu0 %2919
  %v2922 = vadd.f32 %v2912, %v2920
  %v2923 = vmul.f32 %v2555, %v2878
  %2924 = vrot.lane.b32.xlu0 %v2866, 96
  %v2925 = vpop.permute.xlu0 %2924
  %v2927 = vmul.f32 %v2562, %v2925
  %2929 = vrot.lane.b32.xlu0 %v2927, 32
  %v2930 = vpop.permute.xlu0 %2929
  %v2932 = vadd.f32 %v2923, %v2930
  %v2933 = vmul.f32 %v2571, %v2911
  %2934 = vrot.lane.b32.xlu0 %v2774, 32
  %v2935 = vpop.permute.xlu0 %2934
  %v2937 = vmul.f32 %v2578, %v2935
  %2939 = vrot.lane.b32.xlu0 %v2937, 96
  %v2940 = vpop.permute.xlu0 %2939
  %v2942 = vadd.f32 %v2933, %v2940
  %v2943 = vmul.f32 %v2571, %v2905
  %2944 = vrot.lane.b32.xlu0 %v2893, 96
  %v2945 = vpop.permute.xlu0 %2944
  %v2947 = vmul.f32 %v2578, %v2945
  %2949 = vrot.lane.b32.xlu0 %v2947, 32
  %v2950 = vpop.permute.xlu0 %2949
  %v2952 = vadd.f32 %v2943, %v2950
  %v2954 = vrot.slane %v2922, 4
  %v2956 = vsel %vm2587, %v2954, %v2942
  %2958 = vrot.lane.b32.xlu0 %v2956, 32
  %v2959 = vpop.permute.xlu0 %2958
  %v2960 = vsel %vm2424, %v2959, 0
  %2962 = vmatprep.subr.mxu0 %v2417
  %2963 = vmatpush1.msra.mxu0 %v2416
  %2964 = vmatprep.subr.mxu0 %v2419
  %2965 = vmatpush1.msra.mxu0 %v2418
  %2966 = vmatprep.subr.mxu0 %v2421
  %2967 = vmatpush1.msra.mxu0 %v2420
  %2968 = vmatprep.subr.mxu0 %v2423
  %2969 = vmatpush1.msra.mxu0 %v2422
  %2970 = vmatprep.subr.mxu0 0.0
  %2971 = vmatpush1.msra.mxu0 0.0
  %2972 = vmatprep.subr.mxu0 0.0
  %2973 = vmatpush1.msra.mxu0 0.0
  %2974 = vmatprep.subr.mxu0 0.0
  %2975 = vmatpush1.msra.mxu0 0.0
  %2976 = vmatprep.subr.mxu0 0.0
  %2977 = vmatpush1.msra.mxu0 0.0
  %2978 = vmatprep.subr.mxu0 0.0
  %2979 = vmatpush1.msra.mxu0 0.0
  %2980 = vmatprep.subr.mxu0 0.0
  %2981 = vmatpush1.msra.mxu0 0.0
  %2982 = vmatprep.subr.mxu0 0.0
  %2983 = vmatpush1.msra.mxu0 0.0
  %2984 = vmatprep.subr.mxu0 0.0
  %2985 = vmatpush1.msra.mxu0 0.0
  %2986 = vmatprep.subr.mxu0 0.0
  %2987 = vmatpush1.msra.mxu0 0.0
  %2988 = vmatprep.subr.mxu0 0.0
  %2989 = vmatpush1.msra.mxu0 0.0
  %2990 = vmatprep.subr.mxu0 0.0
  %2991 = vmatpush1.msra.mxu0 0.0
  %2992 = vmatprep.subr.mxu0 0.0
  %2993 = vmatpush1.msra.mxu0 0.0
  %2994 = vmatprep.subr.mxu0 0.0
  %2995 = vmatpush1.msra.mxu0 0.0
  %2996 = vmatprep.subr.mxu0 0.0
  %2997 = vmatpush1.msra.mxu0 0.0
  %2998 = vmatprep.subr.mxu0 0.0
  %2999 = vmatpush1.msra.mxu0 0.0
  %3000 = vmatprep.subr.mxu0 0.0
  %3001 = vmatpush1.msra.mxu0 0.0
  %3002 = vmatprep.subr.mxu0 0.0
  %3003 = vmatpush1.msra.mxu0 0.0
  %3004 = vmatprep.subr.mxu0 0.0
  %3005 = vmatpush1.msra.mxu0 0.0
  %3006 = vmatprep.subr.mxu0 0.0
  %3007 = vmatpush1.msra.mxu0 0.0
  %3008 = vmatprep.subr.mxu0 0.0
  %3009 = vmatpush1.msra.mxu0 0.0
  %3010 = vmatprep.subr.mxu0 0.0
  %3011 = vmatpush1.msra.mxu0 0.0
  %3012 = vmatprep.subr.mxu0 0.0
  %3013 = vmatpush1.msra.mxu0 0.0
  %3014 = vmatprep.subr.mxu0 0.0
  %3015 = vmatpush1.msra.mxu0 0.0
  %3016 = vmatprep.subr.mxu0 0.0
  %3017 = vmatpush1.msra.mxu0 0.0
  %3018 = vmatprep.subr.mxu0 0.0
  %3019 = vmatpush1.msra.mxu0 0.0
  %3020 = vmatprep.subr.mxu0 0.0
  %3021 = vmatpush1.msra.mxu0 0.0
  %3022 = vmatprep.subr.mxu0 0.0
  %3023 = vmatpush1.msra.mxu0 0.0
  %3024 = vmatprep.subr.mxu0 0.0
  %3025 = vmatpush1.msra.mxu0 0.0
  %3026 = vmatprep.mubr.f32.mxu0 0.0
  %3027 = vmatmul.mubr.f32.gmra.mrb[0].mxu0 %v2960
  %v3028 = vpop.f32.mrb[0].mxu0
  %v3029 = vadd.f32 0.0, %v3028
  %v3030 = vpop.f32.mrb[0].mxu0
  %v3031 = vadd.f32 0.0, %v3030
  %3032 = vdwg.mxu0
  %v3034 = vrot.slane %v3029, 2
  %v3036 = vadd.f32 %v2410, %v3034
  %v3038 = vrot.slane %v3031, 2
  %v3040 = vadd.f32 %v2413, %v3038
  %v3041 = vxor.u32 %v3036, 2147483648
  %v3042 = vmul.f32 %v3041, 1.442695
  %v3043 = vpow.pop %v3042
  %v3044 = vadd.f32 %v3043, 1.0
  %v3045 = vrcp.pop %v3044
  %v3046 = vmul.f32 1.0, %v3045
  %v3047 = vtanh.pop %v3036
  %v3049 = vrot.slane %v2932, 6
  %v3051 = vmul.f32 %v3046, %v3049
  %3053 = vrot.lane.b32.xlu0 %v3047, 64
  %v3054 = vpop.permute.xlu0 %3053
  %v3056 = vmul.f32 %v3046, %v3054
  %3058 = vrot.lane.b32.xlu0 %v3056, 32
  %v3059 = vpop.permute.xlu0 %3058
  %v3061 = vadd.f32 %v3051, %v3059
  %v3062 = vtanh.pop %v3061
  %3064 = vrot.lane.b32.xlu0 %v3062, 64
  %v3065 = vpop.permute.xlu0 %3064
  %v3067 = vmul.f32 %v3046, %v3065
  %v3068 = vxor.u32 %v3040, 2147483648
  %v3069 = vmul.f32 %v3068, 1.442695
  %v3070 = vpow.pop %v3069
  %v3071 = vadd.f32 %v3070, 1.0
  %v3072 = vrcp.pop %v3071
  %v3073 = vmul.f32 1.0, %v3072
  %v3074 = vtanh.pop %v3040
  %v3076 = vrot.slane %v2952, 2
  %v3078 = vmul.f32 %v3073, %v3076
  %3080 = vrot.lane.b32.xlu0 %v3074, 64
  %v3081 = vpop.permute.xlu0 %3080
  %v3083 = vmul.f32 %v3073, %v3081
  %3085 = vrot.lane.b32.xlu0 %v3083, 32
  %v3086 = vpop.permute.xlu0 %3085
  %v3088 = vadd.f32 %v3078, %v3086
  %v3089 = vtanh.pop %v3088
  %3091 = vrot.lane.b32.xlu0 %v3089, 64
  %v3092 = vpop.permute.xlu0 %3091
  %v3094 = vmul.f32 %v3073, %v3092
  %v3095 = vmul.f32 %v2555, %v3067
  %v3096 = vrot.slane %v2922, 6
  %3097 = vrot.lane.b32.xlu0 %v3096, 32
  %v3098 = vpop.permute.xlu0 %3097
  %v3100 = vmul.f32 %v2562, %v3098
  %3102 = vrot.lane.b32.xlu0 %v3100, 96
  %v3103 = vpop.permute.xlu0 %3102
  %v3105 = vadd.f32 %v3095, %v3103
  %v3106 = vmul.f32 %v2555, %v3061
  %3107 = vrot.lane.b32.xlu0 %v3049, 96
  %v3108 = vpop.permute.xlu0 %3107
  %v3110 = vmul.f32 %v2562, %v3108
  %3112 = vrot.lane.b32.xlu0 %v3110, 32
  %v3113 = vpop.permute.xlu0 %3112
  %v3115 = vadd.f32 %v3106, %v3113
  %v3116 = vmul.f32 %v2571, %v3094
  %v3118 = vrot.slane %v2942, 2
  %3119 = vrot.lane.b32.xlu0 %v3118, 32
  %v3120 = vpop.permute.xlu0 %3119
  %v3122 = vmul.f32 %v2578, %v3120
  %3124 = vrot.lane.b32.xlu0 %v3122, 96
  %v3125 = vpop.permute.xlu0 %3124
  %v3127 = vadd.f32 %v3116, %v3125
  %v3128 = vmul.f32 %v2571, %v3088
  %3129 = vrot.lane.b32.xlu0 %v3076, 96
  %v3130 = vpop.permute.xlu0 %3129
  %v3132 = vmul.f32 %v2578, %v3130
  %3134 = vrot.lane.b32.xlu0 %v3132, 32
  %v3135 = vpop.permute.xlu0 %3134
  %v3137 = vadd.f32 %v3128, %v3135
  %v3139 = vrot.slane %v3105, 6
  %v3142 = vrot.slane %v3127, 6
  %v3144 = vsel %vm2587, %v3139, %v3142
  %3146 = vrot.lane.b32.xlu0 %v3144, 32
  %v3147 = vpop.permute.xlu0 %3146
  %v3148 = vsel %vm2424, %v3147, 0
  %3150 = vmatprep.subr.mxu0 %v2417
  %3151 = vmatpush1.msra.mxu0 %v2416
  %3152 = vmatprep.subr.mxu0 %v2419
  %3153 = vmatpush1.msra.mxu0 %v2418
  %3154 = vmatprep.subr.mxu0 %v2421
  %3155 = vmatpush1.msra.mxu0 %v2420
  %3156 = vmatprep.subr.mxu0 %v2423
  %3157 = vmatpush1.msra.mxu0 %v2422
  %3158 = vmatprep.subr.mxu0 0.0
  %3159 = vmatpush1.msra.mxu0 0.0
  %3160 = vmatprep.subr.mxu0 0.0
  %3161 = vmatpush1.msra.mxu0 0.0
  %3162 = vmatprep.subr.mxu0 0.0
  %3163 = vmatpush1.msra.mxu0 0.0
  %3164 = vmatprep.subr.mxu0 0.0
  %3165 = vmatpush1.msra.mxu0 0.0
  %3166 = vmatprep.subr.mxu0 0.0
  %3167 = vmatpush1.msra.mxu0 0.0
  %3168 = vmatprep.subr.mxu0 0.0
  %3169 = vmatpush1.msra.mxu0 0.0
  %3170 = vmatprep.subr.mxu0 0.0
  %3171 = vmatpush1.msra.mxu0 0.0
  %3172 = vmatprep.subr.mxu0 0.0
  %3173 = vmatpush1.msra.mxu0 0.0
  %3174 = vmatprep.subr.mxu0 0.0
  %3175 = vmatpush1.msra.mxu0 0.0
  %3176 = vmatprep.subr.mxu0 0.0
  %3177 = vmatpush1.msra.mxu0 0.0
  %3178 = vmatprep.subr.mxu0 0.0
  %3179 = vmatpush1.msra.mxu0 0.0
  %3180 = vmatprep.subr.mxu0 0.0
  %3181 = vmatpush1.msra.mxu0 0.0
  %3182 = vmatprep.subr.mxu0 0.0
  %3183 = vmatpush1.msra.mxu0 0.0
  %3184 = vmatprep.subr.mxu0 0.0
  %3185 = vmatpush1.msra.mxu0 0.0
  %3186 = vmatprep.subr.mxu0 0.0
  %3187 = vmatpush1.msra.mxu0 0.0
  %3188 = vmatprep.subr.mxu0 0.0
  %3189 = vmatpush1.msra.mxu0 0.0
  %3190 = vmatprep.subr.mxu0 0.0
  %3191 = vmatpush1.msra.mxu0 0.0
  %3192 = vmatprep.subr.mxu0 0.0
  %3193 = vmatpush1.msra.mxu0 0.0
  %3194 = vmatprep.subr.mxu0 0.0
  %3195 = vmatpush1.msra.mxu0 0.0
  %3196 = vmatprep.subr.mxu0 0.0
  %3197 = vmatpush1.msra.mxu0 0.0
  %3198 = vmatprep.subr.mxu0 0.0
  %3199 = vmatpush1.msra.mxu0 0.0
  %3200 = vmatprep.subr.mxu0 0.0
  %3201 = vmatpush1.msra.mxu0 0.0
  %3202 = vmatprep.subr.mxu0 0.0
  %3203 = vmatpush1.msra.mxu0 0.0
  %3204 = vmatprep.subr.mxu0 0.0
  %3205 = vmatpush1.msra.mxu0 0.0
  %3206 = vmatprep.subr.mxu0 0.0
  %3207 = vmatpush1.msra.mxu0 0.0
  %3208 = vmatprep.subr.mxu0 0.0
  %3209 = vmatpush1.msra.mxu0 0.0
  %3210 = vmatprep.subr.mxu0 0.0
  %3211 = vmatpush1.msra.mxu0 0.0
  %3212 = vmatprep.subr.mxu0 0.0
  %3213 = vmatpush1.msra.mxu0 0.0
  %3214 = vmatprep.mubr.f32.mxu0 0.0
  %3215 = vmatmul.mubr.f32.gmra.mrb[0].mxu0 %v3148
  %v3216 = vpop.f32.mrb[0].mxu0
  %v3217 = vadd.f32 0.0, %v3216
  %v3218 = vpop.f32.mrb[0].mxu0
  %v3219 = vadd.f32 0.0, %v3218
  %3220 = vdwg.mxu0
  %v3221 = vadd.f32 %v2412, %v3217
  %v3223 = vrot.slane %v3219, 4
  %v3225 = vadd.f32 %v2411, %v3223
  %v3226 = vxor.u32 %v3221, 2147483648
  %v3227 = vmul.f32 %v3226, 1.442695
  %v3228 = vpow.pop %v3227
  %v3229 = vadd.f32 %v3228, 1.0
  %v3230 = vrcp.pop %v3229
  %v3231 = vmul.f32 1.0, %v3230
  %v3232 = vtanh.pop %v3221
  %v3234 = vrot.slane %v3115, 6
  %v3236 = vmul.f32 %v3231, %v3234
  %3238 = vrot.lane.b32.xlu0 %v3232, 64
  %v3239 = vpop.permute.xlu0 %3238
  %v3241 = vmul.f32 %v3231, %v3239
  %3243 = vrot.lane.b32.xlu0 %v3241, 32
  %v3244 = vpop.permute.xlu0 %3243
  %v3246 = vadd.f32 %v3236, %v3244
  %v3247 = vtanh.pop %v3246
  %3249 = vrot.lane.b32.xlu0 %v3247, 64
  %v3250 = vpop.permute.xlu0 %3249
  %v3252 = vmul.f32 %v3231, %v3250
  %v3253 = vxor.u32 %v3225, 2147483648
  %v3254 = vmul.f32 %v3253, 1.442695
  %v3255 = vpow.pop %v3254
  %v3256 = vadd.f32 %v3255, 1.0
  %v3257 = vrcp.pop %v3256
  %v3258 = vmul.f32 1.0, %v3257
  %v3259 = vtanh.pop %v3225
  %v3261 = vrot.slane %v3137, 2
  %v3263 = vmul.f32 %v3258, %v3261
  %3265 = vrot.lane.b32.xlu0 %v3259, 64
  %v3266 = vpop.permute.xlu0 %3265
  %v3268 = vmul.f32 %v3258, %v3266
  %3270 = vrot.lane.b32.xlu0 %v3268, 32
  %v3271 = vpop.permute.xlu0 %3270
  %v3273 = vadd.f32 %v3263, %v3271
  %v3274 = vtanh.pop %v3273
  %3276 = vrot.lane.b32.xlu0 %v3274, 64
  %v3277 = vpop.permute.xlu0 %3276
  %v3279 = vmul.f32 %v3258, %v3277
  %v3280 = vmul.f32 %v2571, %v3252
  %3281 = vrot.lane.b32.xlu0 %v3139, 32
  %v3282 = vpop.permute.xlu0 %3281
  %v3284 = vmul.f32 %v2578, %v3282
  %3286 = vrot.lane.b32.xlu0 %v3284, 96
  %v3287 = vpop.permute.xlu0 %3286
  %v3289 = vadd.f32 %v3280, %v3287
  %v3290 = vmul.f32 %v2571, %v3246
  %3291 = vrot.lane.b32.xlu0 %v3234, 96
  %v3292 = vpop.permute.xlu0 %3291
  %v3294 = vmul.f32 %v2578, %v3292
  %3296 = vrot.lane.b32.xlu0 %v3294, 32
  %v3297 = vpop.permute.xlu0 %3296
  %v3299 = vadd.f32 %v3290, %v3297
  %v3300 = vmul.f32 %v2555, %v3279
  %v3301 = vrot.slane %v3127, 2
  %3302 = vrot.lane.b32.xlu0 %v3301, 32
  %v3303 = vpop.permute.xlu0 %3302
  %v3305 = vmul.f32 %v2562, %v3303
  %3307 = vrot.lane.b32.xlu0 %v3305, 96
  %v3308 = vpop.permute.xlu0 %3307
  %v3310 = vadd.f32 %v3300, %v3308
  %v3311 = vmul.f32 %v2555, %v3273
  %3312 = vrot.lane.b32.xlu0 %v3261, 96
  %v3313 = vpop.permute.xlu0 %3312
  %v3315 = vmul.f32 %v2562, %v3313
  %3317 = vrot.lane.b32.xlu0 %v3315, 32
  %v3318 = vpop.permute.xlu0 %3317
  %v3320 = vadd.f32 %v3311, %v3318
  %v3322 = vrot.slane %v3310, 4
  %v3324 = vsel %vm2587, %v3289, %v3322
  %3326 = vrot.lane.b32.xlu0 %v3324, 32
  %v3327 = vpop.permute.xlu0 %3326
  %v3328 = vsel %vm2424, %v3327, 0
  %3330 = vmatprep.subr.mxu0 %v2417
  %3331 = vmatpush1.msra.mxu0 %v2416
  %3332 = vmatprep.subr.mxu0 %v2419
  %3333 = vmatpush1.msra.mxu0 %v2418
  %3334 = vmatprep.subr.mxu0 %v2421
  %3335 = vmatpush1.msra.mxu0 %v2420
  %3336 = vmatprep.subr.mxu0 %v2423
  %3337 = vmatpush1.msra.mxu0 %v2422
  %3338 = vmatprep.subr.mxu0 0.0
  %3339 = vmatpush1.msra.mxu0 0.0
  %3340 = vmatprep.subr.mxu0 0.0
  %3341 = vmatpush1.msra.mxu0 0.0
  %3342 = vmatprep.subr.mxu0 0.0
  %3343 = vmatpush1.msra.mxu0 0.0
  %3344 = vmatprep.subr.mxu0 0.0
  %3345 = vmatpush1.msra.mxu0 0.0
  %3346 = vmatprep.subr.mxu0 0.0
  %3347 = vmatpush1.msra.mxu0 0.0
  %3348 = vmatprep.subr.mxu0 0.0
  %3349 = vmatpush1.msra.mxu0 0.0
  %3350 = vmatprep.subr.mxu0 0.0
  %3351 = vmatpush1.msra.mxu0 0.0
  %3352 = vmatprep.subr.mxu0 0.0
  %3353 = vmatpush1.msra.mxu0 0.0
  %3354 = vmatprep.subr.mxu0 0.0
  %3355 = vmatpush1.msra.mxu0 0.0
  %3356 = vmatprep.subr.mxu0 0.0
  %3357 = vmatpush1.msra.mxu0 0.0
  %3358 = vmatprep.subr.mxu0 0.0
  %3359 = vmatpush1.msra.mxu0 0.0
  %3360 = vmatprep.subr.mxu0 0.0
  %3361 = vmatpush1.msra.mxu0 0.0
  %3362 = vmatprep.subr.mxu0 0.0
  %3363 = vmatpush1.msra.mxu0 0.0
  %3364 = vmatprep.subr.mxu0 0.0
  %3365 = vmatpush1.msra.mxu0 0.0
  %3366 = vmatprep.subr.mxu0 0.0
  %3367 = vmatpush1.msra.mxu0 0.0
  %3368 = vmatprep.subr.mxu0 0.0
  %3369 = vmatpush1.msra.mxu0 0.0
  %3370 = vmatprep.subr.mxu0 0.0
  %3371 = vmatpush1.msra.mxu0 0.0
  %3372 = vmatprep.subr.mxu0 0.0
  %3373 = vmatpush1.msra.mxu0 0.0
  %3374 = vmatprep.subr.mxu0 0.0
  %3375 = vmatpush1.msra.mxu0 0.0
  %3376 = vmatprep.subr.mxu0 0.0
  %3377 = vmatpush1.msra.mxu0 0.0
  %3378 = vmatprep.subr.mxu0 0.0
  %3379 = vmatpush1.msra.mxu0 0.0
  %3380 = vmatprep.subr.mxu0 0.0
  %3381 = vmatpush1.msra.mxu0 0.0
  %3382 = vmatprep.subr.mxu0 0.0
  %3383 = vmatpush1.msra.mxu0 0.0
  %3384 = vmatprep.subr.mxu0 0.0
  %3385 = vmatpush1.msra.mxu0 0.0
  %3386 = vmatprep.subr.mxu0 0.0
  %3387 = vmatpush1.msra.mxu0 0.0
  %3388 = vmatprep.subr.mxu0 0.0
  %3389 = vmatpush1.msra.mxu0 0.0
  %3390 = vmatprep.subr.mxu0 0.0
  %3391 = vmatpush1.msra.mxu0 0.0
  %3392 = vmatprep.subr.mxu0 0.0
  %3393 = vmatpush1.msra.mxu0 0.0
  %3394 = vmatprep.mubr.f32.mxu0 0.0
  %3395 = vmatmul.mubr.f32.gmra.mrb[0].mxu0 %v3328
  %v3396 = vpop.f32.mrb[0].mxu0
  %v3397 = vadd.f32 0.0, %v3396
  %v3398 = vpop.f32.mrb[0].mxu0
  %v3399 = vadd.f32 0.0, %v3398
  %3400 = vdwg.mxu0
  %v3402 = vrot.slane %v3397, 6
  %v3404 = vadd.f32 %v2412, %v3402
  %v3406 = vrot.slane %v3399, 6
  %v3408 = vadd.f32 %v2411, %v3406
  %v3409 = vxor.u32 %v3404, 2147483648
  %v3410 = vmul.f32 %v3409, 1.442695
  %v3411 = vpow.pop %v3410
  %v3412 = vadd.f32 %v3411, 1.0
  %v3413 = vrcp.pop %v3412
  %v3414 = vmul.f32 1.0, %v3413
  %v3415 = vtanh.pop %v3404
  %v3417 = vrot.slane %v3299, 6
  %v3419 = vmul.f32 %v3414, %v3417
  %3421 = vrot.lane.b32.xlu0 %v3415, 64
  %v3422 = vpop.permute.xlu0 %3421
  %v3424 = vmul.f32 %v3414, %v3422
  %3426 = vrot.lane.b32.xlu0 %v3424, 32
  %v3427 = vpop.permute.xlu0 %3426
  %v3429 = vadd.f32 %v3419, %v3427
  %v3430 = vtanh.pop %v3429
  %3432 = vrot.lane.b32.xlu0 %v3430, 64
  %v3433 = vpop.permute.xlu0 %3432
  %v3435 = vmul.f32 %v3414, %v3433
  %v3436 = vxor.u32 %v3408, 2147483648
  %v3437 = vmul.f32 %v3436, 1.442695
  %v3438 = vpow.pop %v3437
  %v3439 = vadd.f32 %v3438, 1.0
  %v3440 = vrcp.pop %v3439
  %v3441 = vmul.f32 1.0, %v3440
  %v3442 = vtanh.pop %v3408
  %v3444 = vrot.slane %v3320, 2
  %v3446 = vmul.f32 %v3441, %v3444
  %3448 = vrot.lane.b32.xlu0 %v3442, 64
  %v3449 = vpop.permute.xlu0 %3448
  %v3451 = vmul.f32 %v3441, %v3449
  %3453 = vrot.lane.b32.xlu0 %v3451, 32
  %v3454 = vpop.permute.xlu0 %3453
  %v3456 = vadd.f32 %v3446, %v3454
  %v3457 = vtanh.pop %v3456
  %3459 = vrot.lane.b32.xlu0 %v3457, 64
  %v3460 = vpop.permute.xlu0 %3459
  %v3462 = vmul.f32 %v3441, %v3460
  %v3463 = vmul.f32 %v2571, %v3435
  %v3465 = vrot.slane %v3289, 6
  %3466 = vrot.lane.b32.xlu0 %v3465, 32
  %v3467 = vpop.permute.xlu0 %3466
  %v3469 = vmul.f32 %v2578, %v3467
  %3471 = vrot.lane.b32.xlu0 %v3469, 96
  %v3472 = vpop.permute.xlu0 %3471
  %v3474 = vadd.f32 %v3463, %v3472
  %v3475 = vmul.f32 %v2571, %v3429
  %3476 = vrot.lane.b32.xlu0 %v3417, 96
  %v3477 = vpop.permute.xlu0 %3476
  %v3479 = vmul.f32 %v2578, %v3477
  %3481 = vrot.lane.b32.xlu0 %v3479, 32
  %v3482 = vpop.permute.xlu0 %3481
  %v3484 = vadd.f32 %v3475, %v3482
  %v3485 = vmul.f32 %v2555, %v3462
  %v3486 = vrot.slane %v3310, 2
  %3487 = vrot.lane.b32.xlu0 %v3486, 32
  %v3488 = vpop.permute.xlu0 %3487
  %v3490 = vmul.f32 %v2562, %v3488
  %3492 = vrot.lane.b32.xlu0 %v3490, 96
  %v3493 = vpop.permute.xlu0 %3492
  %v3495 = vadd.f32 %v3485, %v3493
  %v3496 = vmul.f32 %v2555, %v3456
  %3497 = vrot.lane.b32.xlu0 %v3444, 96
  %v3498 = vpop.permute.xlu0 %3497
  %v3500 = vmul.f32 %v2562, %v3498
  %3502 = vrot.lane.b32.xlu0 %v3500, 32
  %v3503 = vpop.permute.xlu0 %3502
  %v3505 = vadd.f32 %v3496, %v3503
  %v3507 = vrot.slane %v3474, 2
  %v3510 = vrot.slane %v3495, 2
  %v3512 = vsel %vm2587, %v3507, %v3510
  %3514 = vrot.lane.b32.xlu0 %v3512, 32
  %v3515 = vpop.permute.xlu0 %3514
  %v3516 = vsel %vm2424, %v3515, 0
  %3518 = vmatprep.subr.mxu0 %v2417
  %3519 = vmatpush1.msra.mxu0 %v2416
  %3520 = vmatprep.subr.mxu0 %v2419
  %3521 = vmatpush1.msra.mxu0 %v2418
  %3522 = vmatprep.subr.mxu0 %v2421
  %3523 = vmatpush1.msra.mxu0 %v2420
  %3524 = vmatprep.subr.mxu0 %v2423
  %3525 = vmatpush1.msra.mxu0 %v2422
  %3526 = vmatprep.subr.mxu0 0.0
  %3527 = vmatpush1.msra.mxu0 0.0
  %3528 = vmatprep.subr.mxu0 0.0
  %3529 = vmatpush1.msra.mxu0 0.0
  %3530 = vmatprep.subr.mxu0 0.0
  %3531 = vmatpush1.msra.mxu0 0.0
  %3532 = vmatprep.subr.mxu0 0.0
  %3533 = vmatpush1.msra.mxu0 0.0
  %3534 = vmatprep.subr.mxu0 0.0
  %3535 = vmatpush1.msra.mxu0 0.0
  %3536 = vmatprep.subr.mxu0 0.0
  %3537 = vmatpush1.msra.mxu0 0.0
  %3538 = vmatprep.subr.mxu0 0.0
  %3539 = vmatpush1.msra.mxu0 0.0
  %3540 = vmatprep.subr.mxu0 0.0
  %3541 = vmatpush1.msra.mxu0 0.0
  %3542 = vmatprep.subr.mxu0 0.0
  %3543 = vmatpush1.msra.mxu0 0.0
  %3544 = vmatprep.subr.mxu0 0.0
  %3545 = vmatpush1.msra.mxu0 0.0
  %3546 = vmatprep.subr.mxu0 0.0
  %3547 = vmatpush1.msra.mxu0 0.0
  %3548 = vmatprep.subr.mxu0 0.0
  %3549 = vmatpush1.msra.mxu0 0.0
  %3550 = vmatprep.subr.mxu0 0.0
  %3551 = vmatpush1.msra.mxu0 0.0
  %3552 = vmatprep.subr.mxu0 0.0
  %3553 = vmatpush1.msra.mxu0 0.0
  %3554 = vmatprep.subr.mxu0 0.0
  %3555 = vmatpush1.msra.mxu0 0.0
  %3556 = vmatprep.subr.mxu0 0.0
  %3557 = vmatpush1.msra.mxu0 0.0
  %3558 = vmatprep.subr.mxu0 0.0
  %3559 = vmatpush1.msra.mxu0 0.0
  %3560 = vmatprep.subr.mxu0 0.0
  %3561 = vmatpush1.msra.mxu0 0.0
  %3562 = vmatprep.subr.mxu0 0.0
  %3563 = vmatpush1.msra.mxu0 0.0
  %3564 = vmatprep.subr.mxu0 0.0
  %3565 = vmatpush1.msra.mxu0 0.0
  %3566 = vmatprep.subr.mxu0 0.0
  %3567 = vmatpush1.msra.mxu0 0.0
  %3568 = vmatprep.subr.mxu0 0.0
  %3569 = vmatpush1.msra.mxu0 0.0
  %3570 = vmatprep.subr.mxu0 0.0
  %3571 = vmatpush1.msra.mxu0 0.0
  %3572 = vmatprep.subr.mxu0 0.0
  %3573 = vmatpush1.msra.mxu0 0.0
  %3574 = vmatprep.subr.mxu0 0.0
  %3575 = vmatpush1.msra.mxu0 0.0
  %3576 = vmatprep.subr.mxu0 0.0
  %3577 = vmatpush1.msra.mxu0 0.0
  %3578 = vmatprep.subr.mxu0 0.0
  %3579 = vmatpush1.msra.mxu0 0.0
  %3580 = vmatprep.subr.mxu0 0.0
  %3581 = vmatpush1.msra.mxu0 0.0
  %3582 = vmatprep.mubr.f32.mxu0 0.0
  %3583 = vmatmul.mubr.f32.gmra.mrb[0].mxu0 %v3516
  %v3584 = vpop.f32.mrb[0].mxu0
  %v3585 = vadd.f32 0.0, %v3584
  %v3586 = vpop.f32.mrb[0].mxu0
  %v3587 = vadd.f32 0.0, %v3586
  %3588 = vdwg.mxu0
  %v3590 = vrot.slane %v3585, 4
  %v3592 = vadd.f32 %v2412, %v3590
  %v3593 = vadd.f32 %v2411, %v3587
  %v3594 = vxor.u32 %v3592, 2147483648
  %v3595 = vmul.f32 %v3594, 1.442695
  %v3596 = vpow.pop %v3595
  %v3597 = vadd.f32 %v3596, 1.0
  %v3598 = vrcp.pop %v3597
  %v3599 = vmul.f32 1.0, %v3598
  %v3600 = vtanh.pop %v3592
  %v3602 = vrot.slane %v3484, 6
  %v3604 = vmul.f32 %v3599, %v3602
  %3606 = vrot.lane.b32.xlu0 %v3600, 64
  %v3607 = vpop.permute.xlu0 %3606
  %v3609 = vmul.f32 %v3599, %v3607
  %3611 = vrot.lane.b32.xlu0 %v3609, 32
  %v3612 = vpop.permute.xlu0 %3611
  %v3614 = vadd.f32 %v3604, %v3612
  %v3615 = vtanh.pop %v3614
  %3617 = vrot.lane.b32.xlu0 %v3615, 64
  %v3618 = vpop.permute.xlu0 %3617
  %v3620 = vmul.f32 %v3599, %v3618
  %v3621 = vxor.u32 %v3593, 2147483648
  %v3622 = vmul.f32 %v3621, 1.442695
  %v3623 = vpow.pop %v3622
  %v3624 = vadd.f32 %v3623, 1.0
  %v3625 = vrcp.pop %v3624
  %v3626 = vmul.f32 1.0, %v3625
  %v3627 = vtanh.pop %v3593
  %v3629 = vrot.slane %v3505, 2
  %v3631 = vmul.f32 %v3626, %v3629
  %3633 = vrot.lane.b32.xlu0 %v3627, 64
  %v3634 = vpop.permute.xlu0 %3633
  %v3636 = vmul.f32 %v3626, %v3634
  %3638 = vrot.lane.b32.xlu0 %v3636, 32
  %v3639 = vpop.permute.xlu0 %3638
  %v3641 = vadd.f32 %v3631, %v3639
  %v3642 = vtanh.pop %v3641
  %3644 = vrot.lane.b32.xlu0 %v3642, 64
  %v3645 = vpop.permute.xlu0 %3644
  %v3647 = vmul.f32 %v3626, %v3645
  %v3648 = vmul.f32 %v2571, %v3620
  %v3649 = vrot.slane %v3474, 6
  %3650 = vrot.lane.b32.xlu0 %v3649, 32
  %v3651 = vpop.permute.xlu0 %3650
  %v3653 = vmul.f32 %v2578, %v3651
  %3655 = vrot.lane.b32.xlu0 %v3653, 96
  %v3656 = vpop.permute.xlu0 %3655
  %v3658 = vadd.f32 %v3648, %v3656
  %v3659 = vmul.f32 %v2571, %v3614
  %3660 = vrot.lane.b32.xlu0 %v3602, 96
  %v3661 = vpop.permute.xlu0 %3660
  %v3663 = vmul.f32 %v2578, %v3661
  %3665 = vrot.lane.b32.xlu0 %v3663, 32
  %v3666 = vpop.permute.xlu0 %3665
  %v3668 = vadd.f32 %v3659, %v3666
  %v3669 = vmul.f32 %v2555, %v3647
  %3670 = vrot.lane.b32.xlu0 %v3510, 32
  %v3671 = vpop.permute.xlu0 %3670
  %v3673 = vmul.f32 %v2562, %v3671
  %3675 = vrot.lane.b32.xlu0 %v3673, 96
  %v3676 = vpop.permute.xlu0 %3675
  %v3678 = vadd.f32 %v3669, %v3676
  %v3679 = vmul.f32 %v2555, %v3641
  %3680 = vrot.lane.b32.xlu0 %v3629, 96
  %v3681 = vpop.permute.xlu0 %3680
  %v3683 = vmul.f32 %v2562, %v3681
  %3685 = vrot.lane.b32.xlu0 %v3683, 32
  %v3686 = vpop.permute.xlu0 %3685
  %v3688 = vadd.f32 %v3679, %v3686
  %v3690 = vrot.slane %v3658, 4
  %v3692 = vsel %vm2587, %v3690, %v3678
  %3694 = vrot.lane.b32.xlu0 %v3692, 32
  %v3695 = vpop.permute.xlu0 %3694
  %v3696 = vsel %vm2424, %v3695, 0
  %3698 = vmatprep.subr.mxu0 %v2417
  %3699 = vmatpush1.msra.mxu0 %v2416
  %3700 = vmatprep.subr.mxu0 %v2419
  %3701 = vmatpush1.msra.mxu0 %v2418
  %3702 = vmatprep.subr.mxu0 %v2421
  %3703 = vmatpush1.msra.mxu0 %v2420
  %3704 = vmatprep.subr.mxu0 %v2423
  %3705 = vmatpush1.msra.mxu0 %v2422
  %3706 = vmatprep.subr.mxu0 0.0
  %3707 = vmatpush1.msra.mxu0 0.0
  %3708 = vmatprep.subr.mxu0 0.0
  %3709 = vmatpush1.msra.mxu0 0.0
  %3710 = vmatprep.subr.mxu0 0.0
  %3711 = vmatpush1.msra.mxu0 0.0
  %3712 = vmatprep.subr.mxu0 0.0
  %3713 = vmatpush1.msra.mxu0 0.0
  %3714 = vmatprep.subr.mxu0 0.0
  %3715 = vmatpush1.msra.mxu0 0.0
  %3716 = vmatprep.subr.mxu0 0.0
  %3717 = vmatpush1.msra.mxu0 0.0
  %3718 = vmatprep.subr.mxu0 0.0
  %3719 = vmatpush1.msra.mxu0 0.0
  %3720 = vmatprep.subr.mxu0 0.0
  %3721 = vmatpush1.msra.mxu0 0.0
  %3722 = vmatprep.subr.mxu0 0.0
  %3723 = vmatpush1.msra.mxu0 0.0
  %3724 = vmatprep.subr.mxu0 0.0
  %3725 = vmatpush1.msra.mxu0 0.0
  %3726 = vmatprep.subr.mxu0 0.0
  %3727 = vmatpush1.msra.mxu0 0.0
  %3728 = vmatprep.subr.mxu0 0.0
  %3729 = vmatpush1.msra.mxu0 0.0
  %3730 = vmatprep.subr.mxu0 0.0
  %3731 = vmatpush1.msra.mxu0 0.0
  %3732 = vmatprep.subr.mxu0 0.0
  %3733 = vmatpush1.msra.mxu0 0.0
  %3734 = vmatprep.subr.mxu0 0.0
  %3735 = vmatpush1.msra.mxu0 0.0
  %3736 = vmatprep.subr.mxu0 0.0
  %3737 = vmatpush1.msra.mxu0 0.0
  %3738 = vmatprep.subr.mxu0 0.0
  %3739 = vmatpush1.msra.mxu0 0.0
  %3740 = vmatprep.subr.mxu0 0.0
  %3741 = vmatpush1.msra.mxu0 0.0
  %3742 = vmatprep.subr.mxu0 0.0
  %3743 = vmatpush1.msra.mxu0 0.0
  %3744 = vmatprep.subr.mxu0 0.0
  %3745 = vmatpush1.msra.mxu0 0.0
  %3746 = vmatprep.subr.mxu0 0.0
  %3747 = vmatpush1.msra.mxu0 0.0
  %3748 = vmatprep.subr.mxu0 0.0
  %3749 = vmatpush1.msra.mxu0 0.0
  %3750 = vmatprep.subr.mxu0 0.0
  %3751 = vmatpush1.msra.mxu0 0.0
  %3752 = vmatprep.subr.mxu0 0.0
  %3753 = vmatpush1.msra.mxu0 0.0
  %3754 = vmatprep.subr.mxu0 0.0
  %3755 = vmatpush1.msra.mxu0 0.0
  %3756 = vmatprep.subr.mxu0 0.0
  %3757 = vmatpush1.msra.mxu0 0.0
  %3758 = vmatprep.subr.mxu0 0.0
  %3759 = vmatpush1.msra.mxu0 0.0
  %3760 = vmatprep.subr.mxu0 0.0
  %3761 = vmatpush1.msra.mxu0 0.0
  %3762 = vmatprep.mubr.f32.mxu0 0.0
  %3763 = vmatmul.mubr.f32.gmra.mrb[0].mxu0 %v3696
  %v3764 = vpop.f32.mrb[0].mxu0
  %v3765 = vadd.f32 0.0, %v3764
  %v3766 = vpop.f32.mrb[0].mxu0
  %v3767 = vadd.f32 0.0, %v3766
  %3768 = vdwg.mxu0
  %v3770 = vrot.slane %v3765, 2
  %v3772 = vadd.f32 %v2412, %v3770
  %v3774 = vrot.slane %v3767, 2
  %v3776 = vadd.f32 %v2411, %v3774
  %v3777 = vxor.u32 %v3772, 2147483648
  %v3778 = vmul.f32 %v3777, 1.442695
  %v3779 = vpow.pop %v3778
  %v3780 = vadd.f32 %v3779, 1.0
  %v3781 = vrcp.pop %v3780
  %v3782 = vmul.f32 1.0, %v3781
  %v3783 = vtanh.pop %v3772
  %v3785 = vrot.slane %v3668, 6
  %v3787 = vmul.f32 %v3782, %v3785
  %3789 = vrot.lane.b32.xlu0 %v3783, 64
  %v3790 = vpop.permute.xlu0 %3789
  %v3792 = vmul.f32 %v3782, %v3790
  %3794 = vrot.lane.b32.xlu0 %v3792, 32
  %v3795 = vpop.permute.xlu0 %3794
  %v3797 = vadd.f32 %v3787, %v3795
  %v3798 = vtanh.pop %v3797
  %3800 = vrot.lane.b32.xlu0 %v3798, 64
  %v3801 = vpop.permute.xlu0 %3800
  %v3803 = vmul.f32 %v3782, %v3801
  %v3804 = vxor.u32 %v3776, 2147483648
  %v3805 = vmul.f32 %v3804, 1.442695
  %v3806 = vpow.pop %v3805
  %v3807 = vadd.f32 %v3806, 1.0
  %v3808 = vrcp.pop %v3807
  %v3809 = vmul.f32 1.0, %v3808
  %v3810 = vtanh.pop %v3776
  %v3812 = vrot.slane %v3688, 2
  %v3814 = vmul.f32 %v3809, %v3812
  %3816 = vrot.lane.b32.xlu0 %v3810, 64
  %v3817 = vpop.permute.xlu0 %3816
  %v3819 = vmul.f32 %v3809, %v3817
  %3821 = vrot.lane.b32.xlu0 %v3819, 32
  %v3822 = vpop.permute.xlu0 %3821
  %v3824 = vadd.f32 %v3814, %v3822
  %v3825 = vtanh.pop %v3824
  %3827 = vrot.lane.b32.xlu0 %v3825, 64
  %v3828 = vpop.permute.xlu0 %3827
  %v3830 = vmul.f32 %v3809, %v3828
  %v3831 = vmul.f32 %v2571, %v3803
  %v3832 = vmul.f32 %v2555, %v3830
  %v3833 = vsel %vm2587, %v2557, %v2727
  %v3834 = vsel %vm1107, %v3833, %v2912
  %v3835 = vsel %vm252, %v3834, %v3095
  %v3836 = vsel %vm2587, %v3280, %v3463
  %v3837 = vsel %vm1107, %v3836, %v3648
  %v3838 = vsel %vm252, %v3837, %v3831
  %v3839 = vsel %vm2587, %v3832, %v3669
  %v3840 = vsel %vm1107, %v3839, %v3485
  %v3841 = vsel %vm252, %v3840, %v3300
  %v3842 = vsel %vm2587, %v3116, %v2933
  %v3843 = vsel %vm1107, %v3842, %v2749
  %v3844 = vsel %vm252, %v3843, %v2573
  %v3845 = vld [vmem:[%s15] sm:$0xff]
  %v3846 = vld [vmem:[%s15 + $0x8] sm:$0xff]
  %v3847 = vld [vmem:[%s15 + $0x10] sm:$0xff]
  %v3848 = vld [vmem:[%s15 + $0x18] sm:$0xff]
  %v3849 = vld [vmem:[%s16] sm:$0xff]
  %v3850 = vld [vmem:[%s16 + $0x8] sm:$0xff]
  %v3851 = vld [vmem:[%s16 + $0x10] sm:$0xff]
  %v3852 = vld [vmem:[%s16 + $0x18] sm:$0xff]
  %3855 = vrot.lane.b32.xlu0 %v3841, 32
  %v3856 = vpop.permute.xlu0 %3855
  %3857 = vrot.lane.b32.xlu0 %v3844, 32
  %v3858 = vpop.permute.xlu0 %3857
  %v3859 = vsel %vm2424, %v3856, 0
  %v3861 = vsel %vm2424, %v3858, 0
  %3863 = vmatprep.subr.mxu0 0.0
  %3864 = vmatpush1.msra.mxu0 %v3849
  %3865 = vmatprep.subr.mxu0 0.0
  %3866 = vmatpush1.msra.mxu0 %v3850
  %3867 = vmatprep.subr.mxu0 0.0
  %3868 = vmatpush1.msra.mxu0 %v3851
  %3869 = vmatprep.subr.mxu0 0.0
  %3870 = vmatpush1.msra.mxu0 %v3852
  %3871 = vmatprep.subr.mxu0 0.0
  %3872 = vmatpush1.msra.mxu0 0.0
  %3873 = vmatprep.subr.mxu0 0.0
  %3874 = vmatpush1.msra.mxu0 0.0
  %3875 = vmatprep.subr.mxu0 0.0
  %3876 = vmatpush1.msra.mxu0 0.0
  %3877 = vmatprep.subr.mxu0 0.0
  %3878 = vmatpush1.msra.mxu0 0.0
  %3879 = vmatprep.subr.mxu0 0.0
  %3880 = vmatpush1.msra.mxu0 0.0
  %3881 = vmatprep.subr.mxu0 0.0
  %3882 = vmatpush1.msra.mxu0 0.0
  %3883 = vmatprep.subr.mxu0 0.0
  %3884 = vmatpush1.msra.mxu0 0.0
  %3885 = vmatprep.subr.mxu0 0.0
  %3886 = vmatpush1.msra.mxu0 0.0
  %3887 = vmatprep.subr.mxu0 0.0
  %3888 = vmatpush1.msra.mxu0 0.0
  %3889 = vmatprep.subr.mxu0 0.0
  %3890 = vmatpush1.msra.mxu0 0.0
  %3891 = vmatprep.subr.mxu0 0.0
  %3892 = vmatpush1.msra.mxu0 0.0
  %3893 = vmatprep.subr.mxu0 0.0
  %3894 = vmatpush1.msra.mxu0 0.0
  %3895 = vmatprep.subr.mxu0 0.0
  %3896 = vmatpush1.msra.mxu0 0.0
  %3897 = vmatprep.subr.mxu0 0.0
  %3898 = vmatpush1.msra.mxu0 0.0
  %3899 = vmatprep.subr.mxu0 0.0
  %3900 = vmatpush1.msra.mxu0 0.0
  %3901 = vmatprep.subr.mxu0 0.0
  %3902 = vmatpush1.msra.mxu0 0.0
  %3903 = vmatprep.subr.mxu0 0.0
  %3904 = vmatpush1.msra.mxu0 0.0
  %3905 = vmatprep.subr.mxu0 0.0
  %3906 = vmatpush1.msra.mxu0 0.0
  %3907 = vmatprep.subr.mxu0 0.0
  %3908 = vmatpush1.msra.mxu0 0.0
  %3909 = vmatprep.subr.mxu0 0.0
  %3910 = vmatpush1.msra.mxu0 0.0
  %3911 = vmatprep.subr.mxu0 0.0
  %3912 = vmatpush1.msra.mxu0 0.0
  %3913 = vmatprep.subr.mxu0 0.0
  %3914 = vmatpush1.msra.mxu0 0.0
  %3915 = vmatprep.subr.mxu0 0.0
  %3916 = vmatpush1.msra.mxu0 0.0
  %3917 = vmatprep.subr.mxu0 0.0
  %3918 = vmatpush1.msra.mxu0 0.0
  %3919 = vmatprep.subr.mxu0 0.0
  %3920 = vmatpush1.msra.mxu0 0.0
  %3921 = vmatprep.subr.mxu0 0.0
  %3922 = vmatpush1.msra.mxu0 0.0
  %3923 = vmatprep.subr.mxu0 0.0
  %3924 = vmatpush1.msra.mxu0 0.0
  %3925 = vmatprep.subr.mxu0 0.0
  %3926 = vmatpush1.msra.mxu0 0.0
  %3927 = vmatprep.mubr.f32.mxu0 0.0
  %3928 = vmatmul.mubr.f32.gmra.mrb[0].mxu0 %v3859
  %v3929 = vpop.f32.mrb[0].mxu0
  %v3930 = vadd.f32 0.0, %v3929
  %v3931 = vpop.f32.mrb[0].mxu0
  %3932 = vmatprep.mubr.f32.mxu0 0.0
  %3933 = vmatmul.mubr.f32.gmra.mrb[0].mxu0 %v3861
  %v3934 = vpop.f32.mrb[0].mxu0
  %v3935 = vadd.f32 0.0, %v3934
  %v3936 = vpop.f32.mrb[0].mxu0
  %3937 = vdwg.mxu0
  %3940 = vrot.lane.b32.xlu0 %v3835, 32
  %v3941 = vpop.permute.xlu0 %3940
  %3942 = vrot.lane.b32.xlu0 %v3838, 32
  %v3943 = vpop.permute.xlu0 %3942
  %v3944 = vsel %vm2424, %v3941, 0
  %v3946 = vsel %vm2424, %v3943, 0
  %3948 = vmatprep.subr.mxu0 0.0
  %3949 = vmatpush1.msra.mxu0 %v3845
  %3950 = vmatprep.subr.mxu0 0.0
  %3951 = vmatpush1.msra.mxu0 %v3846
  %3952 = vmatprep.subr.mxu0 0.0
  %3953 = vmatpush1.msra.mxu0 %v3847
  %3954 = vmatprep.subr.mxu0 0.0
  %3955 = vmatpush1.msra.mxu0 %v3848
  %3956 = vmatprep.subr.mxu0 0.0
  %3957 = vmatpush1.msra.mxu0 0.0
  %3958 = vmatprep.subr.mxu0 0.0
  %3959 = vmatpush1.msra.mxu0 0.0
  %3960 = vmatprep.subr.mxu0 0.0
  %3961 = vmatpush1.msra.mxu0 0.0
  %3962 = vmatprep.subr.mxu0 0.0
  %3963 = vmatpush1.msra.mxu0 0.0
  %3964 = vmatprep.subr.mxu0 0.0
  %3965 = vmatpush1.msra.mxu0 0.0
  %3966 = vmatprep.subr.mxu0 0.0
  %3967 = vmatpush1.msra.mxu0 0.0
  %3968 = vmatprep.subr.mxu0 0.0
  %3969 = vmatpush1.msra.mxu0 0.0
  %3970 = vmatprep.subr.mxu0 0.0
  %3971 = vmatpush1.msra.mxu0 0.0
  %3972 = vmatprep.subr.mxu0 0.0
  %3973 = vmatpush1.msra.mxu0 0.0
  %3974 = vmatprep.subr.mxu0 0.0
  %3975 = vmatpush1.msra.mxu0 0.0
  %3976 = vmatprep.subr.mxu0 0.0
  %3977 = vmatpush1.msra.mxu0 0.0
  %3978 = vmatprep.subr.mxu0 0.0
  %3979 = vmatpush1.msra.mxu0 0.0
  %3980 = vmatprep.subr.mxu0 0.0
  %3981 = vmatpush1.msra.mxu0 0.0
  %3982 = vmatprep.subr.mxu0 0.0
  %3983 = vmatpush1.msra.mxu0 0.0
  %3984 = vmatprep.subr.mxu0 0.0
  %3985 = vmatpush1.msra.mxu0 0.0
  %3986 = vmatprep.subr.mxu0 0.0
  %3987 = vmatpush1.msra.mxu0 0.0
  %3988 = vmatprep.subr.mxu0 0.0
  %3989 = vmatpush1.msra.mxu0 0.0
  %3990 = vmatprep.subr.mxu0 0.0
  %3991 = vmatpush1.msra.mxu0 0.0
  %3992 = vmatprep.subr.mxu0 0.0
  %3993 = vmatpush1.msra.mxu0 0.0
  %3994 = vmatprep.subr.mxu0 0.0
  %3995 = vmatpush1.msra.mxu0 0.0
  %3996 = vmatprep.subr.mxu0 0.0
  %3997 = vmatpush1.msra.mxu0 0.0
  %3998 = vmatprep.subr.mxu0 0.0
  %3999 = vmatpush1.msra.mxu0 0.0
  %4000 = vmatprep.subr.mxu0 0.0
  %4001 = vmatpush1.msra.mxu0 0.0
  %4002 = vmatprep.subr.mxu0 0.0
  %4003 = vmatpush1.msra.mxu0 0.0
  %4004 = vmatprep.subr.mxu0 0.0
  %4005 = vmatpush1.msra.mxu0 0.0
  %4006 = vmatprep.subr.mxu0 0.0
  %4007 = vmatpush1.msra.mxu0 0.0
  %4008 = vmatprep.subr.mxu0 0.0
  %4009 = vmatpush1.msra.mxu0 0.0
  %4010 = vmatprep.subr.mxu0 0.0
  %4011 = vmatpush1.msra.mxu0 0.0
  %4012 = vmatprep.mubr.f32.mxu0 0.0
  %4013 = vmatmul.mubr.f32.gmra.mrb[0].mxu0 %v3944
  %v4014 = vpop.f32.mrb[0].mxu0
  %v4015 = vadd.f32 %v3930, %v4014
  %v4016 = vpop.f32.mrb[0].mxu0
  %4017 = vmatprep.mubr.f32.mxu0 0.0
  %4018 = vmatmul.mubr.f32.gmra.mrb[0].mxu0 %v3946
  %v4019 = vpop.f32.mrb[0].mxu0
  %v4020 = vadd.f32 %v3935, %v4019
  %v4021 = vpop.f32.mrb[0].mxu0
  %4022 = vdwg.mxu0
  %v4023 = vld [vmem:[%s17] sm:$0x1]
  %v4025 = vlaneseq
  %v4026 = vshrl.u32 %v4025, 7
  %v4027 = vsub.s32 0, %v4026
  %v4028 = vrot.slane %v4023, %v4027
  %v4030 = vadd.f32 %v4015, %v4028
  %v4031 = vadd.f32 %v4020, %v4028
  %vm4032 = vcmp.gt.f32.partialorder %v4030, 0.0
  %vm4033 = vcmp.gt.f32.partialorder %v4031, 0.0
  %v4034 = vmin.f32 %v4030, 0.0
  %v4035 = vmin.f32 %v4031, 0.0
  %v4036 = vmul.f32 %v4034, 1.442695
  %v4037 = vpow.pop %v4036
  %v4038 = vmul.f32 %v4035, 1.442695
  %v4039 = vpow.pop %v4038
  %v4040 = vsub.f32 %v4037, 1.0
  %v4041 = vsub.f32 %v4039, 1.0
  %v4042 = vsel %vm4032, %v4030, %v4040
  %v4043 = vsel %vm4033, %v4031, %v4041
  %v4044 = vld [vmem:[%s18] sm:$0xff]
  %v4045 = vld [vmem:[%s18 + $0x8] sm:$0xff]
  %v4046 = vld [vmem:[%s19] sm:$0x1]
  %v4048 = vlaneseq
  %v4049 = vshrl.u32 %v4048, 7
  %v4050 = vsub.s32 0, %v4049
  %v4051 = vrot.slane %v4046, %v4050
  %v4054 = vsel %vm2282, %v4042, 0
  %v4057 = vsel %vm2282, %v4043, 0
  %4059 = vmatprep.subr.mxu0 0.0
  %4060 = vmatpush1.msra.mxu0 %v4044
  %4061 = vmatprep.subr.mxu0 0.0
  %4062 = vmatpush1.msra.mxu0 %v4045
  %4063 = vmatprep.subr.mxu0 0.0
  %4064 = vmatpush1.msra.mxu0 0.0
  %4065 = vmatprep.subr.mxu0 0.0
  %4066 = vmatpush1.msra.mxu0 0.0
  %4067 = vmatprep.subr.mxu0 0.0
  %4068 = vmatpush1.msra.mxu0 0.0
  %4069 = vmatprep.subr.mxu0 0.0
  %4070 = vmatpush1.msra.mxu0 0.0
  %4071 = vmatprep.subr.mxu0 0.0
  %4072 = vmatpush1.msra.mxu0 0.0
  %4073 = vmatprep.subr.mxu0 0.0
  %4074 = vmatpush1.msra.mxu0 0.0
  %4075 = vmatprep.subr.mxu0 0.0
  %4076 = vmatpush1.msra.mxu0 0.0
  %4077 = vmatprep.subr.mxu0 0.0
  %4078 = vmatpush1.msra.mxu0 0.0
  %4079 = vmatprep.subr.mxu0 0.0
  %4080 = vmatpush1.msra.mxu0 0.0
  %4081 = vmatprep.subr.mxu0 0.0
  %4082 = vmatpush1.msra.mxu0 0.0
  %4083 = vmatprep.subr.mxu0 0.0
  %4084 = vmatpush1.msra.mxu0 0.0
  %4085 = vmatprep.subr.mxu0 0.0
  %4086 = vmatpush1.msra.mxu0 0.0
  %4087 = vmatprep.subr.mxu0 0.0
  %4088 = vmatpush1.msra.mxu0 0.0
  %4089 = vmatprep.subr.mxu0 0.0
  %4090 = vmatpush1.msra.mxu0 0.0
  %4091 = vmatprep.subr.mxu0 0.0
  %4092 = vmatpush1.msra.mxu0 0.0
  %4093 = vmatprep.subr.mxu0 0.0
  %4094 = vmatpush1.msra.mxu0 0.0
  %4095 = vmatprep.subr.mxu0 0.0
  %4096 = vmatpush1.msra.mxu0 0.0
  %4097 = vmatprep.subr.mxu0 0.0
  %4098 = vmatpush1.msra.mxu0 0.0
  %4099 = vmatprep.subr.mxu0 0.0
  %4100 = vmatpush1.msra.mxu0 0.0
  %4101 = vmatprep.subr.mxu0 0.0
  %4102 = vmatpush1.msra.mxu0 0.0
  %4103 = vmatprep.subr.mxu0 0.0
  %4104 = vmatpush1.msra.mxu0 0.0
  %4105 = vmatprep.subr.mxu0 0.0
  %4106 = vmatpush1.msra.mxu0 0.0
  %4107 = vmatprep.subr.mxu0 0.0
  %4108 = vmatpush1.msra.mxu0 0.0
  %4109 = vmatprep.subr.mxu0 0.0
  %4110 = vmatpush1.msra.mxu0 0.0
  %4111 = vmatprep.subr.mxu0 0.0
  %4112 = vmatpush1.msra.mxu0 0.0
  %4113 = vmatprep.subr.mxu0 0.0
  %4114 = vmatpush1.msra.mxu0 0.0
  %4115 = vmatprep.subr.mxu0 0.0
  %4116 = vmatpush1.msra.mxu0 0.0
  %4117 = vmatprep.subr.mxu0 0.0
  %4118 = vmatpush1.msra.mxu0 0.0
  %4119 = vmatprep.subr.mxu0 0.0
  %4120 = vmatpush1.msra.mxu0 0.0
  %4121 = vmatprep.subr.mxu0 0.0
  %4122 = vmatpush1.msra.mxu0 0.0
  %4123 = vmatprep.mubr.f32.mxu0 0.0
  %4124 = vmatmul.mubr.f32.gmra.mrb[0].mxu0 %v4054
  %v4125 = vpop.f32.mrb[0].mxu0
  %v4126 = vadd.f32 %v4051, %v4125
  %v4127 = vpop.f32.mrb[0].mxu0
  %4128 = vmatprep.mubr.f32.mxu0 0.0
  %4129 = vmatmul.mubr.f32.gmra.mrb[0].mxu0 %v4057
  %v4130 = vpop.f32.mrb[0].mxu0
  %v4131 = vadd.f32 %v4051, %v4130
  %v4132 = vpop.f32.mrb[0].mxu0
  %4133 = vdwg.mxu0
  %vm4134 = vcmask 39936
  %4135 = vst.msk [vmem:[%s20] sm:$0xff] %vm4134, %v4126
  %4136 = vst.msk [vmem:[%s20 + $0x8] sm:$0xff] %vm4134, %v4131
  // Predicated region
  $region82: #{blstm_cnn_forward.1} parent=0 // pred_check
    _
  $region83: #{blstm_cnn_forward.1} parent=0 // pred_check_branch
    %4138 = sbr.rel (0) target = $region85
  $region84: #{blstm_cnn_forward.1} parent=0 // pred_region
    _
  $region85: #{blstm_cnn_forward.1} parent=0 // pred_fallthru
    _
  // Predicated region
  $region86: #{blstm_cnn_forward.1} parent=0 // pred_check
    _
  $region87: #{blstm_cnn_forward.1} parent=0 // pred_check_branch
    %4140 = sbr.rel (0) target = $region89
  $region88: #{blstm_cnn_forward.1} parent=0 // pred_region
    _
  $region89: #{blstm_cnn_forward.1} parent=0 // pred_fallthru
    _

</llo_original>
